<compile_context>
chip_gen: v6e
topology: v6e:2x2x1
jax: 0.10.0
libtpu: 0.0.40
codegen_flags: <defaults>
</compile_context>

<pallas_src>
import functools

import jax
import jax.numpy as jnp
from jax.experimental import pallas as pl
from jax.experimental.pallas import tpu as pltpu


CFG = dict(
    vocab_size=64,
    max_pos=16,
    hidden=128,          # scaled-down stand-in for 768
    num_heads=4,
    head_dim=32,
    intermediate=512,    # scaled-down stand-in for 3072
    num_layers=2,        # scaled-down stand-in for 12
    num_classes=6,       # Linear(hidden, 6) as in the module
    ln_eps=1e-12,
)
CLS_PAD = 128            # classifier output padded to a full 128-lane tile


# ---------------------------------------------------------------------------
# Fused BERT kernel: embeddings-LN -> L encoder layers -> pooler -> classifier
# ---------------------------------------------------------------------------

def _bert_fused_kernel(
    # inputs (order must match in_specs / call args)
    emb_ref, mask_ref,
    emb_ln_g_ref, emb_ln_b_ref,
    w_qkv_ref, b_qkv_ref, wo_ref, bo_ref, ln1_g_ref, ln1_b_ref,
    wi_ref, bi_ref, wf_ref, bf_ref, ln2_g_ref, ln2_b_ref,
    pool_w_ref, pool_b_ref, cls_w_ref, cls_b_ref,
    # outputs
    logits_ref,
    # scratch
    h_ref,
    *, num_heads, head_dim, scale, eps):

    l = pl.program_id(1)
    num_layers = pl.num_programs(1)
    H = num_heads * head_dim
    S = h_ref.shape[0]

    def _layernorm(x, g, b):
        mu = jnp.mean(x, axis=-1, keepdims=True)
        xc = x - mu
        var = jnp.mean(xc * xc, axis=-1, keepdims=True)
        return xc * jax.lax.rsqrt(var + eps) * g + b

    # ---- embeddings LayerNorm: initialize resident hidden state at l == 0 ----
    @pl.when(l == 0)
    def _():
        e = emb_ref[...][0].astype(jnp.float32)                   # (S, H)
        h_ref[...] = _layernorm(e, emb_ln_g_ref[...], emb_ln_b_ref[...])

    h = h_ref[...]                                                # (S, H) f32
    h_bf16 = h.astype(jnp.bfloat16)

    # ---- self-attention (fused QKV, per-head softmax in f32) ----
    w_qkv = w_qkv_ref[...][0]                                     # (H, 3H) bf16
    qkv = jnp.dot(h_bf16, w_qkv,
                  preferred_element_type=jnp.float32) + b_qkv_ref[...][0]  # (S, 3H)
    q = qkv[:, 0:H]
    k = qkv[:, H:2 * H]
    v = qkv[:, 2 * H:3 * H]
    m = mask_ref[...][0]                                          # (1, S) additive

    wo = wo_ref[...][0]                                           # (H, H) bf16
    attn = jnp.zeros((S, H), jnp.float32)
    for hh in range(num_heads):                                   # unrolled, nh=4
        sl = slice(hh * head_dim, (hh + 1) * head_dim)
        qh = (q[:, sl] * scale).astype(jnp.bfloat16)              # (S, Dh)
        kh = k[:, sl].astype(jnp.bfloat16)
        vh = v[:, sl].astype(jnp.bfloat16)
        s = jax.lax.dot_general(qh, kh, (((1,), (1,)), ((), ())),
                                preferred_element_type=jnp.float32)  # (S, S)
        s = s + m                                                 # key-pad mask
        s = s - jnp.max(s, axis=-1, keepdims=True)
        p = jnp.exp(s)
        p = p / jnp.sum(p, axis=-1, keepdims=True)                # exact divide
        ctx = jnp.dot(p.astype(jnp.bfloat16), vh,
                      preferred_element_type=jnp.float32)         # (S, Dh)
        # head merge fused into the output projection (no concat / reshape)
        attn = attn + jnp.dot(ctx.astype(jnp.bfloat16), wo[sl, :],
                              preferred_element_type=jnp.float32)  # (S, H)
    attn = attn + bo_ref[...][0]

    # ---- residual + LayerNorm 1 ----
    h1 = _layernorm(attn + h, ln1_g_ref[...][0], ln1_b_ref[...][0])

    # ---- feed-forward ----
    inter = jnp.dot(h1.astype(jnp.bfloat16), wi_ref[...][0],
                    preferred_element_type=jnp.float32) + bi_ref[...][0]   # (S, I)
    # TODO(synk): PyTorch BERT uses erf-GELU; tanh approximation used here.
    inter = 0.5 * inter * (1.0 + jnp.tanh(
        0.7978845608028654 * (inter + 0.044715 * inter * inter * inter)))
    ffn = jnp.dot(inter.astype(jnp.bfloat16), wf_ref[...][0],
                  preferred_element_type=jnp.float32) + bf_ref[...][0]     # (S, H)

    # ---- residual + LayerNorm 2 -> new resident hidden state ----
    h2 = _layernorm(ffn + h1, ln2_g_ref[...][0], ln2_b_ref[...][0])
    h_ref[...] = h2

    # ---- pooler + dropout(eval=identity) + classifier + ReLU on last layer ----
    @pl.when(l == num_layers - 1)
    def _():
        cls_tok = h2[0:1, :]                                      # (1, H) f32
        pooled = jnp.tanh(jnp.dot(cls_tok, pool_w_ref[...],
                                  preferred_element_type=jnp.float32)
                          + pool_b_ref[...])                      # (1, H) f32
        # TODO(synk): Dropout(p=0.5) stochastic training mode not implemented
        # (inference/eval mode => identity).
        logits = jnp.dot(pooled, cls_w_ref[...],
                         preferred_element_type=jnp.float32) + cls_b_ref[...]
        logits_ref[0] = jnp.maximum(logits, 0.0)                  # (1, CLS_PAD)


# ---------------------------------------------------------------------------
# Parameters (per-layer weights stacked along a leading L axis)
# ---------------------------------------------------------------------------

def init_params(key, cfg):
    H = cfg["hidden"]
    Iw = cfg["intermediate"]
    C = cfg["num_classes"]
    L = cfg["num_layers"]

    keys = iter(jax.random.split(key, 24))

    def rnd(k, shape, dtype):
        return (jax.random.normal(k, shape, jnp.float32) * 0.02).astype(dtype)

    p = {}
    p["word_emb"] = rnd(next(keys), (cfg["vocab_size"], H), jnp.float32)
    p["pos_emb"] = rnd(next(keys), (cfg["max_pos"], H), jnp.float32)
    p["type_emb"] = rnd(next(keys), (2, H), jnp.float32)
    p["emb_ln_g"] = jnp.ones((1, H), jnp.float32)
    p["emb_ln_b"] = jnp.zeros((1, H), jnp.float32)

    # encoder weights: bf16 operands for the MXU, f32 biases / LN params
    p["w_qkv"] = rnd(next(keys), (L, H, 3 * H), jnp.bfloat16)
    p["b_qkv"] = jnp.zeros((L, 1, 3 * H), jnp.float32)
    p["wo"] = rnd(next(keys), (L, H, H), jnp.bfloat16)
    p["bo"] = jnp.zeros((L, 1, H), jnp.float32)
    p["ln1_g"] = jnp.ones((L, 1, H), jnp.float32)
    p["ln1_b"] = jnp.zeros((L, 1, H), jnp.float32)
    p["wi"] = rnd(next(keys), (L, H, Iw), jnp.bfloat16)
    p["bi"] = jnp.zeros((L, 1, Iw), jnp.float32)
    p["wf"] = rnd(next(keys), (L, Iw, H), jnp.bfloat16)
    p["bf"] = jnp.zeros((L, 1, H), jnp.float32)
    p["ln2_g"] = jnp.ones((L, 1, H), jnp.float32)
    p["ln2_b"] = jnp.zeros((L, 1, H), jnp.float32)

    # pooler / classifier kept f32 (pooled output stays f32 for logit parity);
    # classifier padded to a full 128-lane tile ONCE here.
    p["pool_w"] = rnd(next(keys), (H, H), jnp.float32)
    p["pool_b"] = jnp.zeros((1, H), jnp.float32)
    cls_w = rnd(next(keys), (H, C), jnp.float32)
    p["cls_w_pad"] = jnp.pad(cls_w, ((0, 0), (0, CLS_PAD - C)))
    p["cls_b_pad"] = jnp.zeros((1, CLS_PAD), jnp.float32)
    return p


# ---------------------------------------------------------------------------
# Forward: embedding gather (XLA glue) + one fused Pallas kernel
# ---------------------------------------------------------------------------

def bert_classifier_forward(params, input_ids, mask, cfg):
    B, S = input_ids.shape
    H, nh, Dh = cfg["hidden"], cfg["num_heads"], cfg["head_dim"]
    Iw = cfg["intermediate"]
    L = cfg["num_layers"]
    C = cfg["num_classes"]
    eps = cfg["ln_eps"]
    scale = 1.0 / (Dh ** 0.5)

    # embeddings: gather is glue; sum in f32 (LayerNorm happens in-kernel)
    tok = jnp.take(params["word_emb"], input_ids, axis=0)          # (B, S, H)
    pos = params["pos_emb"][:S][None, :, :]
    typ = params["type_emb"][0][None, None, :]                     # token_type_ids = 0
    emb = (tok + pos + typ).astype(jnp.float32)                    # (B, S, H)

    # extended additive attention mask over keys
    mask_add = ((1.0 - mask.astype(jnp.float32)) * -1e9)[:, None, :]   # (B, 1, S)

    def bmap3(b, l):   # per-batch blocks (constant over l -> fetched once per b)
        return (b, 0, 0)

    def lmap3(b, l):   # per-layer stacked weights
        return (l, 0, 0)

    def cmap2(b, l):   # constant blocks (VMEM resident for the whole kernel)
        return (0, 0)

    in_specs = [
        pl.BlockSpec((1, S, H), bmap3),          # emb
        pl.BlockSpec((1, 1, S), bmap3),          # mask_add
        pl.BlockSpec((1, H), cmap2),             # emb_ln_g
        pl.BlockSpec((1, H), cmap2),             # emb_ln_b
        pl.BlockSpec((1, H, 3 * H), lmap3),      # w_qkv
        pl.BlockSpec((1, 1, 3 * H), lmap3),      # b_qkv
        pl.BlockSpec((1, H, H), lmap3),          # wo
        pl.BlockSpec((1, 1, H), lmap3),          # bo
        pl.BlockSpec((1, 1, H), lmap3),          # ln1_g
        pl.BlockSpec((1, 1, H), lmap3),          # ln1_b
        pl.BlockSpec((1, H, Iw), lmap3),         # wi
        pl.BlockSpec((1, 1, Iw), lmap3),         # bi
        pl.BlockSpec((1, Iw, H), lmap3),         # wf
        pl.BlockSpec((1, 1, H), lmap3),          # bf
        pl.BlockSpec((1, 1, H), lmap3),          # ln2_g
        pl.BlockSpec((1, 1, H), lmap3),          # ln2_b
        pl.BlockSpec((H, H), cmap2),             # pool_w
        pl.BlockSpec((1, H), cmap2),             # pool_b
        pl.BlockSpec((H, CLS_PAD), cmap2),       # cls_w_pad
        pl.BlockSpec((1, CLS_PAD), cmap2),       # cls_b_pad
    ]

    kernel = functools.partial(_bert_fused_kernel, num_heads=nh, head_dim=Dh,
                               scale=scale, eps=eps)

    logits_pad = pl.pallas_call(
        kernel,
        out_shape=jax.ShapeDtypeStruct((B, 1, CLS_PAD), jnp.float32),
        grid_spec=pltpu.PrefetchScalarGridSpec(
            num_scalar_prefetch=0,
            grid=(B, L),                          # B parallel (2 TCs on v7x), L sequential
            in_specs=in_specs,
            out_specs=pl.BlockSpec((1, 1, CLS_PAD), bmap3),
            scratch_shapes=[pltpu.VMEM((S, H), jnp.float32)]),    # resident hidden state
        compiler_params=pltpu.CompilerParams(
            dimension_semantics=("parallel", "arbitrary"),
            vmem_limit_bytes=32 * 1024 * 1024),   # conservative: fits v7x 64 MiB too
    )(emb, mask_add,
      params["emb_ln_g"], params["emb_ln_b"],
      params["w_qkv"], params["b_qkv"], params["wo"], params["bo"],
      params["ln1_g"], params["ln1_b"],
      params["wi"], params["bi"], params["wf"], params["bf"],
      params["ln2_g"], params["ln2_b"],
      params["pool_w"], params["pool_b"],
      params["cls_w_pad"], params["cls_b_pad"])

    return logits_pad[:, 0, :C]                                   # (B, 6) f32


if __name__ == "__main__":
    key = jax.random.PRNGKey(0)
    k_param, k_ids = jax.random.split(key)

    B, S = 2, 8
    params = init_params(k_param, CFG)
    input_ids = jax.random.randint(k_ids, (B, S), 0, CFG["vocab_size"], dtype=jnp.int32)
    # deterministic attention mask: first sequence full, second padded after 5 tokens
    mask = jnp.array([[1, 1, 1, 1, 1, 1, 1, 1],
                      [1, 1, 1, 1, 1, 0, 0, 0]], dtype=jnp.int32)

    fwd = jax.jit(functools.partial(bert_classifier_forward, cfg=CFG))
    out = jax.block_until_ready(fwd(params, input_ids, mask))

    assert out.shape == (B, CFG["num_classes"])
    assert bool(jnp.all(jnp.isfinite(out)))
    assert bool(jnp.all(out >= 0.0))   # ReLU output is non-negative
    print("KERNEL_OK")
</pallas_src>

<mosaic_0001>
module attributes {stable_mosaic.version = 11 : i64} {
  func.func @_bert_fused_kernel(%arg0: i32, %arg1: i32, %arg2: memref<1x8x128xf32, #tpu.memory_space<vmem>>, %arg3: memref<1x1x8xf32, #tpu.memory_space<vmem>>, %arg4: memref<1x128xf32, #tpu.memory_space<vmem>>, %arg5: memref<1x128xf32, #tpu.memory_space<vmem>>, %arg6: memref<1x128x384xbf16, #tpu.memory_space<vmem>>, %arg7: memref<1x1x384xf32, #tpu.memory_space<vmem>>, %arg8: memref<1x128x128xbf16, #tpu.memory_space<vmem>>, %arg9: memref<1x1x128xf32, #tpu.memory_space<vmem>>, %arg10: memref<1x1x128xf32, #tpu.memory_space<vmem>>, %arg11: memref<1x1x128xf32, #tpu.memory_space<vmem>>, %arg12: memref<1x128x512xbf16, #tpu.memory_space<vmem>>, %arg13: memref<1x1x512xf32, #tpu.memory_space<vmem>>, %arg14: memref<1x512x128xbf16, #tpu.memory_space<vmem>>, %arg15: memref<1x1x128xf32, #tpu.memory_space<vmem>>, %arg16: memref<1x1x128xf32, #tpu.memory_space<vmem>>, %arg17: memref<1x1x128xf32, #tpu.memory_space<vmem>>, %arg18: memref<128x128xf32, #tpu.memory_space<vmem>>, %arg19: memref<1x128xf32, #tpu.memory_space<vmem>>, %arg20: memref<128x128xf32, #tpu.memory_space<vmem>>, %arg21: memref<1x128xf32, #tpu.memory_space<vmem>>, %arg22: memref<1x1x128xf32, #tpu.memory_space<vmem>>, %arg23: memref<8x128xf32, #tpu.memory_space<vmem>>) attributes {dimension_semantics = [#tpu.dimension_semantics<parallel>, #tpu.dimension_semantics<arbitrary>], iteration_bounds = array<i64: 2, 2>, scalar_prefetch = 0 : i64, scratch_operands = 1 : i64, tpu.core_type = #tpu.core_type<tc>, window_params = [{transform_indices = @transform_0, window_bounds = array<i64: 1, 8, 128>}, {transform_indices = @transform_1, window_bounds = array<i64: 1, 1, 8>}, {pipeline_mode = #tpu.pipeline_mode<synchronous>, transform_indices = @transform_2, window_bounds = array<i64: 1, 128>}, {pipeline_mode = #tpu.pipeline_mode<synchronous>, transform_indices = @transform_3, window_bounds = array<i64: 1, 128>}, {transform_indices = @transform_4, window_bounds = array<i64: 1, 128, 384>}, {transform_indices = @transform_5, window_bounds = array<i64: 1, 1, 384>}, {transform_indices = @transform_6, window_bounds = array<i64: 1, 128, 128>}, {transform_indices = @transform_7, window_bounds = array<i64: 1, 1, 128>}, {transform_indices = @transform_8, window_bounds = array<i64: 1, 1, 128>}, {transform_indices = @transform_9, window_bounds = array<i64: 1, 1, 128>}, {transform_indices = @transform_10, window_bounds = array<i64: 1, 128, 512>}, {transform_indices = @transform_11, window_bounds = array<i64: 1, 1, 512>}, {transform_indices = @transform_12, window_bounds = array<i64: 1, 512, 128>}, {transform_indices = @transform_13, window_bounds = array<i64: 1, 1, 128>}, {transform_indices = @transform_14, window_bounds = array<i64: 1, 1, 128>}, {transform_indices = @transform_15, window_bounds = array<i64: 1, 1, 128>}, {pipeline_mode = #tpu.pipeline_mode<synchronous>, transform_indices = @transform_16, window_bounds = array<i64: 128, 128>}, {pipeline_mode = #tpu.pipeline_mode<synchronous>, transform_indices = @transform_17, window_bounds = array<i64: 1, 128>}, {pipeline_mode = #tpu.pipeline_mode<synchronous>, transform_indices = @transform_18, window_bounds = array<i64: 128, 128>}, {pipeline_mode = #tpu.pipeline_mode<synchronous>, transform_indices = @transform_19, window_bounds = array<i64: 1, 128>}, {transform_indices = @transform_20, window_bounds = array<i64: 1, 1, 128>}]} {
    %c0_i32 = arith.constant 0 : i32
    %0 = arith.cmpi eq, %arg1, %c0_i32 : i32
    %1 = arith.extui %0 : i1 to i32
    %c0_i32_0 = arith.constant 0 : i32
    %2 = arith.cmpi ne, %1, %c0_i32_0 : i32
    scf.if %2 {
      %c0_85 = arith.constant 0 : index
      %c0_86 = arith.constant 0 : index
      %c0_87 = arith.constant 0 : index
      %211 = vector.load %arg2[%c0_85, %c0_86, %c0_87] : memref<1x8x128xf32, #tpu.memory_space<vmem>>, vector<1x8x128xf32>
      %212 = vector.shape_cast %211 : vector<1x8x128xf32> to vector<8x128xf32>
      %c0_88 = arith.constant 0 : index
      %c0_89 = arith.constant 0 : index
      %213 = vector.load %arg4[%c0_88, %c0_89] : memref<1x128xf32, #tpu.memory_space<vmem>>, vector<1x128xf32>
      %c0_90 = arith.constant 0 : index
      %c0_91 = arith.constant 0 : index
      %214 = vector.load %arg5[%c0_90, %c0_91] : memref<1x128xf32, #tpu.memory_space<vmem>>, vector<1x128xf32>
      %cst_92 = arith.constant dense<0.000000e+00> : vector<8xf32>
      %215 = vector.multi_reduction <add>, %212, %cst_92 [1] : vector<8x128xf32> to vector<8xf32>
      %216 = vector.shape_cast %215 : vector<8xf32> to vector<8x1xf32>
      %cst_93 = arith.constant 1.280000e+02 : f32
      %217 = vector.broadcast %cst_93 : f32 to vector<8x1xf32>
      %218 = arith.divf %216, %217 : vector<8x1xf32>
      %219 = vector.broadcast %218 : vector<8x1xf32> to vector<8x128xf32>
      %220 = arith.subf %212, %219 : vector<8x128xf32>
      %221 = arith.mulf %220, %220 : vector<8x128xf32>
      %cst_94 = arith.constant dense<0.000000e+00> : vector<8xf32>
      %222 = vector.multi_reduction <add>, %221, %cst_94 [1] : vector<8x128xf32> to vector<8xf32>
      %223 = vector.shape_cast %222 : vector<8xf32> to vector<8x1xf32>
      %cst_95 = arith.constant 1.280000e+02 : f32
      %224 = vector.broadcast %cst_95 : f32 to vector<8x1xf32>
      %225 = arith.divf %223, %224 : vector<8x1xf32>
      %cst_96 = arith.constant 9.99999996E-13 : f32
      %226 = vector.broadcast %cst_96 : f32 to vector<8x1xf32>
      %227 = arith.addf %225, %226 : vector<8x1xf32>
      %228 = math.rsqrt %227 : vector<8x1xf32>
      %229 = vector.broadcast %228 : vector<8x1xf32> to vector<8x128xf32>
      %230 = arith.mulf %220, %229 : vector<8x128xf32>
      %231 = vector.broadcast %213 : vector<1x128xf32> to vector<8x128xf32>
      %232 = arith.mulf %230, %231 : vector<8x128xf32>
      %233 = vector.broadcast %214 : vector<1x128xf32> to vector<8x128xf32>
      %234 = arith.addf %232, %233 : vector<8x128xf32>
      %c0_97 = arith.constant 0 : index
      %c0_98 = arith.constant 0 : index
      %235 = vector.load %arg23[%c0_97, %c0_98] : memref<8x128xf32, #tpu.memory_space<vmem>>, vector<8x128xf32>
      tpu.vector_store %arg23[%c0_97, %c0_98], %234 {strides = array<i32>} : memref<8x128xf32, #tpu.memory_space<vmem>>, vector<8x128xf32>,
    } else {
    }
    %c0 = arith.constant 0 : index
    %c0_1 = arith.constant 0 : index
    %3 = vector.load %arg23[%c0, %c0_1] : memref<8x128xf32, #tpu.memory_space<vmem>>, vector<8x128xf32>
    %4 = arith.truncf %3 : vector<8x128xf32> to vector<8x128xbf16>
    %c0_2 = arith.constant 0 : index
    %c0_3 = arith.constant 0 : index
    %c0_4 = arith.constant 0 : index
    %5 = vector.load %arg6[%c0_2, %c0_3, %c0_4] : memref<1x128x384xbf16, #tpu.memory_space<vmem>>, vector<1x128x384xbf16>
    %6 = vector.shape_cast %5 : vector<1x128x384xbf16> to vector<128x384xbf16>
    %cst = arith.constant dense<0.000000e+00> : vector<8x384xf32>
    %7 = tpu.matmul %4, %6, %cst {dimension_numbers = #tpu.dot_dimension_numbers<[1], [0], [0], [1], [0, 0, 1, 1], [], []>} : vector<8x128xbf16>, vector<128x384xbf16>, vector<8x384xf32> -> vector<8x384xf32>
    %c0_5 = arith.constant 0 : index
    %c0_6 = arith.constant 0 : index
    %c0_7 = arith.constant 0 : index
    %8 = vector.load %arg7[%c0_5, %c0_6, %c0_7] : memref<1x1x384xf32, #tpu.memory_space<vmem>>, vector<1x1x384xf32>
    %9 = vector.shape_cast %8 : vector<1x1x384xf32> to vector<1x384xf32>
    %10 = vector.broadcast %9 : vector<1x384xf32> to vector<8x384xf32>
    %11 = arith.addf %7, %10 : vector<8x384xf32>
    %12 = vector.extract_strided_slice %11 {offsets = [0, 0], sizes = [8, 128], strides = [1, 1]} : vector<8x384xf32> to vector<8x128xf32>
    %13 = vector.extract_strided_slice %11 {offsets = [0, 128], sizes = [8, 128], strides = [1, 1]} : vector<8x384xf32> to vector<8x128xf32>
    %14 = vector.extract_strided_slice %11 {offsets = [0, 256], sizes = [8, 128], strides = [1, 1]} : vector<8x384xf32> to vector<8x128xf32>
    %c0_8 = arith.constant 0 : index
    %c0_9 = arith.constant 0 : index
    %c0_10 = arith.constant 0 : index
    %15 = vector.load %arg3[%c0_8, %c0_9, %c0_10] : memref<1x1x8xf32, #tpu.memory_space<vmem>>, vector<1x1x8xf32>
    %16 = vector.shape_cast %15 : vector<1x1x8xf32> to vector<1x8xf32>
    %c0_11 = arith.constant 0 : index
    %c0_12 = arith.constant 0 : index
    %c0_13 = arith.constant 0 : index
    %17 = vector.load %arg8[%c0_11, %c0_12, %c0_13] : memref<1x128x128xbf16, #tpu.memory_space<vmem>>, vector<1x128x128xbf16>
    %18 = vector.shape_cast %17 : vector<1x128x128xbf16> to vector<128x128xbf16>
    %cst_14 = arith.constant 0.000000e+00 : f32
    %19 = vector.broadcast %cst_14 : f32 to vector<8x128xf32>
    %20 = vector.extract_strided_slice %12 {offsets = [0, 0], sizes = [8, 32], strides = [1, 1]} : vector<8x128xf32> to vector<8x32xf32>
    %cst_15 = arith.constant 0.176776692 : f32
    %21 = vector.broadcast %cst_15 : f32 to vector<8x32xf32>
    %22 = arith.mulf %20, %21 : vector<8x32xf32>
    %23 = arith.truncf %22 : vector<8x32xf32> to vector<8x32xbf16>
    %24 = vector.extract_strided_slice %13 {offsets = [0, 0], sizes = [8, 32], strides = [1, 1]} : vector<8x128xf32> to vector<8x32xf32>
    %25 = arith.truncf %24 : vector<8x32xf32> to vector<8x32xbf16>
    %26 = vector.extract_strided_slice %14 {offsets = [0, 0], sizes = [8, 32], strides = [1, 1]} : vector<8x128xf32> to vector<8x32xf32>
    %27 = arith.truncf %26 : vector<8x32xf32> to vector<8x32xbf16>
    %cst_16 = arith.constant dense<0.000000e+00> : vector<8x8xf32>
    %28 = tpu.matmul %23, %25, %cst_16 {dimension_numbers = #tpu.dot_dimension_numbers<[1], [1], [0], [0], [0, 0, 1, 0], [], []>} : vector<8x32xbf16>, vector<8x32xbf16>, vector<8x8xf32> -> vector<8x8xf32>
    %29 = vector.broadcast %16 : vector<1x8xf32> to vector<8x8xf32>
    %30 = arith.addf %28, %29 : vector<8x8xf32>
    %cst_17 = arith.constant dense<0xFF800000> : vector<8xf32>
    %31 = vector.multi_reduction <maximumf>, %30, %cst_17 [1] : vector<8x8xf32> to vector<8xf32>
    %32 = vector.shape_cast %31 : vector<8xf32> to vector<8x1xf32>
    %33 = vector.broadcast %32 : vector<8x1xf32> to vector<8x8xf32>
    %34 = arith.subf %30, %33 : vector<8x8xf32>
    %35 = math.exp %34 : vector<8x8xf32>
    %cst_18 = arith.constant dense<0.000000e+00> : vector<8xf32>
    %36 = vector.multi_reduction <add>, %35, %cst_18 [1] : vector<8x8xf32> to vector<8xf32>
    %37 = vector.shape_cast %36 : vector<8xf32> to vector<8x1xf32>
    %38 = vector.broadcast %37 : vector<8x1xf32> to vector<8x8xf32>
    %39 = arith.divf %35, %38 : vector<8x8xf32>
    %40 = arith.truncf %39 : vector<8x8xf32> to vector<8x8xbf16>
    %cst_19 = arith.constant dense<0.000000e+00> : vector<8x32xf32>
    %41 = tpu.matmul %40, %27, %cst_19 {dimension_numbers = #tpu.dot_dimension_numbers<[1], [0], [0], [1], [0, 0, 1, 1], [], []>} : vector<8x8xbf16>, vector<8x32xbf16>, vector<8x32xf32> -> vector<8x32xf32>
    %42 = arith.truncf %41 : vector<8x32xf32> to vector<8x32xbf16>
    %43 = vector.extract_strided_slice %18 {offsets = [0, 0], sizes = [32, 128], strides = [1, 1]} : vector<128x128xbf16> to vector<32x128xbf16>
    %cst_20 = arith.constant dense<0.000000e+00> : vector<8x128xf32>
    %44 = tpu.matmul %42, %43, %cst_20 {dimension_numbers = #tpu.dot_dimension_numbers<[1], [0], [0], [1], [0, 0, 1, 1], [], []>} : vector<8x32xbf16>, vector<32x128xbf16>, vector<8x128xf32> -> vector<8x128xf32>
    %45 = arith.addf %19, %44 : vector<8x128xf32>
    %46 = vector.extract_strided_slice %12 {offsets = [0, 32], sizes = [8, 32], strides = [1, 1]} : vector<8x128xf32> to vector<8x32xf32>
    %cst_21 = arith.constant 0.176776692 : f32
    %47 = vector.broadcast %cst_21 : f32 to vector<8x32xf32>
    %48 = arith.mulf %46, %47 : vector<8x32xf32>
    %49 = arith.truncf %48 : vector<8x32xf32> to vector<8x32xbf16>
    %50 = vector.extract_strided_slice %13 {offsets = [0, 32], sizes = [8, 32], strides = [1, 1]} : vector<8x128xf32> to vector<8x32xf32>
    %51 = arith.truncf %50 : vector<8x32xf32> to vector<8x32xbf16>
    %52 = vector.extract_strided_slice %14 {offsets = [0, 32], sizes = [8, 32], strides = [1, 1]} : vector<8x128xf32> to vector<8x32xf32>
    %53 = arith.truncf %52 : vector<8x32xf32> to vector<8x32xbf16>
    %cst_22 = arith.constant dense<0.000000e+00> : vector<8x8xf32>
    %54 = tpu.matmul %49, %51, %cst_22 {dimension_numbers = #tpu.dot_dimension_numbers<[1], [1], [0], [0], [0, 0, 1, 0], [], []>} : vector<8x32xbf16>, vector<8x32xbf16>, vector<8x8xf32> -> vector<8x8xf32>
    %55 = vector.broadcast %16 : vector<1x8xf32> to vector<8x8xf32>
    %56 = arith.addf %54, %55 : vector<8x8xf32>
    %cst_23 = arith.constant dense<0xFF800000> : vector<8xf32>
    %57 = vector.multi_reduction <maximumf>, %56, %cst_23 [1] : vector<8x8xf32> to vector<8xf32>
    %58 = vector.shape_cast %57 : vector<8xf32> to vector<8x1xf32>
    %59 = vector.broadcast %58 : vector<8x1xf32> to vector<8x8xf32>
    %60 = arith.subf %56, %59 : vector<8x8xf32>
    %61 = math.exp %60 : vector<8x8xf32>
    %cst_24 = arith.constant dense<0.000000e+00> : vector<8xf32>
    %62 = vector.multi_reduction <add>, %61, %cst_24 [1] : vector<8x8xf32> to vector<8xf32>
    %63 = vector.shape_cast %62 : vector<8xf32> to vector<8x1xf32>
    %64 = vector.broadcast %63 : vector<8x1xf32> to vector<8x8xf32>
    %65 = arith.divf %61, %64 : vector<8x8xf32>
    %66 = arith.truncf %65 : vector<8x8xf32> to vector<8x8xbf16>
    %cst_25 = arith.constant dense<0.000000e+00> : vector<8x32xf32>
    %67 = tpu.matmul %66, %53, %cst_25 {dimension_numbers = #tpu.dot_dimension_numbers<[1], [0], [0], [1], [0, 0, 1, 1], [], []>} : vector<8x8xbf16>, vector<8x32xbf16>, vector<8x32xf32> -> vector<8x32xf32>
    %68 = arith.truncf %67 : vector<8x32xf32> to vector<8x32xbf16>
    %69 = vector.extract_strided_slice %18 {offsets = [32, 0], sizes = [32, 128], strides = [1, 1]} : vector<128x128xbf16> to vector<32x128xbf16>
    %cst_26 = arith.constant dense<0.000000e+00> : vector<8x128xf32>
    %70 = tpu.matmul %68, %69, %cst_26 {dimension_numbers = #tpu.dot_dimension_numbers<[1], [0], [0], [1], [0, 0, 1, 1], [], []>} : vector<8x32xbf16>, vector<32x128xbf16>, vector<8x128xf32> -> vector<8x128xf32>
    %71 = arith.addf %45, %70 : vector<8x128xf32>
    %72 = vector.extract_strided_slice %12 {offsets = [0, 64], sizes = [8, 32], strides = [1, 1]} : vector<8x128xf32> to vector<8x32xf32>
    %cst_27 = arith.constant 0.176776692 : f32
    %73 = vector.broadcast %cst_27 : f32 to vector<8x32xf32>
    %74 = arith.mulf %72, %73 : vector<8x32xf32>
    %75 = arith.truncf %74 : vector<8x32xf32> to vector<8x32xbf16>
    %76 = vector.extract_strided_slice %13 {offsets = [0, 64], sizes = [8, 32], strides = [1, 1]} : vector<8x128xf32> to vector<8x32xf32>
    %77 = arith.truncf %76 : vector<8x32xf32> to vector<8x32xbf16>
    %78 = vector.extract_strided_slice %14 {offsets = [0, 64], sizes = [8, 32], strides = [1, 1]} : vector<8x128xf32> to vector<8x32xf32>
    %79 = arith.truncf %78 : vector<8x32xf32> to vector<8x32xbf16>
    %cst_28 = arith.constant dense<0.000000e+00> : vector<8x8xf32>
    %80 = tpu.matmul %75, %77, %cst_28 {dimension_numbers = #tpu.dot_dimension_numbers<[1], [1], [0], [0], [0, 0, 1, 0], [], []>} : vector<8x32xbf16>, vector<8x32xbf16>, vector<8x8xf32> -> vector<8x8xf32>
    %81 = vector.broadcast %16 : vector<1x8xf32> to vector<8x8xf32>
    %82 = arith.addf %80, %81 : vector<8x8xf32>
    %cst_29 = arith.constant dense<0xFF800000> : vector<8xf32>
    %83 = vector.multi_reduction <maximumf>, %82, %cst_29 [1] : vector<8x8xf32> to vector<8xf32>
    %84 = vector.shape_cast %83 : vector<8xf32> to vector<8x1xf32>
    %85 = vector.broadcast %84 : vector<8x1xf32> to vector<8x8xf32>
    %86 = arith.subf %82, %85 : vector<8x8xf32>
    %87 = math.exp %86 : vector<8x8xf32>
    %cst_30 = arith.constant dense<0.000000e+00> : vector<8xf32>
    %88 = vector.multi_reduction <add>, %87, %cst_30 [1] : vector<8x8xf32> to vector<8xf32>
    %89 = vector.shape_cast %88 : vector<8xf32> to vector<8x1xf32>
    %90 = vector.broadcast %89 : vector<8x1xf32> to vector<8x8xf32>
    %91 = arith.divf %87, %90 : vector<8x8xf32>
    %92 = arith.truncf %91 : vector<8x8xf32> to vector<8x8xbf16>
    %cst_31 = arith.constant dense<0.000000e+00> : vector<8x32xf32>
    %93 = tpu.matmul %92, %79, %cst_31 {dimension_numbers = #tpu.dot_dimension_numbers<[1], [0], [0], [1], [0, 0, 1, 1], [], []>} : vector<8x8xbf16>, vector<8x32xbf16>, vector<8x32xf32> -> vector<8x32xf32>
    %94 = arith.truncf %93 : vector<8x32xf32> to vector<8x32xbf16>
    %95 = vector.extract_strided_slice %18 {offsets = [64, 0], sizes = [32, 128], strides = [1, 1]} : vector<128x128xbf16> to vector<32x128xbf16>
    %cst_32 = arith.constant dense<0.000000e+00> : vector<8x128xf32>
    %96 = tpu.matmul %94, %95, %cst_32 {dimension_numbers = #tpu.dot_dimension_numbers<[1], [0], [0], [1], [0, 0, 1, 1], [], []>} : vector<8x32xbf16>, vector<32x128xbf16>, vector<8x128xf32> -> vector<8x128xf32>
    %97 = arith.addf %71, %96 : vector<8x128xf32>
    %98 = vector.extract_strided_slice %12 {offsets = [0, 96], sizes = [8, 32], strides = [1, 1]} : vector<8x128xf32> to vector<8x32xf32>
    %cst_33 = arith.constant 0.176776692 : f32
    %99 = vector.broadcast %cst_33 : f32 to vector<8x32xf32>
    %100 = arith.mulf %98, %99 : vector<8x32xf32>
    %101 = arith.truncf %100 : vector<8x32xf32> to vector<8x32xbf16>
    %102 = vector.extract_strided_slice %13 {offsets = [0, 96], sizes = [8, 32], strides = [1, 1]} : vector<8x128xf32> to vector<8x32xf32>
    %103 = arith.truncf %102 : vector<8x32xf32> to vector<8x32xbf16>
    %104 = vector.extract_strided_slice %14 {offsets = [0, 96], sizes = [8, 32], strides = [1, 1]} : vector<8x128xf32> to vector<8x32xf32>
    %105 = arith.truncf %104 : vector<8x32xf32> to vector<8x32xbf16>
    %cst_34 = arith.constant dense<0.000000e+00> : vector<8x8xf32>
    %106 = tpu.matmul %101, %103, %cst_34 {dimension_numbers = #tpu.dot_dimension_numbers<[1], [1], [0], [0], [0, 0, 1, 0], [], []>} : vector<8x32xbf16>, vector<8x32xbf16>, vector<8x8xf32> -> vector<8x8xf32>
    %107 = vector.broadcast %16 : vector<1x8xf32> to vector<8x8xf32>
    %108 = arith.addf %106, %107 : vector<8x8xf32>
    %cst_35 = arith.constant dense<0xFF800000> : vector<8xf32>
    %109 = vector.multi_reduction <maximumf>, %108, %cst_35 [1] : vector<8x8xf32> to vector<8xf32>
    %110 = vector.shape_cast %109 : vector<8xf32> to vector<8x1xf32>
    %111 = vector.broadcast %110 : vector<8x1xf32> to vector<8x8xf32>
    %112 = arith.subf %108, %111 : vector<8x8xf32>
    %113 = math.exp %112 : vector<8x8xf32>
    %cst_36 = arith.constant dense<0.000000e+00> : vector<8xf32>
    %114 = vector.multi_reduction <add>, %113, %cst_36 [1] : vector<8x8xf32> to vector<8xf32>
    %115 = vector.shape_cast %114 : vector<8xf32> to vector<8x1xf32>
    %116 = vector.broadcast %115 : vector<8x1xf32> to vector<8x8xf32>
    %117 = arith.divf %113, %116 : vector<8x8xf32>
    %118 = arith.truncf %117 : vector<8x8xf32> to vector<8x8xbf16>
    %cst_37 = arith.constant dense<0.000000e+00> : vector<8x32xf32>
    %119 = tpu.matmul %118, %105, %cst_37 {dimension_numbers = #tpu.dot_dimension_numbers<[1], [0], [0], [1], [0, 0, 1, 1], [], []>} : vector<8x8xbf16>, vector<8x32xbf16>, vector<8x32xf32> -> vector<8x32xf32>
    %120 = arith.truncf %119 : vector<8x32xf32> to vector<8x32xbf16>
    %121 = vector.extract_strided_slice %18 {offsets = [96, 0], sizes = [32, 128], strides = [1, 1]} : vector<128x128xbf16> to vector<32x128xbf16>
    %cst_38 = arith.constant dense<0.000000e+00> : vector<8x128xf32>
    %122 = tpu.matmul %120, %121, %cst_38 {dimension_numbers = #tpu.dot_dimension_numbers<[1], [0], [0], [1], [0, 0, 1, 1], [], []>} : vector<8x32xbf16>, vector<32x128xbf16>, vector<8x128xf32> -> vector<8x128xf32>
    %123 = arith.addf %97, %122 : vector<8x128xf32>
    %c0_39 = arith.constant 0 : index
    %c0_40 = arith.constant 0 : index
    %c0_41 = arith.constant 0 : index
    %124 = vector.load %arg9[%c0_39, %c0_40, %c0_41] : memref<1x1x128xf32, #tpu.memory_space<vmem>>, vector<1x1x128xf32>
    %125 = vector.shape_cast %124 : vector<1x1x128xf32> to vector<1x128xf32>
    %126 = vector.broadcast %125 : vector<1x128xf32> to vector<8x128xf32>
    %127 = arith.addf %123, %126 : vector<8x128xf32>
    %128 = arith.addf %127, %3 : vector<8x128xf32>
    %c0_42 = arith.constant 0 : index
    %c0_43 = arith.constant 0 : index
    %c0_44 = arith.constant 0 : index
    %129 = vector.load %arg10[%c0_42, %c0_43, %c0_44] : memref<1x1x128xf32, #tpu.memory_space<vmem>>, vector<1x1x128xf32>
    %130 = vector.shape_cast %129 : vector<1x1x128xf32> to vector<1x128xf32>
    %c0_45 = arith.constant 0 : index
    %c0_46 = arith.constant 0 : index
    %c0_47 = arith.constant 0 : index
    %131 = vector.load %arg11[%c0_45, %c0_46, %c0_47] : memref<1x1x128xf32, #tpu.memory_space<vmem>>, vector<1x1x128xf32>
    %132 = vector.shape_cast %131 : vector<1x1x128xf32> to vector<1x128xf32>
    %cst_48 = arith.constant dense<0.000000e+00> : vector<8xf32>
    %133 = vector.multi_reduction <add>, %128, %cst_48 [1] : vector<8x128xf32> to vector<8xf32>
    %134 = vector.shape_cast %133 : vector<8xf32> to vector<8x1xf32>
    %cst_49 = arith.constant 1.280000e+02 : f32
    %135 = vector.broadcast %cst_49 : f32 to vector<8x1xf32>
    %136 = arith.divf %134, %135 : vector<8x1xf32>
    %137 = vector.broadcast %136 : vector<8x1xf32> to vector<8x128xf32>
    %138 = arith.subf %128, %137 : vector<8x128xf32>
    %139 = arith.mulf %138, %138 : vector<8x128xf32>
    %cst_50 = arith.constant dense<0.000000e+00> : vector<8xf32>
    %140 = vector.multi_reduction <add>, %139, %cst_50 [1] : vector<8x128xf32> to vector<8xf32>
    %141 = vector.shape_cast %140 : vector<8xf32> to vector<8x1xf32>
    %cst_51 = arith.constant 1.280000e+02 : f32
    %142 = vector.broadcast %cst_51 : f32 to vector<8x1xf32>
    %143 = arith.divf %141, %142 : vector<8x1xf32>
    %cst_52 = arith.constant 9.99999996E-13 : f32
    %144 = vector.broadcast %cst_52 : f32 to vector<8x1xf32>
    %145 = arith.addf %143, %144 : vector<8x1xf32>
    %146 = math.rsqrt %145 : vector<8x1xf32>
    %147 = vector.broadcast %146 : vector<8x1xf32> to vector<8x128xf32>
    %148 = arith.mulf %138, %147 : vector<8x128xf32>
    %149 = vector.broadcast %130 : vector<1x128xf32> to vector<8x128xf32>
    %150 = arith.mulf %148, %149 : vector<8x128xf32>
    %151 = vector.broadcast %132 : vector<1x128xf32> to vector<8x128xf32>
    %152 = arith.addf %150, %151 : vector<8x128xf32>
    %153 = arith.truncf %152 : vector<8x128xf32> to vector<8x128xbf16>
    %c0_53 = arith.constant 0 : index
    %c0_54 = arith.constant 0 : index
    %c0_55 = arith.constant 0 : index
    %154 = vector.load %arg12[%c0_53, %c0_54, %c0_55] : memref<1x128x512xbf16, #tpu.memory_space<vmem>>, vector<1x128x512xbf16>
    %155 = vector.shape_cast %154 : vector<1x128x512xbf16> to vector<128x512xbf16>
    %cst_56 = arith.constant dense<0.000000e+00> : vector<8x512xf32>
    %156 = tpu.matmul %153, %155, %cst_56 {dimension_numbers = #tpu.dot_dimension_numbers<[1], [0], [0], [1], [0, 0, 1, 1], [], []>} : vector<8x128xbf16>, vector<128x512xbf16>, vector<8x512xf32> -> vector<8x512xf32>
    %c0_57 = arith.constant 0 : index
    %c0_58 = arith.constant 0 : index
    %c0_59 = arith.constant 0 : index
    %157 = vector.load %arg13[%c0_57, %c0_58, %c0_59] : memref<1x1x512xf32, #tpu.memory_space<vmem>>, vector<1x1x512xf32>
    %158 = vector.shape_cast %157 : vector<1x1x512xf32> to vector<1x512xf32>
    %159 = vector.broadcast %158 : vector<1x512xf32> to vector<8x512xf32>
    %160 = arith.addf %156, %159 : vector<8x512xf32>
    %cst_60 = arith.constant 5.000000e-01 : f32
    %161 = vector.broadcast %cst_60 : f32 to vector<8x512xf32>
    %162 = arith.mulf %161, %160 : vector<8x512xf32>
    %cst_61 = arith.constant 4.471500e-02 : f32
    %163 = vector.broadcast %cst_61 : f32 to vector<8x512xf32>
    %164 = arith.mulf %163, %160 : vector<8x512xf32>
    %165 = arith.mulf %164, %160 : vector<8x512xf32>
    %166 = arith.mulf %165, %160 : vector<8x512xf32>
    %167 = arith.addf %160, %166 : vector<8x512xf32>
    %cst_62 = arith.constant 0.797884583 : f32
    %168 = vector.broadcast %cst_62 : f32 to vector<8x512xf32>
    %169 = arith.mulf %168, %167 : vector<8x512xf32>
    %170 = math.tanh %169 : vector<8x512xf32>
    %cst_63 = arith.constant 1.000000e+00 : f32
    %171 = vector.broadcast %cst_63 : f32 to vector<8x512xf32>
    %172 = arith.addf %171, %170 : vector<8x512xf32>
    %173 = arith.mulf %162, %172 : vector<8x512xf32>
    %174 = arith.truncf %173 : vector<8x512xf32> to vector<8x512xbf16>
    %c0_64 = arith.constant 0 : index
    %c0_65 = arith.constant 0 : index
    %c0_66 = arith.constant 0 : index
    %175 = vector.load %arg14[%c0_64, %c0_65, %c0_66] : memref<1x512x128xbf16, #tpu.memory_space<vmem>>, vector<1x512x128xbf16>
    %176 = vector.shape_cast %175 : vector<1x512x128xbf16> to vector<512x128xbf16>
    %cst_67 = arith.constant dense<0.000000e+00> : vector<8x128xf32>
    %177 = tpu.matmul %174, %176, %cst_67 {dimension_numbers = #tpu.dot_dimension_numbers<[1], [0], [0], [1], [0, 0, 1, 1], [], []>} : vector<8x512xbf16>, vector<512x128xbf16>, vector<8x128xf32> -> vector<8x128xf32>
    %c0_68 = arith.constant 0 : index
    %c0_69 = arith.constant 0 : index
    %c0_70 = arith.constant 0 : index
    %178 = vector.load %arg15[%c0_68, %c0_69, %c0_70] : memref<1x1x128xf32, #tpu.memory_space<vmem>>, vector<1x1x128xf32>
    %179 = vector.shape_cast %178 : vector<1x1x128xf32> to vector<1x128xf32>
    %180 = vector.broadcast %179 : vector<1x128xf32> to vector<8x128xf32>
    %181 = arith.addf %177, %180 : vector<8x128xf32>
    %182 = arith.addf %181, %152 : vector<8x128xf32>
    %c0_71 = arith.constant 0 : index
    %c0_72 = arith.constant 0 : index
    %c0_73 = arith.constant 0 : index
    %183 = vector.load %arg16[%c0_71, %c0_72, %c0_73] : memref<1x1x128xf32, #tpu.memory_space<vmem>>, vector<1x1x128xf32>
    %184 = vector.shape_cast %183 : vector<1x1x128xf32> to vector<1x128xf32>
    %c0_74 = arith.constant 0 : index
    %c0_75 = arith.constant 0 : index
    %c0_76 = arith.constant 0 : index
    %185 = vector.load %arg17[%c0_74, %c0_75, %c0_76] : memref<1x1x128xf32, #tpu.memory_space<vmem>>, vector<1x1x128xf32>
    %186 = vector.shape_cast %185 : vector<1x1x128xf32> to vector<1x128xf32>
    %cst_77 = arith.constant dense<0.000000e+00> : vector<8xf32>
    %187 = vector.multi_reduction <add>, %182, %cst_77 [1] : vector<8x128xf32> to vector<8xf32>
    %188 = vector.shape_cast %187 : vector<8xf32> to vector<8x1xf32>
    %cst_78 = arith.constant 1.280000e+02 : f32
    %189 = vector.broadcast %cst_78 : f32 to vector<8x1xf32>
    %190 = arith.divf %188, %189 : vector<8x1xf32>
    %191 = vector.broadcast %190 : vector<8x1xf32> to vector<8x128xf32>
    %192 = arith.subf %182, %191 : vector<8x128xf32>
    %193 = arith.mulf %192, %192 : vector<8x128xf32>
    %cst_79 = arith.constant dense<0.000000e+00> : vector<8xf32>
    %194 = vector.multi_reduction <add>, %193, %cst_79 [1] : vector<8x128xf32> to vector<8xf32>
    %195 = vector.shape_cast %194 : vector<8xf32> to vector<8x1xf32>
    %cst_80 = arith.constant 1.280000e+02 : f32
    %196 = vector.broadcast %cst_80 : f32 to vector<8x1xf32>
    %197 = arith.divf %195, %196 : vector<8x1xf32>
    %cst_81 = arith.constant 9.99999996E-13 : f32
    %198 = vector.broadcast %cst_81 : f32 to vector<8x1xf32>
    %199 = arith.addf %197, %198 : vector<8x1xf32>
    %200 = math.rsqrt %199 : vector<8x1xf32>
    %201 = vector.broadcast %200 : vector<8x1xf32> to vector<8x128xf32>
    %202 = arith.mulf %192, %201 : vector<8x128xf32>
    %203 = vector.broadcast %184 : vector<1x128xf32> to vector<8x128xf32>
    %204 = arith.mulf %202, %203 : vector<8x128xf32>
    %205 = vector.broadcast %186 : vector<1x128xf32> to vector<8x128xf32>
    %206 = arith.addf %204, %205 : vector<8x128xf32>
    %c0_82 = arith.constant 0 : index
    %c0_83 = arith.constant 0 : index
    %207 = vector.load %arg23[%c0_82, %c0_83] : memref<8x128xf32, #tpu.memory_space<vmem>>, vector<8x128xf32>
    tpu.vector_store %arg23[%c0_82, %c0_83], %206 {strides = array<i32>} : memref<8x128xf32, #tpu.memory_space<vmem>>, vector<8x128xf32>,
    %c1_i32 = arith.constant 1 : i32
    %208 = arith.cmpi eq, %arg1, %c1_i32 : i32
    %209 = arith.extui %208 : i1 to i32
    %c0_i32_84 = arith.constant 0 : i32
    %210 = arith.cmpi ne, %209, %c0_i32_84 : i32
    scf.if %210 {
      %211 = vector.extract_strided_slice %206 {offsets = [0, 0], sizes = [1, 128], strides = [1, 1]} : vector<8x128xf32> to vector<1x128xf32>
      %c0_85 = arith.constant 0 : index
      %c0_86 = arith.constant 0 : index
      %212 = vector.load %arg18[%c0_85, %c0_86] : memref<128x128xf32, #tpu.memory_space<vmem>>, vector<128x128xf32>
      %cst_87 = arith.constant dense<0.000000e+00> : vector<1x128xf32>
      %213 = tpu.matmul %211, %212, %cst_87 {dimension_numbers = #tpu.dot_dimension_numbers<[1], [0], [0], [1], [0, 0, 1, 1], [], []>} : vector<1x128xf32>, vector<128x128xf32>, vector<1x128xf32> -> vector<1x128xf32>
      %c0_88 = arith.constant 0 : index
      %c0_89 = arith.constant 0 : index
      %214 = vector.load %arg19[%c0_88, %c0_89] : memref<1x128xf32, #tpu.memory_space<vmem>>, vector<1x128xf32>
      %215 = arith.addf %213, %214 : vector<1x128xf32>
      %216 = math.tanh %215 : vector<1x128xf32>
      %c0_90 = arith.constant 0 : index
      %c0_91 = arith.constant 0 : index
      %217 = vector.load %arg20[%c0_90, %c0_91] : memref<128x128xf32, #tpu.memory_space<vmem>>, vector<128x128xf32>
      %cst_92 = arith.constant dense<0.000000e+00> : vector<1x128xf32>
      %218 = tpu.matmul %216, %217, %cst_92 {dimension_numbers = #tpu.dot_dimension_numbers<[1], [0], [0], [1], [0, 0, 1, 1], [], []>} : vector<1x128xf32>, vector<128x128xf32>, vector<1x128xf32> -> vector<1x128xf32>
      %c0_93 = arith.constant 0 : index
      %c0_94 = arith.constant 0 : index
      %219 = vector.load %arg21[%c0_93, %c0_94] : memref<1x128xf32, #tpu.memory_space<vmem>>, vector<1x128xf32>
      %220 = arith.addf %218, %219 : vector<1x128xf32>
      %cst_95 = arith.constant 0.000000e+00 : f32
      %221 = vector.broadcast %cst_95 : f32 to vector<1x128xf32>
      %222 = arith.maximumf %220, %221 : vector<1x128xf32>
      %c0_96 = arith.constant 0 : index
      %c0_97 = arith.constant 0 : index
      %c0_98 = arith.constant 0 : index
      %223 = vector.load %arg22[%c0_96, %c0_97, %c0_98] : memref<1x1x128xf32, #tpu.memory_space<vmem>>, vector<1x1x128xf32>
      %224 = vector.shape_cast %223 : vector<1x1x128xf32> to vector<1x128xf32>
      %225 = vector.shape_cast %222 : vector<1x128xf32> to vector<1x1x128xf32>
      tpu.vector_store %arg22[%c0_96, %c0_97, %c0_98], %225 {strides = array<i32>} : memref<1x1x128xf32, #tpu.memory_space<vmem>>, vector<1x1x128xf32>,
    } else {
    }
    return
  }
  func.func @transform_0(%arg0: i32, %arg1: i32) -> (i32, i32, i32) {
    %c0_i32 = arith.constant 0 : i32
    %c0_i32_0 = arith.constant 0 : i32
    %c0_i32_1 = arith.constant 0 : i32
    return %arg0, %c0_i32, %c0_i32_0 : i32, i32, i32
  }
  func.func @transform_1(%arg0: i32, %arg1: i32) -> (i32, i32, i32) {
    %c0_i32 = arith.constant 0 : i32
    %c0_i32_0 = arith.constant 0 : i32
    %c0_i32_1 = arith.constant 0 : i32
    return %arg0, %c0_i32, %c0_i32_0 : i32, i32, i32
  }
  func.func @transform_2(%arg0: i32, %arg1: i32) -> (i32, i32) {
    %c0_i32 = arith.constant 0 : i32
    %c0_i32_0 = arith.constant 0 : i32
    %c0_i32_1 = arith.constant 0 : i32
    return %c0_i32, %c0_i32_0 : i32, i32
  }
  func.func @transform_3(%arg0: i32, %arg1: i32) -> (i32, i32) {
    %c0_i32 = arith.constant 0 : i32
    %c0_i32_0 = arith.constant 0 : i32
    %c0_i32_1 = arith.constant 0 : i32
    return %c0_i32, %c0_i32_0 : i32, i32
  }
  func.func @transform_4(%arg0: i32, %arg1: i32) -> (i32, i32, i32) {
    %c0_i32 = arith.constant 0 : i32
    %c0_i32_0 = arith.constant 0 : i32
    %c0_i32_1 = arith.constant 0 : i32
    return %arg1, %c0_i32, %c0_i32_0 : i32, i32, i32
  }
  func.func @transform_5(%arg0: i32, %arg1: i32) -> (i32, i32, i32) {
    %c0_i32 = arith.constant 0 : i32
    %c0_i32_0 = arith.constant 0 : i32
    %c0_i32_1 = arith.constant 0 : i32
    return %arg1, %c0_i32, %c0_i32_0 : i32, i32, i32
  }
  func.func @transform_6(%arg0: i32, %arg1: i32) -> (i32, i32, i32) {
    %c0_i32 = arith.constant 0 : i32
    %c0_i32_0 = arith.constant 0 : i32
    %c0_i32_1 = arith.constant 0 : i32
    return %arg1, %c0_i32, %c0_i32_0 : i32, i32, i32
  }
  func.func @transform_7(%arg0: i32, %arg1: i32) -> (i32, i32, i32) {
    %c0_i32 = arith.constant 0 : i32
    %c0_i32_0 = arith.constant 0 : i32
    %c0_i32_1 = arith.constant 0 : i32
    return %arg1, %c0_i32, %c0_i32_0 : i32, i32, i32
  }
  func.func @transform_8(%arg0: i32, %arg1: i32) -> (i32, i32, i32) {
    %c0_i32 = arith.constant 0 : i32
    %c0_i32_0 = arith.constant 0 : i32
    %c0_i32_1 = arith.constant 0 : i32
    return %arg1, %c0_i32, %c0_i32_0 : i32, i32, i32
  }
  func.func @transform_9(%arg0: i32, %arg1: i32) -> (i32, i32, i32) {
    %c0_i32 = arith.constant 0 : i32
    %c0_i32_0 = arith.constant 0 : i32
    %c0_i32_1 = arith.constant 0 : i32
    return %arg1, %c0_i32, %c0_i32_0 : i32, i32, i32
  }
  func.func @transform_10(%arg0: i32, %arg1: i32) -> (i32, i32, i32) {
    %c0_i32 = arith.constant 0 : i32
    %c0_i32_0 = arith.constant 0 : i32
    %c0_i32_1 = arith.constant 0 : i32
    return %arg1, %c0_i32, %c0_i32_0 : i32, i32, i32
  }
  func.func @transform_11(%arg0: i32, %arg1: i32) -> (i32, i32, i32) {
    %c0_i32 = arith.constant 0 : i32
    %c0_i32_0 = arith.constant 0 : i32
    %c0_i32_1 = arith.constant 0 : i32
    return %arg1, %c0_i32, %c0_i32_0 : i32, i32, i32
  }
  func.func @transform_12(%arg0: i32, %arg1: i32) -> (i32, i32, i32) {
    %c0_i32 = arith.constant 0 : i32
    %c0_i32_0 = arith.constant 0 : i32
    %c0_i32_1 = arith.constant 0 : i32
    return %arg1, %c0_i32, %c0_i32_0 : i32, i32, i32
  }
  func.func @transform_13(%arg0: i32, %arg1: i32) -> (i32, i32, i32) {
    %c0_i32 = arith.constant 0 : i32
    %c0_i32_0 = arith.constant 0 : i32
    %c0_i32_1 = arith.constant 0 : i32
    return %arg1, %c0_i32, %c0_i32_0 : i32, i32, i32
  }
  func.func @transform_14(%arg0: i32, %arg1: i32) -> (i32, i32, i32) {
    %c0_i32 = arith.constant 0 : i32
    %c0_i32_0 = arith.constant 0 : i32
    %c0_i32_1 = arith.constant 0 : i32
    return %arg1, %c0_i32, %c0_i32_0 : i32, i32, i32
  }
  func.func @transform_15(%arg0: i32, %arg1: i32) -> (i32, i32, i32) {
    %c0_i32 = arith.constant 0 : i32
    %c0_i32_0 = arith.constant 0 : i32
    %c0_i32_1 = arith.constant 0 : i32
    return %arg1, %c0_i32, %c0_i32_0 : i32, i32, i32
  }
  func.func @transform_16(%arg0: i32, %arg1: i32) -> (i32, i32) {
    %c0_i32 = arith.constant 0 : i32
    %c0_i32_0 = arith.constant 0 : i32
    %c0_i32_1 = arith.constant 0 : i32
    return %c0_i32, %c0_i32_0 : i32, i32
  }
  func.func @transform_17(%arg0: i32, %arg1: i32) -> (i32, i32) {
    %c0_i32 = arith.constant 0 : i32
    %c0_i32_0 = arith.constant 0 : i32
    %c0_i32_1 = arith.constant 0 : i32
    return %c0_i32, %c0_i32_0 : i32, i32
  }
  func.func @transform_18(%arg0: i32, %arg1: i32) -> (i32, i32) {
    %c0_i32 = arith.constant 0 : i32
    %c0_i32_0 = arith.constant 0 : i32
    %c0_i32_1 = arith.constant 0 : i32
    return %c0_i32, %c0_i32_0 : i32, i32
  }
  func.func @transform_19(%arg0: i32, %arg1: i32) -> (i32, i32) {
    %c0_i32 = arith.constant 0 : i32
    %c0_i32_0 = arith.constant 0 : i32
    %c0_i32_1 = arith.constant 0 : i32
    return %c0_i32, %c0_i32_0 : i32, i32
  }
  func.func @transform_20(%arg0: i32, %arg1: i32) -> (i32, i32, i32) {
    %c0_i32 = arith.constant 0 : i32
    %c0_i32_0 = arith.constant 0 : i32
    %c0_i32_1 = arith.constant 0 : i32
    return %arg0, %c0_i32, %c0_i32_0 : i32, i32, i32
  }
}

</mosaic_0001>

<llo_original>
// kernel: bert_classifier_forward.1
$region0: #{bert_classifier_forward.1}
  #allocation0 [shape = 'u32[]', space=smem, size = 0x4, offset = 0x4, fixed_abs, tag = 'smem constant byte address 0x4 - core index']
  #allocation1 [shape = 'u32[144,128]{1,0:T(1,128)}', space=vmem, size = 0x12000, scoped, tag = 'internal scratch']
  #allocation2 [shape = 'f32[8,128]{1,0:T(8,128)}', space=vmem, size = 0x1000, scoped, tag = 'scratch operand']
  %s0 = inlined_call_operand.vmem [shape: f32[2,8,128], index: 0, kind: input, shape index: {}]
  %s1 = inlined_call_operand.vmem [shape: f32[2,1,8], index: 1, kind: input, shape index: {}]
  %s2 = inlined_call_operand.vmem [shape: f32[1,128], index: 2, kind: input, shape index: {}]
  %s3 = inlined_call_operand.vmem [shape: f32[1,128], index: 3, kind: input, shape index: {}]
  %s4 = inlined_call_operand.hbm [shape: bf16[2,128,384], index: 4, kind: input, shape index: {}]
  %s5 = inlined_call_operand.vmem [shape: f32[2,1,384], index: 5, kind: input, shape index: {}]
  %s6 = inlined_call_operand.vmem [shape: bf16[2,128,128], index: 6, kind: input, shape index: {}]
  %s7 = inlined_call_operand.vmem [shape: f32[2,1,128], index: 7, kind: input, shape index: {}]
  %s8 = inlined_call_operand.vmem [shape: f32[2,1,128], index: 8, kind: input, shape index: {}]
  %s9 = inlined_call_operand.vmem [shape: f32[2,1,128], index: 9, kind: input, shape index: {}]
  %s10 = inlined_call_operand.hbm [shape: bf16[2,128,512], index: 10, kind: input, shape index: {}]
  %s11 = inlined_call_operand.vmem [shape: f32[2,1,512], index: 11, kind: input, shape index: {}]
  %s12 = inlined_call_operand.hbm [shape: bf16[2,512,128], index: 12, kind: input, shape index: {}]
  %s13 = inlined_call_operand.vmem [shape: f32[2,1,128], index: 13, kind: input, shape index: {}]
  %s14 = inlined_call_operand.vmem [shape: f32[2,1,128], index: 14, kind: input, shape index: {}]
  %s15 = inlined_call_operand.vmem [shape: f32[2,1,128], index: 15, kind: input, shape index: {}]
  %s16 = inlined_call_operand.hbm [shape: f32[128,128], index: 16, kind: input, shape index: {}]
  %s17 = inlined_call_operand.vmem [shape: f32[1,128], index: 17, kind: input, shape index: {}]
  %s18 = inlined_call_operand.hbm [shape: f32[128,128], index: 18, kind: input, shape index: {}]
  %s19 = inlined_call_operand.vmem [shape: f32[1,128], index: 19, kind: input, shape index: {}]
  %s20 = inlined_call_operand.hbm [shape: f32[2,1,128], index: 20, kind: output, shape index: {}]
  %s21 = sld [smem:[#allocation0]]
  $region141: #{bert_classifier_forward.1} parent=0
    _
  %s23 = ssub.s32 1, %s21
  %s24 = scalar_select 0, %s23, %s21
  $region1: #{bert_classifier_forward.1} parent=0
    #allocation3 [shape = 'u8[196608]{0}', space=vmem, size = 0x30000, scoped, tag = 'input window, operand 4']
    #allocation4 [shape = 's32[2]{0}', space=sflag, size = 0x8, scoped, tag = 'scoped memory for bert_classifier_forward.1']
    #allocation5 [shape = 's32[2]{0}', space=sflag, size = 0x8, scoped, tag = 'scoped memory for bert_classifier_forward.1']
    #allocation6 [shape = 'u8[262144]{0}', space=vmem, size = 0x40000, scoped, tag = 'input window, operand 10']
    #allocation7 [shape = 's32[2]{0}', space=sflag, size = 0x8, scoped, tag = 'scoped memory for bert_classifier_forward.1']
    #allocation8 [shape = 'u8[262144]{0}', space=vmem, size = 0x40000, scoped, tag = 'input window, operand 12']
    #allocation9 [shape = 'u8[65536]{0}', space=vmem, size = 0x10000, scoped, tag = 'input window, operand 16, single buffered']
    #allocation10 [shape = 's32[1]{0}', space=sflag, size = 0x4, scoped, tag = 'scoped memory for bert_classifier_forward.1']
    #allocation11 [shape = 'u8[65536]{0}', space=vmem, size = 0x10000, scoped, tag = 'input window, operand 18, single buffered']
    #allocation12 [shape = 'u8[1024]{0}', space=vmem, size = 0x400, scoped, tag = 'output window, operand 0']
    %25 = vsyncpa [#allocation4], 0
    %s26 = scalar_lea.sflag [#allocation4], 1
    %27 = vsyncpa %s26, 0
    %28 = vsyncpa [#allocation7], 0
    %s29 = scalar_lea.sflag [#allocation7], 1
    %30 = vsyncpa %s29, 0
    %31 = vsyncpa [#allocation10], 0
    %32 = vsyncpa [#allocation5], 0
    %s33 = scalar_lea.sflag [#allocation5], 1
    %34 = vsyncpa %s33, 0
    loop: start=0, step=1, limit=6
    $region2: #{bert_classifier_forward.1} parent=1 // loop_pre_header
      _
    $region3: #{bert_classifier_forward.1} parent=1 // loop_header
      %s36 = sphi 0, %s40
      %p37 = scmp.ge.s32.totalorder %s36, 6
      %s43 = sphi 0, %s55
      %s44 = sphi 0, %s51
      %s45 = sphi 0, %s43
      %s46 = sphi 0, %s44
      %s47 = sphi 0, %s45
      %s48 = sphi 0, %s46
      %s58 = sphi 0, %s60
      %s61 = sphi 0, %s58
      %s62 = sphi 0, %s61
      %s78 = sphi 0, %s62
      %s84 = sphi 0, %s86
      %s87 = sphi 0, %s84
      %s88 = sphi 0, %s87
      %s104 = sphi 0, %s88
      %s108 = sphi 0, %s108
      %s110 = sphi 0, %s108
      %s111 = sphi 0, %s110
      %s125 = sphi 0, %s111
      %s129 = sphi 0, %s129
      %s131 = sphi 0, %s129
      %s132 = sphi 0, %s131
      %s146 = sphi 0, %s132
      %s152 = sphi 0, %s154
      %s155 = sphi 0, %s152
      %s156 = sphi 0, %s155
      %s172 = sphi 0, %s156
      %s178 = sphi 0, %s180
      %s181 = sphi 0, %s178
      %s182 = sphi 0, %s181
      %s198 = sphi 0, %s182
      %s204 = sphi 0, %s206
      %s207 = sphi 0, %s204
      %s208 = sphi 0, %s207
      %s224 = sphi 0, %s208
      %s230 = sphi 0, %s232
      %s233 = sphi 0, %s230
      %s234 = sphi 0, %s233
      %s250 = sphi 0, %s234
      %s256 = sphi 0, %s258
      %s259 = sphi 0, %s256
      %s260 = sphi 0, %s259
      %s276 = sphi 0, %s260
      %s282 = sphi 0, %s284
      %s285 = sphi 0, %s282
      %s286 = sphi 0, %s285
      %s302 = sphi 0, %s286
      %s308 = sphi 0, %s310
      %s311 = sphi 0, %s308
      %s312 = sphi 0, %s311
      %s328 = sphi 0, %s312
      %s334 = sphi 0, %s336
      %s337 = sphi 0, %s334
      %s338 = sphi 0, %s337
      %s354 = sphi 0, %s338
      %s360 = sphi 0, %s362
      %s363 = sphi 0, %s360
      %s364 = sphi 0, %s363
      %s380 = sphi 0, %s364
      %s386 = sphi 0, %s388
      %s389 = sphi 0, %s386
      %s390 = sphi 0, %s389
      %s406 = sphi 0, %s390
      %s412 = sphi 0, %s414
      %s415 = sphi 0, %s412
      %s416 = sphi 0, %s415
      %s432 = sphi 0, %s416
      %s438 = sphi 0, %s440
      %s441 = sphi 0, %s438
      %s442 = sphi 0, %s441
      %s458 = sphi 0, %s442
      %s462 = sphi 0, %s462
      %s464 = sphi 0, %s462
      %s465 = sphi 0, %s464
      %s479 = sphi 0, %s465
      %s483 = sphi 0, %s483
      %s485 = sphi 0, %s483
      %s486 = sphi 0, %s485
      %s500 = sphi 0, %s486
      %s504 = sphi 0, %s504
      %s506 = sphi 0, %s504
      %s507 = sphi 0, %s506
      %s521 = sphi 0, %s507
      %s525 = sphi 0, %s525
      %s527 = sphi 0, %s525
      %s528 = sphi 0, %s527
      %s542 = sphi 0, %s528
      %s548 = sphi 0, %s550
      %s551 = sphi 0, %s548
      %s552 = sphi 0, %s551
      %s568 = sphi 0, %s552
    $region4: #{bert_classifier_forward.1} parent=1 // loop_header_branch
      %39 = sbr.rel (%p37) target = $region8
    $region5: #{bert_classifier_forward.1} parent=1 // loop_body
      %s41 = ssub.s32 %s36, 1
      %s42 = ssub.s32 %s36, 2
      %s49 = sadd.s32 1, %s44
      %p50 = scmp.ge.s32.totalorder %s49, 2
      %s51 = scalar_select %p50, 0, %s49
      %s52 = sadd.s32 1, %s43
      %s53 = scalar_select %p50, %s52, %s43
      %p54 = scmp.ge.s32.totalorder %s53, 2
      %s55 = scalar_select %p54, 0, %s53
      %s56 = ssub.s32 %s43, %s55
      %p57 = scmp.eq.s32.totalorder %s56, 0
      %s59 = sadd.s32 %s58, 1
      %s60 = scalar_select %p57, %s58, %s59
      %p63 = pneg %p57
      %p64 = scmp.eq.s32.totalorder %s36, 3
      %p65 = por %p63, %p64
      %p66 = scmp.ne.s32.totalorder %s58, %s61
      %p67 = scmp.eq.s32.totalorder %s36, 0
      %p68 = por %p66, %p67
      %p69 = scmp.ne.s32.totalorder %s58, %s61
      %p70 = scmp.eq.s32.totalorder %s41, 3
      %p71 = por %p69, %p70
      %p72 = scmp.ne.s32.totalorder %s61, %s62
      %p73 = scmp.eq.s32.totalorder %s41, 0
      %p74 = por %p72, %p73
      %p75 = scmp.ne.s32.totalorder %s61, %s62
      %p76 = scmp.eq.s32.totalorder %s42, 3
      %p77 = por %p75, %p76
      %p79 = scmp.ne.s32.totalorder %s62, %s78
      %p80 = scmp.eq.s32.totalorder %s42, 0
      %p81 = por %p79, %p80
      %s82 = ssub.s32 %s43, %s55
      %p83 = scmp.eq.s32.totalorder %s82, 0
      %s85 = sadd.s32 %s84, 1
      %s86 = scalar_select %p83, %s84, %s85
      %p89 = pneg %p83
      %p90 = scmp.eq.s32.totalorder %s36, 3
      %p91 = por %p89, %p90
      %p92 = scmp.ne.s32.totalorder %s84, %s87
      %p93 = scmp.eq.s32.totalorder %s36, 0
      %p94 = por %p92, %p93
      %p95 = scmp.ne.s32.totalorder %s84, %s87
      %p96 = scmp.eq.s32.totalorder %s41, 3
      %p97 = por %p95, %p96
      %p98 = scmp.ne.s32.totalorder %s87, %s88
      %p99 = scmp.eq.s32.totalorder %s41, 0
      %p100 = por %p98, %p99
      %p101 = scmp.ne.s32.totalorder %s87, %s88
      %p102 = scmp.eq.s32.totalorder %s42, 3
      %p103 = por %p101, %p102
      %p105 = scmp.ne.s32.totalorder %s88, %s104
      %p106 = scmp.eq.s32.totalorder %s42, 0
      %p107 = por %p105, %p106
      %s109 = sadd.s32 %s108, 1
      %p112 = scmp.eq.s32.totalorder %s36, 3
      %p113 = scmp.ne.s32.totalorder %s108, %s110
      %p114 = scmp.eq.s32.totalorder %s36, 0
      %p115 = por %p113, %p114
      %p116 = scmp.ne.s32.totalorder %s108, %s110
      %p117 = scmp.eq.s32.totalorder %s41, 3
      %p118 = por %p116, %p117
      %p119 = scmp.ne.s32.totalorder %s110, %s111
      %p120 = scmp.eq.s32.totalorder %s41, 0
      %p121 = por %p119, %p120
      %p122 = scmp.ne.s32.totalorder %s110, %s111
      %p123 = scmp.eq.s32.totalorder %s42, 3
      %p124 = por %p122, %p123
      %p126 = scmp.ne.s32.totalorder %s111, %s125
      %p127 = scmp.eq.s32.totalorder %s42, 0
      %p128 = por %p126, %p127
      %s130 = sadd.s32 %s129, 1
      %p133 = scmp.eq.s32.totalorder %s36, 3
      %p134 = scmp.ne.s32.totalorder %s129, %s131
      %p135 = scmp.eq.s32.totalorder %s36, 0
      %p136 = por %p134, %p135
      %p137 = scmp.ne.s32.totalorder %s129, %s131
      %p138 = scmp.eq.s32.totalorder %s41, 3
      %p139 = por %p137, %p138
      %p140 = scmp.ne.s32.totalorder %s131, %s132
      %p141 = scmp.eq.s32.totalorder %s41, 0
      %p142 = por %p140, %p141
      %p143 = scmp.ne.s32.totalorder %s131, %s132
      %p144 = scmp.eq.s32.totalorder %s42, 3
      %p145 = por %p143, %p144
      %p147 = scmp.ne.s32.totalorder %s132, %s146
      %p148 = scmp.eq.s32.totalorder %s42, 0
      %p149 = por %p147, %p148
      %s150 = ssub.s32 %s44, %s51
      %p151 = scmp.eq.s32.totalorder %s150, 0
      %s153 = sadd.s32 %s152, 1
      %s154 = scalar_select %p151, %s152, %s153
      %p157 = pneg %p151
      %p158 = scmp.eq.s32.totalorder %s36, 3
      %p159 = por %p157, %p158
      %p160 = scmp.ne.s32.totalorder %s152, %s155
      %p161 = scmp.eq.s32.totalorder %s36, 0
      %p162 = por %p160, %p161
      %p163 = scmp.ne.s32.totalorder %s152, %s155
      %p164 = scmp.eq.s32.totalorder %s41, 3
      %p165 = por %p163, %p164
      %p166 = scmp.ne.s32.totalorder %s155, %s156
      %p167 = scmp.eq.s32.totalorder %s41, 0
      %p168 = por %p166, %p167
      %p169 = scmp.ne.s32.totalorder %s155, %s156
      %p170 = scmp.eq.s32.totalorder %s42, 3
      %p171 = por %p169, %p170
      %p173 = scmp.ne.s32.totalorder %s156, %s172
      %p174 = scmp.eq.s32.totalorder %s42, 0
      %p175 = por %p173, %p174
      %s176 = ssub.s32 %s44, %s51
      %p177 = scmp.eq.s32.totalorder %s176, 0
      %s179 = sadd.s32 %s178, 1
      %s180 = scalar_select %p177, %s178, %s179
      %p183 = pneg %p177
      %p184 = scmp.eq.s32.totalorder %s36, 3
      %p185 = por %p183, %p184
      %p186 = scmp.ne.s32.totalorder %s178, %s181
      %p187 = scmp.eq.s32.totalorder %s36, 0
      %p188 = por %p186, %p187
      %p189 = scmp.ne.s32.totalorder %s178, %s181
      %p190 = scmp.eq.s32.totalorder %s41, 3
      %p191 = por %p189, %p190
      %p192 = scmp.ne.s32.totalorder %s181, %s182
      %p193 = scmp.eq.s32.totalorder %s41, 0
      %p194 = por %p192, %p193
      %p195 = scmp.ne.s32.totalorder %s181, %s182
      %p196 = scmp.eq.s32.totalorder %s42, 3
      %p197 = por %p195, %p196
      %p199 = scmp.ne.s32.totalorder %s182, %s198
      %p200 = scmp.eq.s32.totalorder %s42, 0
      %p201 = por %p199, %p200
      %s202 = ssub.s32 %s44, %s51
      %p203 = scmp.eq.s32.totalorder %s202, 0
      %s205 = sadd.s32 %s204, 1
      %s206 = scalar_select %p203, %s204, %s205
      %p209 = pneg %p203
      %p210 = scmp.eq.s32.totalorder %s36, 3
      %p211 = por %p209, %p210
      %p212 = scmp.ne.s32.totalorder %s204, %s207
      %p213 = scmp.eq.s32.totalorder %s36, 0
      %p214 = por %p212, %p213
      %p215 = scmp.ne.s32.totalorder %s204, %s207
      %p216 = scmp.eq.s32.totalorder %s41, 3
      %p217 = por %p215, %p216
      %p218 = scmp.ne.s32.totalorder %s207, %s208
      %p219 = scmp.eq.s32.totalorder %s41, 0
      %p220 = por %p218, %p219
      %p221 = scmp.ne.s32.totalorder %s207, %s208
      %p222 = scmp.eq.s32.totalorder %s42, 3
      %p223 = por %p221, %p222
      %p225 = scmp.ne.s32.totalorder %s208, %s224
      %p226 = scmp.eq.s32.totalorder %s42, 0
      %p227 = por %p225, %p226
      %s228 = ssub.s32 %s44, %s51
      %p229 = scmp.eq.s32.totalorder %s228, 0
      %s231 = sadd.s32 %s230, 1
      %s232 = scalar_select %p229, %s230, %s231
      %p235 = pneg %p229
      %p236 = scmp.eq.s32.totalorder %s36, 3
      %p237 = por %p235, %p236
      %p238 = scmp.ne.s32.totalorder %s230, %s233
      %p239 = scmp.eq.s32.totalorder %s36, 0
      %p240 = por %p238, %p239
      %p241 = scmp.ne.s32.totalorder %s230, %s233
      %p242 = scmp.eq.s32.totalorder %s41, 3
      %p243 = por %p241, %p242
      %p244 = scmp.ne.s32.totalorder %s233, %s234
      %p245 = scmp.eq.s32.totalorder %s41, 0
      %p246 = por %p244, %p245
      %p247 = scmp.ne.s32.totalorder %s233, %s234
      %p248 = scmp.eq.s32.totalorder %s42, 3
      %p249 = por %p247, %p248
      %p251 = scmp.ne.s32.totalorder %s234, %s250
      %p252 = scmp.eq.s32.totalorder %s42, 0
      %p253 = por %p251, %p252
      %s254 = ssub.s32 %s44, %s51
      %p255 = scmp.eq.s32.totalorder %s254, 0
      %s257 = sadd.s32 %s256, 1
      %s258 = scalar_select %p255, %s256, %s257
      %p261 = pneg %p255
      %p262 = scmp.eq.s32.totalorder %s36, 3
      %p263 = por %p261, %p262
      %p264 = scmp.ne.s32.totalorder %s256, %s259
      %p265 = scmp.eq.s32.totalorder %s36, 0
      %p266 = por %p264, %p265
      %p267 = scmp.ne.s32.totalorder %s256, %s259
      %p268 = scmp.eq.s32.totalorder %s41, 3
      %p269 = por %p267, %p268
      %p270 = scmp.ne.s32.totalorder %s259, %s260
      %p271 = scmp.eq.s32.totalorder %s41, 0
      %p272 = por %p270, %p271
      %p273 = scmp.ne.s32.totalorder %s259, %s260
      %p274 = scmp.eq.s32.totalorder %s42, 3
      %p275 = por %p273, %p274
      %p277 = scmp.ne.s32.totalorder %s260, %s276
      %p278 = scmp.eq.s32.totalorder %s42, 0
      %p279 = por %p277, %p278
      %s280 = ssub.s32 %s44, %s51
      %p281 = scmp.eq.s32.totalorder %s280, 0
      %s283 = sadd.s32 %s282, 1
      %s284 = scalar_select %p281, %s282, %s283
      %p287 = pneg %p281
      %p288 = scmp.eq.s32.totalorder %s36, 3
      %p289 = por %p287, %p288
      %p290 = scmp.ne.s32.totalorder %s282, %s285
      %p291 = scmp.eq.s32.totalorder %s36, 0
      %p292 = por %p290, %p291
      %p293 = scmp.ne.s32.totalorder %s282, %s285
      %p294 = scmp.eq.s32.totalorder %s41, 3
      %p295 = por %p293, %p294
      %p296 = scmp.ne.s32.totalorder %s285, %s286
      %p297 = scmp.eq.s32.totalorder %s41, 0
      %p298 = por %p296, %p297
      %p299 = scmp.ne.s32.totalorder %s285, %s286
      %p300 = scmp.eq.s32.totalorder %s42, 3
      %p301 = por %p299, %p300
      %p303 = scmp.ne.s32.totalorder %s286, %s302
      %p304 = scmp.eq.s32.totalorder %s42, 0
      %p305 = por %p303, %p304
      %s306 = ssub.s32 %s44, %s51
      %p307 = scmp.eq.s32.totalorder %s306, 0
      %s309 = sadd.s32 %s308, 1
      %s310 = scalar_select %p307, %s308, %s309
      %p313 = pneg %p307
      %p314 = scmp.eq.s32.totalorder %s36, 3
      %p315 = por %p313, %p314
      %p316 = scmp.ne.s32.totalorder %s308, %s311
      %p317 = scmp.eq.s32.totalorder %s36, 0
      %p318 = por %p316, %p317
      %p319 = scmp.ne.s32.totalorder %s308, %s311
      %p320 = scmp.eq.s32.totalorder %s41, 3
      %p321 = por %p319, %p320
      %p322 = scmp.ne.s32.totalorder %s311, %s312
      %p323 = scmp.eq.s32.totalorder %s41, 0
      %p324 = por %p322, %p323
      %p325 = scmp.ne.s32.totalorder %s311, %s312
      %p326 = scmp.eq.s32.totalorder %s42, 3
      %p327 = por %p325, %p326
      %p329 = scmp.ne.s32.totalorder %s312, %s328
      %p330 = scmp.eq.s32.totalorder %s42, 0
      %p331 = por %p329, %p330
      %s332 = ssub.s32 %s44, %s51
      %p333 = scmp.eq.s32.totalorder %s332, 0
      %s335 = sadd.s32 %s334, 1
      %s336 = scalar_select %p333, %s334, %s335
      %p339 = pneg %p333
      %p340 = scmp.eq.s32.totalorder %s36, 3
      %p341 = por %p339, %p340
      %p342 = scmp.ne.s32.totalorder %s334, %s337
      %p343 = scmp.eq.s32.totalorder %s36, 0
      %p344 = por %p342, %p343
      %p345 = scmp.ne.s32.totalorder %s334, %s337
      %p346 = scmp.eq.s32.totalorder %s41, 3
      %p347 = por %p345, %p346
      %p348 = scmp.ne.s32.totalorder %s337, %s338
      %p349 = scmp.eq.s32.totalorder %s41, 0
      %p350 = por %p348, %p349
      %p351 = scmp.ne.s32.totalorder %s337, %s338
      %p352 = scmp.eq.s32.totalorder %s42, 3
      %p353 = por %p351, %p352
      %p355 = scmp.ne.s32.totalorder %s338, %s354
      %p356 = scmp.eq.s32.totalorder %s42, 0
      %p357 = por %p355, %p356
      %s358 = ssub.s32 %s44, %s51
      %p359 = scmp.eq.s32.totalorder %s358, 0
      %s361 = sadd.s32 %s360, 1
      %s362 = scalar_select %p359, %s360, %s361
      %p365 = pneg %p359
      %p366 = scmp.eq.s32.totalorder %s36, 3
      %p367 = por %p365, %p366
      %p368 = scmp.ne.s32.totalorder %s360, %s363
      %p369 = scmp.eq.s32.totalorder %s36, 0
      %p370 = por %p368, %p369
      %p371 = scmp.ne.s32.totalorder %s360, %s363
      %p372 = scmp.eq.s32.totalorder %s41, 3
      %p373 = por %p371, %p372
      %p374 = scmp.ne.s32.totalorder %s363, %s364
      %p375 = scmp.eq.s32.totalorder %s41, 0
      %p376 = por %p374, %p375
      %p377 = scmp.ne.s32.totalorder %s363, %s364
      %p378 = scmp.eq.s32.totalorder %s42, 3
      %p379 = por %p377, %p378
      %p381 = scmp.ne.s32.totalorder %s364, %s380
      %p382 = scmp.eq.s32.totalorder %s42, 0
      %p383 = por %p381, %p382
      %s384 = ssub.s32 %s44, %s51
      %p385 = scmp.eq.s32.totalorder %s384, 0
      %s387 = sadd.s32 %s386, 1
      %s388 = scalar_select %p385, %s386, %s387
      %p391 = pneg %p385
      %p392 = scmp.eq.s32.totalorder %s36, 3
      %p393 = por %p391, %p392
      %p394 = scmp.ne.s32.totalorder %s386, %s389
      %p395 = scmp.eq.s32.totalorder %s36, 0
      %p396 = por %p394, %p395
      %p397 = scmp.ne.s32.totalorder %s386, %s389
      %p398 = scmp.eq.s32.totalorder %s41, 3
      %p399 = por %p397, %p398
      %p400 = scmp.ne.s32.totalorder %s389, %s390
      %p401 = scmp.eq.s32.totalorder %s41, 0
      %p402 = por %p400, %p401
      %p403 = scmp.ne.s32.totalorder %s389, %s390
      %p404 = scmp.eq.s32.totalorder %s42, 3
      %p405 = por %p403, %p404
      %p407 = scmp.ne.s32.totalorder %s390, %s406
      %p408 = scmp.eq.s32.totalorder %s42, 0
      %p409 = por %p407, %p408
      %s410 = ssub.s32 %s44, %s51
      %p411 = scmp.eq.s32.totalorder %s410, 0
      %s413 = sadd.s32 %s412, 1
      %s414 = scalar_select %p411, %s412, %s413
      %p417 = pneg %p411
      %p418 = scmp.eq.s32.totalorder %s36, 3
      %p419 = por %p417, %p418
      %p420 = scmp.ne.s32.totalorder %s412, %s415
      %p421 = scmp.eq.s32.totalorder %s36, 0
      %p422 = por %p420, %p421
      %p423 = scmp.ne.s32.totalorder %s412, %s415
      %p424 = scmp.eq.s32.totalorder %s41, 3
      %p425 = por %p423, %p424
      %p426 = scmp.ne.s32.totalorder %s415, %s416
      %p427 = scmp.eq.s32.totalorder %s41, 0
      %p428 = por %p426, %p427
      %p429 = scmp.ne.s32.totalorder %s415, %s416
      %p430 = scmp.eq.s32.totalorder %s42, 3
      %p431 = por %p429, %p430
      %p433 = scmp.ne.s32.totalorder %s416, %s432
      %p434 = scmp.eq.s32.totalorder %s42, 0
      %p435 = por %p433, %p434
      %s436 = ssub.s32 %s44, %s51
      %p437 = scmp.eq.s32.totalorder %s436, 0
      %s439 = sadd.s32 %s438, 1
      %s440 = scalar_select %p437, %s438, %s439
      %p443 = pneg %p437
      %p444 = scmp.eq.s32.totalorder %s36, 3
      %p445 = por %p443, %p444
      %p446 = scmp.ne.s32.totalorder %s438, %s441
      %p447 = scmp.eq.s32.totalorder %s36, 0
      %p448 = por %p446, %p447
      %p449 = scmp.ne.s32.totalorder %s438, %s441
      %p450 = scmp.eq.s32.totalorder %s41, 3
      %p451 = por %p449, %p450
      %p452 = scmp.ne.s32.totalorder %s441, %s442
      %p453 = scmp.eq.s32.totalorder %s41, 0
      %p454 = por %p452, %p453
      %p455 = scmp.ne.s32.totalorder %s441, %s442
      %p456 = scmp.eq.s32.totalorder %s42, 3
      %p457 = por %p455, %p456
      %p459 = scmp.ne.s32.totalorder %s442, %s458
      %p460 = scmp.eq.s32.totalorder %s42, 0
      %p461 = por %p459, %p460
      %s463 = sadd.s32 %s462, 1
      %p466 = scmp.eq.s32.totalorder %s36, 3
      %p467 = scmp.ne.s32.totalorder %s462, %s464
      %p468 = scmp.eq.s32.totalorder %s36, 0
      %p469 = por %p467, %p468
      %p470 = scmp.ne.s32.totalorder %s462, %s464
      %p471 = scmp.eq.s32.totalorder %s41, 3
      %p472 = por %p470, %p471
      %p473 = scmp.ne.s32.totalorder %s464, %s465
      %p474 = scmp.eq.s32.totalorder %s41, 0
      %p475 = por %p473, %p474
      %p476 = scmp.ne.s32.totalorder %s464, %s465
      %p477 = scmp.eq.s32.totalorder %s42, 3
      %p478 = por %p476, %p477
      %p480 = scmp.ne.s32.totalorder %s465, %s479
      %p481 = scmp.eq.s32.totalorder %s42, 0
      %p482 = por %p480, %p481
      %s484 = sadd.s32 %s483, 1
      %p487 = scmp.eq.s32.totalorder %s36, 3
      %p488 = scmp.ne.s32.totalorder %s483, %s485
      %p489 = scmp.eq.s32.totalorder %s36, 0
      %p490 = por %p488, %p489
      %p491 = scmp.ne.s32.totalorder %s483, %s485
      %p492 = scmp.eq.s32.totalorder %s41, 3
      %p493 = por %p491, %p492
      %p494 = scmp.ne.s32.totalorder %s485, %s486
      %p495 = scmp.eq.s32.totalorder %s41, 0
      %p496 = por %p494, %p495
      %p497 = scmp.ne.s32.totalorder %s485, %s486
      %p498 = scmp.eq.s32.totalorder %s42, 3
      %p499 = por %p497, %p498
      %p501 = scmp.ne.s32.totalorder %s486, %s500
      %p502 = scmp.eq.s32.totalorder %s42, 0
      %p503 = por %p501, %p502
      %s505 = sadd.s32 %s504, 1
      %p508 = scmp.eq.s32.totalorder %s36, 3
      %p509 = scmp.ne.s32.totalorder %s504, %s506
      %p510 = scmp.eq.s32.totalorder %s36, 0
      %p511 = por %p509, %p510
      %p512 = scmp.ne.s32.totalorder %s504, %s506
      %p513 = scmp.eq.s32.totalorder %s41, 3
      %p514 = por %p512, %p513
      %p515 = scmp.ne.s32.totalorder %s506, %s507
      %p516 = scmp.eq.s32.totalorder %s41, 0
      %p517 = por %p515, %p516
      %p518 = scmp.ne.s32.totalorder %s506, %s507
      %p519 = scmp.eq.s32.totalorder %s42, 3
      %p520 = por %p518, %p519
      %p522 = scmp.ne.s32.totalorder %s507, %s521
      %p523 = scmp.eq.s32.totalorder %s42, 0
      %p524 = por %p522, %p523
      %s526 = sadd.s32 %s525, 1
      %p529 = scmp.eq.s32.totalorder %s36, 3
      %p530 = scmp.ne.s32.totalorder %s525, %s527
      %p531 = scmp.eq.s32.totalorder %s36, 0
      %p532 = por %p530, %p531
      %p533 = scmp.ne.s32.totalorder %s525, %s527
      %p534 = scmp.eq.s32.totalorder %s41, 3
      %p535 = por %p533, %p534
      %p536 = scmp.ne.s32.totalorder %s527, %s528
      %p537 = scmp.eq.s32.totalorder %s41, 0
      %p538 = por %p536, %p537
      %p539 = scmp.ne.s32.totalorder %s527, %s528
      %p540 = scmp.eq.s32.totalorder %s42, 3
      %p541 = por %p539, %p540
      %p543 = scmp.ne.s32.totalorder %s528, %s542
      %p544 = scmp.eq.s32.totalorder %s42, 0
      %p545 = por %p543, %p544
      %s546 = ssub.s32 %s43, %s55
      %p547 = scmp.eq.s32.totalorder %s546, 0
      %s549 = sadd.s32 %s548, 1
      %s550 = scalar_select %p547, %s548, %s549
      %p553 = pneg %p547
      %p554 = scmp.eq.s32.totalorder %s36, 3
      %p555 = por %p553, %p554
      %p556 = scmp.ne.s32.totalorder %s548, %s551
      %p557 = scmp.eq.s32.totalorder %s36, 0
      %p558 = por %p556, %p557
      %p559 = scmp.ne.s32.totalorder %s548, %s551
      %p560 = scmp.eq.s32.totalorder %s41, 3
      %p561 = por %p559, %p560
      %p562 = scmp.ne.s32.totalorder %s551, %s552
      %p563 = scmp.eq.s32.totalorder %s41, 0
      %p564 = por %p562, %p563
      %p565 = scmp.ne.s32.totalorder %s551, %s552
      %p566 = scmp.eq.s32.totalorder %s42, 3
      %p567 = por %p565, %p566
      %p569 = scmp.ne.s32.totalorder %s552, %s568
      %p570 = scmp.eq.s32.totalorder %s42, 0
      %p571 = por %p569, %p570
      %p572 = scmp.le.s32.totalorder 1, %s36
      %p573 = scmp.lt.s32.totalorder %s36, 5
      %p574 = pnand %p572, %p573
      %p575 = pneg %p574
      // Predicated region
      $region9: #{bert_classifier_forward.1} parent=5 // pred_check
        _
      $region10: #{bert_classifier_forward.1} parent=5 // pred_check_branch
        %577 = sbr.rel (%p574) target = $region12
      $region11: #{bert_classifier_forward.1} parent=5 // pred_region
        %s578 = ssub.s32 %s36, 1
        // Predicated region
        $region13: #{bert_classifier_forward.1} parent=11 // pred_check
          %p579 = pneg %p121
        $region14: #{bert_classifier_forward.1} parent=11 // pred_check_branch
          %581 = sbr.rel (%p579) target = $region16
        $region15: #{bert_classifier_forward.1} parent=11 // pred_region
          _
        $region16: #{bert_classifier_forward.1} parent=11 // pred_fallthru
          _
        // Predicated region
        $region17: #{bert_classifier_forward.1} parent=11 // pred_check
          %p582 = pneg %p142
        $region18: #{bert_classifier_forward.1} parent=11 // pred_check_branch
          %584 = sbr.rel (%p582) target = $region20
        $region19: #{bert_classifier_forward.1} parent=11 // pred_region
          _
        $region20: #{bert_classifier_forward.1} parent=11 // pred_fallthru
          _
        // Predicated region
        $region21: #{bert_classifier_forward.1} parent=11 // pred_check
          %p585 = pneg %p475
        $region22: #{bert_classifier_forward.1} parent=11 // pred_check_branch
          %587 = sbr.rel (%p585) target = $region24
        $region23: #{bert_classifier_forward.1} parent=11 // pred_region
          %s589 = ssub.s32 2048, 2048
          %590 = vsyncadd [#allocation10], %s589
          %s591 = sshll.u32 [#allocation9], 4
          %s592 = int_to_ptr.vmem [resolvable:$true] %s591
          %597 = dma.hbm_to_vmem [thread:$0]  %s16, 2048, %s592, [#allocation10], 128, 128, 8
        $region24: #{bert_classifier_forward.1} parent=11 // pred_fallthru
          _
        // Predicated region
        $region25: #{bert_classifier_forward.1} parent=11 // pred_check
          %p598 = pneg %p496
        $region26: #{bert_classifier_forward.1} parent=11 // pred_check_branch
          %600 = sbr.rel (%p598) target = $region28
        $region27: #{bert_classifier_forward.1} parent=11 // pred_region
          _
        $region28: #{bert_classifier_forward.1} parent=11 // pred_fallthru
          _
        // Predicated region
        $region29: #{bert_classifier_forward.1} parent=11 // pred_check
          %p601 = pneg %p517
        $region30: #{bert_classifier_forward.1} parent=11 // pred_check_branch
          %603 = sbr.rel (%p601) target = $region32
        $region31: #{bert_classifier_forward.1} parent=11 // pred_region
          %s605 = ssub.s32 2048, 2048
          %606 = vsyncadd [#allocation10], %s605
          %s607 = sshll.u32 [#allocation11], 4
          %s608 = int_to_ptr.vmem [resolvable:$true] %s607
          %613 = dma.hbm_to_vmem [thread:$0]  %s18, 2048, %s608, [#allocation10], 128, 128, 8
        $region32: #{bert_classifier_forward.1} parent=11 // pred_fallthru
          _
        // Predicated region
        $region33: #{bert_classifier_forward.1} parent=11 // pred_check
          %p614 = pneg %p538
        $region34: #{bert_classifier_forward.1} parent=11 // pred_check_branch
          %616 = sbr.rel (%p614) target = $region36
        $region35: #{bert_classifier_forward.1} parent=11 // pred_region
          _
        $region36: #{bert_classifier_forward.1} parent=11 // pred_fallthru
          _
      $region12: #{bert_classifier_forward.1} parent=5 // pred_fallthru
        _
      %p617 = scmp.lt.s32.totalorder %s36, 4
      // Predicated region
      $region37: #{bert_classifier_forward.1} parent=5 // pred_check
        %p618 = pneg %p617
      $region38: #{bert_classifier_forward.1} parent=5 // pred_check_branch
        %620 = sbr.rel (%p618) target = $region40
      $region39: #{bert_classifier_forward.1} parent=5 // pred_region
        // Predicated region
        $region41: #{bert_classifier_forward.1} parent=39 // pred_check
          %p621 = pneg %p68
        $region42: #{bert_classifier_forward.1} parent=39 // pred_check_branch
          %623 = sbr.rel (%p621) target = $region44
        $region43: #{bert_classifier_forward.1} parent=39 // pred_region
          %p624 = scmp.lt.s32.totalorder %s43, 1
          %s625 = scalar_select %p624, %s43, 1
          %s626 = smul.addr %s625, 8
          %s627 = scalar_lea.vmem %s0, %s626
        $region44: #{bert_classifier_forward.1} parent=39 // pred_fallthru
          _
        // Predicated region
        $region45: #{bert_classifier_forward.1} parent=39 // pred_check
          %p628 = pneg %p94
        $region46: #{bert_classifier_forward.1} parent=39 // pred_check_branch
          %630 = sbr.rel (%p628) target = $region48
        $region47: #{bert_classifier_forward.1} parent=39 // pred_region
          %p631 = scmp.lt.s32.totalorder %s43, 1
          %s632 = scalar_select %p631, %s43, 1
          %s633 = scalar_lea.vmem %s1, %s632
        $region48: #{bert_classifier_forward.1} parent=39 // pred_fallthru
          _
        // Predicated region
        $region49: #{bert_classifier_forward.1} parent=39 // pred_check
          %p634 = pneg %p162
        $region50: #{bert_classifier_forward.1} parent=39 // pred_check_branch
          %636 = sbr.rel (%p634) target = $region52
        $region51: #{bert_classifier_forward.1} parent=39 // pred_region
          %s637 = sand.u32 %s152, 1
          %s638 = scalar_lea.sflag [#allocation4], %s637
          %s639 = sand.u32 %s152, 1
          %s640 = smul.addr %s639, 192
          %s641 = scalar_lea.vmem [#allocation3], %s640
          %s643 = ssub.s32 3072, 3072
          %644 = vsyncadd %s638, %s643
          %s645 = smul.addr %s44, 48
          %s646 = smul.addr %s645, 64
          %s647 = scalar_lea.hbm %s4, %s646
          %s648 = sshll.u32 %s641, 4
          %s649 = int_to_ptr.vmem [resolvable:$true] %s648
          %654 = dma.hbm_to_vmem [thread:$0]  %s647, 3072, %s649, %s638, 192, 192, 12
        $region52: #{bert_classifier_forward.1} parent=39 // pred_fallthru
          _
        // Predicated region
        $region53: #{bert_classifier_forward.1} parent=39 // pred_check
          %p655 = pneg %p188
        $region54: #{bert_classifier_forward.1} parent=39 // pred_check_branch
          %657 = sbr.rel (%p655) target = $region56
        $region55: #{bert_classifier_forward.1} parent=39 // pred_region
          %p658 = scmp.lt.s32.totalorder %s44, 1
          %s659 = scalar_select %p658, %s44, 1
          %s660 = smul.addr %s659, 3
          %s661 = scalar_lea.vmem %s5, %s660
        $region56: #{bert_classifier_forward.1} parent=39 // pred_fallthru
          _
        // Predicated region
        $region57: #{bert_classifier_forward.1} parent=39 // pred_check
          %p662 = pneg %p214
        $region58: #{bert_classifier_forward.1} parent=39 // pred_check_branch
          %664 = sbr.rel (%p662) target = $region60
        $region59: #{bert_classifier_forward.1} parent=39 // pred_region
          %p665 = scmp.lt.s32.totalorder %s44, 1
          %s666 = scalar_select %p665, %s44, 1
          %s667 = smul.addr %s666, 16
          %s668 = smul.addr %s667, 4
          %s669 = scalar_lea.vmem %s6, %s668
        $region60: #{bert_classifier_forward.1} parent=39 // pred_fallthru
          _
        // Predicated region
        $region61: #{bert_classifier_forward.1} parent=39 // pred_check
          %p670 = pneg %p240
        $region62: #{bert_classifier_forward.1} parent=39 // pred_check_branch
          %672 = sbr.rel (%p670) target = $region64
        $region63: #{bert_classifier_forward.1} parent=39 // pred_region
          %p673 = scmp.lt.s32.totalorder %s44, 1
          %s674 = scalar_select %p673, %s44, 1
          %s675 = scalar_lea.vmem %s7, %s674
        $region64: #{bert_classifier_forward.1} parent=39 // pred_fallthru
          _
        // Predicated region
        $region65: #{bert_classifier_forward.1} parent=39 // pred_check
          %p676 = pneg %p266
        $region66: #{bert_classifier_forward.1} parent=39 // pred_check_branch
          %678 = sbr.rel (%p676) target = $region68
        $region67: #{bert_classifier_forward.1} parent=39 // pred_region
          %p679 = scmp.lt.s32.totalorder %s44, 1
          %s680 = scalar_select %p679, %s44, 1
          %s681 = scalar_lea.vmem %s8, %s680
        $region68: #{bert_classifier_forward.1} parent=39 // pred_fallthru
          _
        // Predicated region
        $region69: #{bert_classifier_forward.1} parent=39 // pred_check
          %p682 = pneg %p292
        $region70: #{bert_classifier_forward.1} parent=39 // pred_check_branch
          %684 = sbr.rel (%p682) target = $region72
        $region71: #{bert_classifier_forward.1} parent=39 // pred_region
          %p685 = scmp.lt.s32.totalorder %s44, 1
          %s686 = scalar_select %p685, %s44, 1
          %s687 = scalar_lea.vmem %s9, %s686
        $region72: #{bert_classifier_forward.1} parent=39 // pred_fallthru
          _
        // Predicated region
        $region73: #{bert_classifier_forward.1} parent=39 // pred_check
          %p688 = pneg %p318
        $region74: #{bert_classifier_forward.1} parent=39 // pred_check_branch
          %690 = sbr.rel (%p688) target = $region76
        $region75: #{bert_classifier_forward.1} parent=39 // pred_region
          %s691 = sand.u32 %s36, 1
          %s692 = scalar_lea.sflag [#allocation7], %s691
          %s693 = sand.u32 %s308, 1
          %s694 = smul.addr %s693, 256
          %s695 = scalar_lea.vmem [#allocation6], %s694
          %s697 = ssub.s32 4096, 4096
          %698 = vsyncadd %s692, %s697
          %s699 = smul.addr %s44, 64
          %s700 = smul.addr %s699, 64
          %s701 = scalar_lea.hbm %s10, %s700
          %s702 = sshll.u32 %s695, 4
          %s703 = int_to_ptr.vmem [resolvable:$true] %s702
          %708 = dma.hbm_to_vmem [thread:$0]  %s701, 4096, %s703, %s692, 256, 256, 16
        $region76: #{bert_classifier_forward.1} parent=39 // pred_fallthru
          _
        // Predicated region
        $region77: #{bert_classifier_forward.1} parent=39 // pred_check
          %p709 = pneg %p344
        $region78: #{bert_classifier_forward.1} parent=39 // pred_check_branch
          %711 = sbr.rel (%p709) target = $region80
        $region79: #{bert_classifier_forward.1} parent=39 // pred_region
          %p712 = scmp.lt.s32.totalorder %s44, 1
          %s713 = scalar_select %p712, %s44, 1
          %s714 = smul.addr %s713, 4
          %s715 = scalar_lea.vmem %s11, %s714
        $region80: #{bert_classifier_forward.1} parent=39 // pred_fallthru
          _
        // Predicated region
        $region81: #{bert_classifier_forward.1} parent=39 // pred_check
          %p716 = pneg %p370
        $region82: #{bert_classifier_forward.1} parent=39 // pred_check_branch
          %718 = sbr.rel (%p716) target = $region84
        $region83: #{bert_classifier_forward.1} parent=39 // pred_region
          %s719 = sand.u32 %s36, 1
          %s720 = scalar_lea.sflag [#allocation7], %s719
          %s721 = sand.u32 %s360, 1
          %s722 = smul.addr %s721, 256
          %s723 = scalar_lea.vmem [#allocation8], %s722
          %s725 = ssub.s32 4096, 4096
          %726 = vsyncadd %s720, %s725
          %s727 = smul.addr %s44, 64
          %s728 = smul.addr %s727, 64
          %s729 = scalar_lea.hbm %s12, %s728
          %s730 = sshll.u32 %s723, 4
          %s731 = int_to_ptr.vmem [resolvable:$true] %s730
          %736 = dma.hbm_to_vmem [thread:$0]  %s729, 4096, %s731, %s720, 64, 64, 4
        $region84: #{bert_classifier_forward.1} parent=39 // pred_fallthru
          _
        // Predicated region
        $region85: #{bert_classifier_forward.1} parent=39 // pred_check
          %p737 = pneg %p396
        $region86: #{bert_classifier_forward.1} parent=39 // pred_check_branch
          %739 = sbr.rel (%p737) target = $region88
        $region87: #{bert_classifier_forward.1} parent=39 // pred_region
          %p740 = scmp.lt.s32.totalorder %s44, 1
          %s741 = scalar_select %p740, %s44, 1
          %s742 = scalar_lea.vmem %s13, %s741
        $region88: #{bert_classifier_forward.1} parent=39 // pred_fallthru
          _
        // Predicated region
        $region89: #{bert_classifier_forward.1} parent=39 // pred_check
          %p743 = pneg %p422
        $region90: #{bert_classifier_forward.1} parent=39 // pred_check_branch
          %745 = sbr.rel (%p743) target = $region92
        $region91: #{bert_classifier_forward.1} parent=39 // pred_region
          %p746 = scmp.lt.s32.totalorder %s44, 1
          %s747 = scalar_select %p746, %s44, 1
          %s748 = scalar_lea.vmem %s14, %s747
        $region92: #{bert_classifier_forward.1} parent=39 // pred_fallthru
          _
        // Predicated region
        $region93: #{bert_classifier_forward.1} parent=39 // pred_check
          %p749 = pneg %p448
        $region94: #{bert_classifier_forward.1} parent=39 // pred_check_branch
          %751 = sbr.rel (%p749) target = $region96
        $region95: #{bert_classifier_forward.1} parent=39 // pred_region
          %p752 = scmp.lt.s32.totalorder %s44, 1
          %s753 = scalar_select %p752, %s44, 1
          %s754 = scalar_lea.vmem %s15, %s753
        $region96: #{bert_classifier_forward.1} parent=39 // pred_fallthru
          _
      $region40: #{bert_classifier_forward.1} parent=5 // pred_fallthru
        _
      %p755 = scmp.le.s32.totalorder 1, %s36
      %p756 = scmp.lt.s32.totalorder %s36, 5
      %p757 = pnand %p755, %p756
      %p758 = pneg %p757
      // Predicated region
      $region97: #{bert_classifier_forward.1} parent=5 // pred_check
        _
      $region98: #{bert_classifier_forward.1} parent=5 // pred_check_branch
        %760 = sbr.rel (%p757) target = $region100
      $region99: #{bert_classifier_forward.1} parent=5 // pred_region
        %s761 = ssub.s32 %s36, 1
        %s762 = sand.u32 %s155, 1
        %s763 = scalar_lea.sflag [#allocation4], %s762
        %s764 = sand.u32 %s155, 1
        %s765 = smul.addr %s764, 192
        %s766 = scalar_lea.vmem [#allocation3], %s765
        // Predicated region
        $region101: #{bert_classifier_forward.1} parent=99 // pred_check
          %p767 = pneg %p168
        $region102: #{bert_classifier_forward.1} parent=99 // pred_check_branch
          %769 = sbr.rel (%p767) target = $region104
        $region103: #{bert_classifier_forward.1} parent=99 // pred_region
          %770 = dma.done %s763, 3072
        $region104: #{bert_classifier_forward.1} parent=99 // pred_fallthru
          _
        %s771 = sand.u32 %s41, 1
        %s772 = scalar_lea.sflag [#allocation7], %s771
        %s773 = sand.u32 %s311, 1
        %s774 = smul.addr %s773, 256
        %s775 = scalar_lea.vmem [#allocation6], %s774
        // Predicated region
        $region105: #{bert_classifier_forward.1} parent=99 // pred_check
          %p776 = pneg %p324
        $region106: #{bert_classifier_forward.1} parent=99 // pred_check_branch
          %778 = sbr.rel (%p776) target = $region108
        $region107: #{bert_classifier_forward.1} parent=99 // pred_region
          %779 = dma.done %s772, 4096
        $region108: #{bert_classifier_forward.1} parent=99 // pred_fallthru
          _
        %s780 = sand.u32 %s41, 1
        %s781 = scalar_lea.sflag [#allocation7], %s780
        %s782 = sand.u32 %s363, 1
        %s783 = smul.addr %s782, 256
        %s784 = scalar_lea.vmem [#allocation8], %s783
        // Predicated region
        $region109: #{bert_classifier_forward.1} parent=99 // pred_check
          %p785 = pneg %p376
        $region110: #{bert_classifier_forward.1} parent=99 // pred_check_branch
          %787 = sbr.rel (%p785) target = $region112
        $region111: #{bert_classifier_forward.1} parent=99 // pred_region
          %788 = dma.done %s781, 4096
        $region112: #{bert_classifier_forward.1} parent=99 // pred_fallthru
          _
        // Predicated region
        $region113: #{bert_classifier_forward.1} parent=99 // pred_check
          %p789 = pneg %p475
        $region114: #{bert_classifier_forward.1} parent=99 // pred_check_branch
          %791 = sbr.rel (%p789) target = $region116
        $region115: #{bert_classifier_forward.1} parent=99 // pred_region
          %792 = dma.done [#allocation10], 2048
        $region116: #{bert_classifier_forward.1} parent=99 // pred_fallthru
          _
        // Predicated region
        $region117: #{bert_classifier_forward.1} parent=99 // pred_check
          %p793 = pneg %p517
        $region118: #{bert_classifier_forward.1} parent=99 // pred_check_branch
          %795 = sbr.rel (%p793) target = $region120
        $region119: #{bert_classifier_forward.1} parent=99 // pred_region
          %796 = dma.done [#allocation10], 2048
        $region120: #{bert_classifier_forward.1} parent=99 // pred_fallthru
          _
        %p797 = scmp.lt.s32.totalorder %s45, 1
        %s798 = scalar_select %p797, %s45, 1
        %s799 = smul.addr %s798, 8
        %s800 = scalar_lea.vmem %s0, %s799
        %p801 = pneg %p74
        %p802 = pneg %p71
        %p803 = scmp.lt.s32.totalorder %s45, 1
        %s804 = scalar_select %p803, %s45, 1
        %s805 = scalar_lea.vmem %s1, %s804
        %p806 = pneg %p100
        %p807 = pneg %p97
        %p808 = pneg %p121
        %p809 = pneg %p118
        %p810 = pneg %p142
        %p811 = pneg %p139
        %s812 = sand.u32 %s155, 1
        %s813 = scalar_lea.sflag [#allocation4], %s812
        %s814 = sand.u32 %s155, 1
        %s815 = smul.addr %s814, 192
        %s816 = scalar_lea.vmem [#allocation3], %s815
        %p817 = pneg %p168
        %p818 = pneg %p165
        %p819 = scmp.lt.s32.totalorder %s46, 1
        %s820 = scalar_select %p819, %s46, 1
        %s821 = smul.addr %s820, 3
        %s822 = scalar_lea.vmem %s5, %s821
        %p823 = pneg %p194
        %p824 = pneg %p191
        %p825 = scmp.lt.s32.totalorder %s46, 1
        %s826 = scalar_select %p825, %s46, 1
        %s827 = smul.addr %s826, 16
        %s828 = smul.addr %s827, 4
        %s829 = scalar_lea.vmem %s6, %s828
        %p830 = pneg %p220
        %p831 = pneg %p217
        %p832 = scmp.lt.s32.totalorder %s46, 1
        %s833 = scalar_select %p832, %s46, 1
        %s834 = scalar_lea.vmem %s7, %s833
        %p835 = pneg %p246
        %p836 = pneg %p243
        %p837 = scmp.lt.s32.totalorder %s46, 1
        %s838 = scalar_select %p837, %s46, 1
        %s839 = scalar_lea.vmem %s8, %s838
        %p840 = pneg %p272
        %p841 = pneg %p269
        %p842 = scmp.lt.s32.totalorder %s46, 1
        %s843 = scalar_select %p842, %s46, 1
        %s844 = scalar_lea.vmem %s9, %s843
        %p845 = pneg %p298
        %p846 = pneg %p295
        %s847 = sand.u32 %s41, 1
        %s848 = scalar_lea.sflag [#allocation7], %s847
        %s849 = sand.u32 %s311, 1
        %s850 = smul.addr %s849, 256
        %s851 = scalar_lea.vmem [#allocation6], %s850
        %p852 = pneg %p324
        %p853 = pneg %p321
        %p854 = scmp.lt.s32.totalorder %s46, 1
        %s855 = scalar_select %p854, %s46, 1
        %s856 = smul.addr %s855, 4
        %s857 = scalar_lea.vmem %s11, %s856
        %p858 = pneg %p350
        %p859 = pneg %p347
        %s860 = sand.u32 %s41, 1
        %s861 = scalar_lea.sflag [#allocation7], %s860
        %s862 = sand.u32 %s363, 1
        %s863 = smul.addr %s862, 256
        %s864 = scalar_lea.vmem [#allocation8], %s863
        %p865 = pneg %p376
        %p866 = pneg %p373
        %p867 = scmp.lt.s32.totalorder %s46, 1
        %s868 = scalar_select %p867, %s46, 1
        %s869 = scalar_lea.vmem %s13, %s868
        %p870 = pneg %p402
        %p871 = pneg %p399
        %p872 = scmp.lt.s32.totalorder %s46, 1
        %s873 = scalar_select %p872, %s46, 1
        %s874 = scalar_lea.vmem %s14, %s873
        %p875 = pneg %p428
        %p876 = pneg %p425
        %p877 = scmp.lt.s32.totalorder %s46, 1
        %s878 = scalar_select %p877, %s46, 1
        %s879 = scalar_lea.vmem %s15, %s878
        %p880 = pneg %p454
        %p881 = pneg %p451
        %p882 = pneg %p475
        %p883 = pneg %p472
        %p884 = pneg %p496
        %p885 = pneg %p493
        %p886 = pneg %p517
        %p887 = pneg %p514
        %p888 = pneg %p538
        %p889 = pneg %p535
        %p890 = pneg %p564
        %p891 = pneg %p561
        %s892 = sand.u32 %s551, 1
        %s893 = scalar_lea.sflag [#allocation5], %s892
        %s894 = sand.u32 %s551, 1
        %s895 = scalar_lea.vmem [#allocation12], %s894
        %p896 = scmp.lt.s32.totalorder %s45, 1
        %s897 = scalar_select %p896, %s45, 1
        %s898 = smul.addr %s897, 8
        %s899 = scalar_lea.vmem %s0, %s898
        %p900 = scmp.lt.s32.totalorder %s45, 1
        %s901 = scalar_select %p900, %s45, 1
        %s902 = scalar_lea.vmem %s1, %s901
        %p903 = scmp.lt.s32.totalorder %s46, 1
        %s904 = scalar_select %p903, %s46, 1
        %s905 = smul.addr %s904, 3
        %s906 = scalar_lea.vmem %s5, %s905
        %p907 = scmp.lt.s32.totalorder %s46, 1
        %s908 = scalar_select %p907, %s46, 1
        %s909 = smul.addr %s908, 16
        %s910 = smul.addr %s909, 4
        %s911 = scalar_lea.vmem %s6, %s910
        %p912 = scmp.lt.s32.totalorder %s46, 1
        %s913 = scalar_select %p912, %s46, 1
        %s914 = scalar_lea.vmem %s7, %s913
        %p915 = scmp.lt.s32.totalorder %s46, 1
        %s916 = scalar_select %p915, %s46, 1
        %s917 = scalar_lea.vmem %s8, %s916
        %p918 = scmp.lt.s32.totalorder %s46, 1
        %s919 = scalar_select %p918, %s46, 1
        %s920 = scalar_lea.vmem %s9, %s919
        %p921 = scmp.lt.s32.totalorder %s46, 1
        %s922 = scalar_select %p921, %s46, 1
        %s923 = smul.addr %s922, 4
        %s924 = scalar_lea.vmem %s11, %s923
        %p925 = scmp.lt.s32.totalorder %s46, 1
        %s926 = scalar_select %p925, %s46, 1
        %s927 = scalar_lea.vmem %s13, %s926
        %p928 = scmp.lt.s32.totalorder %s46, 1
        %s929 = scalar_select %p928, %s46, 1
        %s930 = scalar_lea.vmem %s14, %s929
        %p931 = scmp.lt.s32.totalorder %s46, 1
        %s932 = scalar_select %p931, %s46, 1
        %s933 = scalar_lea.vmem %s15, %s932
        %p935 = scmp.eq.s32.totalorder %s46, 0
        // Predicated region
        $region121: #{bert_classifier_forward.1} parent=99 // pred_check
          %p936 = pneg %p935
        $region122: #{bert_classifier_forward.1} parent=99 // pred_check_branch
          %938 = sbr.rel (%p936) target = $region124
        $region123: #{bert_classifier_forward.1} parent=99 // pred_region
          %v939 = vld [vmem:[%s899] sm:$0xff]
          %v940 = vld [vmem:[%s2] sm:$0x1]
          %v941 = vld [vmem:[%s3] sm:$0x1]
          %942 = vadd.xlane.f32.xlu0 %v939
          %v943 = vpop.xlane.xlu0 %942
          %v944 = vrcp.pop 128.0
          %v945 = vmul.f32 %v943, %v944
          %v946 = vsub.f32 %v939, %v945
          %v947 = vmul.f32 %v946, %v946
          %948 = vadd.xlane.f32.xlu0 %v947
          %v949 = vpop.xlane.xlu0 %948
          %v950 = vmul.f32 %v949, %v944
          %v951 = vadd.f32 %v950, 1e-12
          %v952 = vrsqrt.pop %v951
          %v953 = vmul.f32 %v946, %v952
          %v955 = vlaneseq
          %v956 = vshrl.u32 %v955, 7
          %v957 = vsub.s32 0, %v956
          %v958 = vrot.slane %v940, %v957
          %v960 = vmul.f32 %v953, %v958
          %v962 = vlaneseq
          %v963 = vshrl.u32 %v962, 7
          %v964 = vsub.s32 0, %v963
          %v965 = vrot.slane %v941, %v964
          %v967 = vadd.f32 %v960, %v965
          %968 = vst [vmem:[#allocation2] sm:$0xff] %v967
        $region124: #{bert_classifier_forward.1} parent=99 // pred_fallthru
          _
        %v969 = vld [vmem:[#allocation2] sm:$0xff]
        %v970 = vpack.c.bf16 %v969, %v969
        %v971 = vld [vmem:[%s766] sm:$0xff]
        %v972 = vld [vmem:[%s766 + $0x8] sm:$0xf]
        %v973 = vld [vmem:[%s766 + $0xc] sm:$0xff]
        %v974 = vld [vmem:[%s766 + $0x14] sm:$0xf]
        %v975 = vld [vmem:[%s766 + $0x18] sm:$0xff]
        %v976 = vld [vmem:[%s766 + $0x20] sm:$0xf]
        %v977 = vld [vmem:[%s766 + $0x24] sm:$0xff]
        %v978 = vld [vmem:[%s766 + $0x2c] sm:$0xf]
        %v979 = vld [vmem:[%s766 + $0x30] sm:$0xff]
        %v980 = vld [vmem:[%s766 + $0x38] sm:$0xf]
        %v981 = vld [vmem:[%s766 + $0x3c] sm:$0xff]
        %v982 = vld [vmem:[%s766 + $0x44] sm:$0xf]
        %v983 = vld [vmem:[%s766 + $0x48] sm:$0xff]
        %v984 = vld [vmem:[%s766 + $0x50] sm:$0xf]
        %v985 = vld [vmem:[%s766 + $0x54] sm:$0xff]
        %v986 = vld [vmem:[%s766 + $0x5c] sm:$0xf]
        %v987 = vld [vmem:[%s766 + $0x60] sm:$0xff]
        %v988 = vld [vmem:[%s766 + $0x68] sm:$0xf]
        %v989 = vld [vmem:[%s766 + $0x6c] sm:$0xff]
        %v990 = vld [vmem:[%s766 + $0x74] sm:$0xf]
        %v991 = vld [vmem:[%s766 + $0x78] sm:$0xff]
        %v992 = vld [vmem:[%s766 + $0x80] sm:$0xf]
        %v993 = vld [vmem:[%s766 + $0x84] sm:$0xff]
        %v994 = vld [vmem:[%s766 + $0x8c] sm:$0xf]
        %v995 = vld [vmem:[%s766 + $0x90] sm:$0xff]
        %v996 = vld [vmem:[%s766 + $0x98] sm:$0xf]
        %v997 = vld [vmem:[%s766 + $0x9c] sm:$0xff]
        %v998 = vld [vmem:[%s766 + $0xa4] sm:$0xf]
        %v999 = vld [vmem:[%s766 + $0xa8] sm:$0xff]
        %v1000 = vld [vmem:[%s766 + $0xb0] sm:$0xf]
        %v1001 = vld [vmem:[%s766 + $0xb4] sm:$0xff]
        %v1002 = vld [vmem:[%s766 + $0xbc] sm:$0xf]
        %v1003 = vld [vmem:[%s906] sm:$0x7]
        %v1005 = vlaneseq
        %v1006 = vshrl.u32 %v1005, 7
        %v1007 = vsub.s32 0, %v1006
        %v1008 = vrot.slane %v1003, %v1007
        %v1009 = vlaneseq
        %v1010 = vshrl.u32 %v1009, 7
        %v1011 = vsub.s32 1, %v1010
        %v1012 = vrot.slane %v1003, %v1011
        %v1013 = vlaneseq
        %v1014 = vshrl.u32 %v1013, 7
        %v1015 = vsub.s32 2, %v1014
        %v1016 = vrot.slane %v1003, %v1015
        %v1052 = vunpack.c.l.b16 %v971
        %v1053 = vunpack.c.h.b16 %v971
        %v1054 = vunpack.c.l.b16 %v972
        %v1055 = vunpack.c.l.b16 %v973
        %v1056 = vunpack.c.h.b16 %v973
        %v1057 = vunpack.c.l.b16 %v974
        %v1058 = vunpack.c.l.b16 %v975
        %v1059 = vunpack.c.h.b16 %v975
        %v1060 = vunpack.c.l.b16 %v976
        %v1061 = vunpack.c.l.b16 %v977
        %v1062 = vunpack.c.h.b16 %v977
        %v1063 = vunpack.c.l.b16 %v978
        %v1064 = vunpack.c.l.b16 %v979
        %v1065 = vunpack.c.h.b16 %v979
        %v1066 = vunpack.c.l.b16 %v980
        %v1067 = vunpack.c.l.b16 %v981
        %v1068 = vunpack.c.h.b16 %v981
        %v1069 = vunpack.c.l.b16 %v982
        %v1070 = vunpack.c.l.b16 %v983
        %v1071 = vunpack.c.h.b16 %v983
        %v1072 = vunpack.c.l.b16 %v984
        %v1073 = vunpack.c.l.b16 %v985
        %v1074 = vunpack.c.h.b16 %v985
        %v1075 = vunpack.c.l.b16 %v986
        %v1076 = vunpack.c.l.b16 %v987
        %v1077 = vunpack.c.h.b16 %v987
        %v1078 = vunpack.c.l.b16 %v988
        %v1079 = vunpack.c.l.b16 %v989
        %v1080 = vunpack.c.h.b16 %v989
        %v1081 = vunpack.c.l.b16 %v990
        %v1082 = vunpack.c.l.b16 %v991
        %v1083 = vunpack.c.h.b16 %v991
        %v1084 = vunpack.c.l.b16 %v992
        %v1085 = vunpack.c.l.b16 %v993
        %v1086 = vunpack.c.h.b16 %v993
        %v1087 = vunpack.c.l.b16 %v994
        %v1088 = vunpack.c.l.b16 %v995
        %v1089 = vunpack.c.h.b16 %v995
        %v1090 = vunpack.c.l.b16 %v996
        %v1091 = vunpack.c.l.b16 %v997
        %v1092 = vunpack.c.h.b16 %v997
        %v1093 = vunpack.c.l.b16 %v998
        %v1094 = vunpack.c.l.b16 %v999
        %v1095 = vunpack.c.h.b16 %v999
        %v1096 = vunpack.c.l.b16 %v1000
        %v1097 = vunpack.c.l.b16 %v1001
        %v1098 = vunpack.c.h.b16 %v1001
        %v1099 = vunpack.c.l.b16 %v1002
        %v1100 = vpack.c.b16 %v1055, %v1052
        %v1101 = vpack.c.b16 %v1056, %v1053
        %v1102 = vpack.c.b16 %v1057, %v1054
        %v1103 = vpack.c.b16 %v1061, %v1058
        %v1104 = vpack.c.b16 %v1062, %v1059
        %v1105 = vpack.c.b16 %v1063, %v1060
        %v1106 = vpack.c.b16 %v1067, %v1064
        %v1107 = vpack.c.b16 %v1068, %v1065
        %v1108 = vpack.c.b16 %v1069, %v1066
        %v1109 = vpack.c.b16 %v1073, %v1070
        %v1110 = vpack.c.b16 %v1074, %v1071
        %v1111 = vpack.c.b16 %v1075, %v1072
        %v1112 = vpack.c.b16 %v1079, %v1076
        %v1113 = vpack.c.b16 %v1080, %v1077
        %v1114 = vpack.c.b16 %v1081, %v1078
        %v1115 = vpack.c.b16 %v1085, %v1082
        %v1116 = vpack.c.b16 %v1086, %v1083
        %v1117 = vpack.c.b16 %v1087, %v1084
        %v1118 = vpack.c.b16 %v1091, %v1088
        %v1119 = vpack.c.b16 %v1092, %v1089
        %v1120 = vpack.c.b16 %v1093, %v1090
        %v1121 = vpack.c.b16 %v1097, %v1094
        %v1122 = vpack.c.b16 %v1098, %v1095
        %v1123 = vpack.c.b16 %v1099, %v1096
        %1148 = vmatprep.subr.bf16.mxu0 %v1122
        %1149 = vmatpush1.bf16.msra.mxu0 %v1121
        %1150 = vmatprep.subr.bf16.mxu0 %v1119
        %1151 = vmatpush1.bf16.msra.mxu0 %v1118
        %1152 = vmatprep.subr.bf16.mxu0 %v1116
        %1153 = vmatpush1.bf16.msra.mxu0 %v1115
        %1154 = vmatprep.subr.bf16.mxu0 %v1113
        %1155 = vmatpush1.bf16.msra.mxu0 %v1112
        %1156 = vmatprep.subr.bf16.mxu0 %v1110
        %1157 = vmatpush1.bf16.msra.mxu0 %v1109
        %1158 = vmatprep.subr.bf16.mxu0 %v1107
        %1159 = vmatpush1.bf16.msra.mxu0 %v1106
        %1160 = vmatprep.subr.bf16.mxu0 %v1104
        %1161 = vmatpush1.bf16.msra.mxu0 %v1103
        %1162 = vmatprep.subr.bf16.mxu0 %v1101
        %1163 = vmatpush1.bf16.msra.mxu0 %v1100
        %1164 = vmatprep.subr.bf16.mxu0 0
        %1165 = vmatpush2.bf16.msra.mxu0 0
        %1166 = vmatprep.subr.bf16.mxu0 0
        %1167 = vmatpush2.bf16.msra.mxu0 0
        %1168 = vmatprep.subr.bf16.mxu0 0
        %1169 = vmatpush2.bf16.msra.mxu0 0
        %1170 = vmatprep.subr.bf16.mxu0 0
        %1171 = vmatpush2.bf16.msra.mxu0 0
        %1172 = vmatprep.subr.bf16.mxu0 0
        %1173 = vmatpush2.bf16.msra.mxu0 0
        %1174 = vmatprep.subr.bf16.mxu0 0
        %1175 = vmatpush2.bf16.msra.mxu0 0
        %1176 = vmatprep.subr.bf16.mxu0 0
        %1177 = vmatpush2.bf16.msra.mxu0 0
        %1178 = vmatprep.subr.bf16.mxu0 0
        %1179 = vmatpush2.bf16.msra.mxu0 0
        %1180 = vmatprep.mubr.bf16.mxu0 0
        %1181 = vmatmul.mubr.bf16.gmra.mxu0 %v970
        %v1182 = vpop.f32.mrf.mxu0
        %v1183 = vadd.f32 %v1008, %v1182
        %v1184 = vpop.f32.mrf.mxu0
        %v1185 = vadd.f32 %v1012, %v1184
        %v1186 = vpop.f32.mrf.mxu0
        %v1187 = vpop.f32.mrf.mxu0
        %1188 = vdwg.mxu0
        %1189 = vmatprep.subr.bf16.mxu0 0
        %1190 = vmatpush1.bf16.msra.mxu0 %v1123
        %1191 = vmatprep.subr.bf16.mxu0 0
        %1192 = vmatpush1.bf16.msra.mxu0 %v1120
        %1193 = vmatprep.subr.bf16.mxu0 0
        %1194 = vmatpush1.bf16.msra.mxu0 %v1117
        %1195 = vmatprep.subr.bf16.mxu0 0
        %1196 = vmatpush1.bf16.msra.mxu0 %v1114
        %1197 = vmatprep.subr.bf16.mxu0 0
        %1198 = vmatpush1.bf16.msra.mxu0 %v1111
        %1199 = vmatprep.subr.bf16.mxu0 0
        %1200 = vmatpush1.bf16.msra.mxu0 %v1108
        %1201 = vmatprep.subr.bf16.mxu0 0
        %1202 = vmatpush1.bf16.msra.mxu0 %v1105
        %1203 = vmatprep.subr.bf16.mxu0 0
        %1204 = vmatpush1.bf16.msra.mxu0 %v1102
        %1205 = vmatprep.subr.bf16.mxu0 0
        %1206 = vmatpush2.bf16.msra.mxu0 0
        %1207 = vmatprep.subr.bf16.mxu0 0
        %1208 = vmatpush2.bf16.msra.mxu0 0
        %1209 = vmatprep.subr.bf16.mxu0 0
        %1210 = vmatpush2.bf16.msra.mxu0 0
        %1211 = vmatprep.subr.bf16.mxu0 0
        %1212 = vmatpush2.bf16.msra.mxu0 0
        %1213 = vmatprep.subr.bf16.mxu0 0
        %1214 = vmatpush2.bf16.msra.mxu0 0
        %1215 = vmatprep.subr.bf16.mxu0 0
        %1216 = vmatpush2.bf16.msra.mxu0 0
        %1217 = vmatprep.subr.bf16.mxu0 0
        %1218 = vmatpush2.bf16.msra.mxu0 0
        %1219 = vmatprep.subr.bf16.mxu0 0
        %1220 = vmatpush2.bf16.msra.mxu0 0
        %1221 = vmatprep.mubr.bf16.mxu0 0
        %1222 = vmatmul.mubr.bf16.gmra.mxu0 %v970
        %v1223 = vpop.f32.mrf.mxu0
        %v1224 = vadd.f32 %v1016, %v1223
        %v1225 = vpop.f32.mrf.mxu0
        %v1226 = vpop.f32.mrf.mxu0
        %v1227 = vpop.f32.mrf.mxu0
        %1228 = vdwg.mxu0
        %v1229 = vld [vmem:[%s902] sm:$0x1]
        %v1230 = vld [vmem:[%s911] sm:$0xf]
        %v1231 = vld [vmem:[%s911 + $0x4] sm:$0xf]
        %v1232 = vld [vmem:[%s911 + $0x8] sm:$0xf]
        %v1233 = vld [vmem:[%s911 + $0xc] sm:$0xf]
        %v1234 = vld [vmem:[%s911 + $0x10] sm:$0xf]
        %v1235 = vld [vmem:[%s911 + $0x14] sm:$0xf]
        %v1236 = vld [vmem:[%s911 + $0x18] sm:$0xf]
        %v1237 = vld [vmem:[%s911 + $0x1c] sm:$0xf]
        %v1238 = vld [vmem:[%s911 + $0x20] sm:$0xf]
        %v1239 = vld [vmem:[%s911 + $0x24] sm:$0xf]
        %v1240 = vld [vmem:[%s911 + $0x28] sm:$0xf]
        %v1241 = vld [vmem:[%s911 + $0x2c] sm:$0xf]
        %v1242 = vld [vmem:[%s911 + $0x30] sm:$0xf]
        %v1243 = vld [vmem:[%s911 + $0x34] sm:$0xf]
        %v1244 = vld [vmem:[%s911 + $0x38] sm:$0xf]
        %v1245 = vld [vmem:[%s911 + $0x3c] sm:$0xf]
        %v1246 = vmul.f32 %v1183, 0.17677669
        %v1247 = vpack.c.bf16 %v1246, %v1246
        %v1248 = vpack.c.bf16 %v1185, %v1185
        %v1249 = vpack.c.bf16 %v1224, %v1224
        %v1251 = vlaneseq
        %v1252 = vshrl.u32 %v1251, 7
        %v1253 = vsub.s32 0, %v1252
        %v1254 = vrot.slane %v1229, %v1253
        %vm1256 = vcmask 261120
        %v1258 = vsel %vm1256, %v1247, 0
        %v1261 = vsel %vm1256, %v1248, 0
        %1263 = vmatprep.subr.bf16.mxu0 0
        %1264 = vmatpush1.bf16.xpose.msra.mxu0 0
        %1265 = vmatprep.subr.bf16.mxu0 0
        %1266 = vmatpush1.bf16.xpose.msra.mxu0 0
        %1267 = vmatprep.subr.bf16.mxu0 0
        %1268 = vmatpush1.bf16.xpose.msra.mxu0 0
        %1269 = vmatprep.subr.bf16.mxu0 0
        %1270 = vmatpush1.bf16.xpose.msra.mxu0 0
        %1271 = vmatprep.subr.bf16.mxu0 0
        %1272 = vmatpush1.bf16.xpose.msra.mxu0 0
        %1273 = vmatprep.subr.bf16.mxu0 0
        %1274 = vmatpush1.bf16.xpose.msra.mxu0 0
        %1275 = vmatprep.subr.bf16.mxu0 0
        %1276 = vmatpush1.bf16.xpose.msra.mxu0 0
        %1277 = vmatprep.subr.bf16.mxu0 0
        %1278 = vmatpush1.bf16.xpose.msra.mxu0 %v1261
        %1279 = vmatprep.subr.bf16.mxu0 0
        %1280 = vmatpush2.bf16.xpose.msra.mxu0 0
        %1281 = vmatprep.subr.bf16.mxu0 0
        %1282 = vmatpush2.bf16.xpose.msra.mxu0 0
        %1283 = vmatprep.subr.bf16.mxu0 0
        %1284 = vmatpush2.bf16.xpose.msra.mxu0 0
        %1285 = vmatprep.subr.bf16.mxu0 0
        %1286 = vmatpush2.bf16.xpose.msra.mxu0 0
        %1287 = vmatprep.subr.bf16.mxu0 0
        %1288 = vmatpush2.bf16.xpose.msra.mxu0 0
        %1289 = vmatprep.subr.bf16.mxu0 0
        %1290 = vmatpush2.bf16.xpose.msra.mxu0 0
        %1291 = vmatprep.subr.bf16.mxu0 0
        %1292 = vmatpush2.bf16.xpose.msra.mxu0 0
        %1293 = vmatprep.subr.bf16.mxu0 0
        %1294 = vmatpush2.bf16.xpose.msra.mxu0 0
        %1295 = vmatprep.mubr.bf16.mxu0 0
        %1296 = vmatmul.mubr.bf16.gmra.mxu0 %v1258
        %v1297 = vpop.f32.mrf.mxu0
        %v1298 = vadd.f32 %v1254, %v1297
        %v1299 = vpop.f32.mrf.mxu0
        %v1300 = vpop.f32.mrf.mxu0
        %v1301 = vpop.f32.mrf.mxu0
        %1302 = vdwg.mxu0
        %vm1303 = vcmask 64512
        %v1304 = vsel %vm1303, %v1298, -inf
        %1305 = vmax.xlane.f32.xlu0 %v1304
        %v1306 = vpop.xlane.xlu0 %1305
        %v1307 = vsub.f32 %v1298, %v1306
        %v1308 = vmul.f32 %v1307, 1.442695
        %v1309 = vpow.pop %v1308
        %v1310 = vsel %vm1303, %v1309, 0.0
        %1311 = vadd.xlane.f32.xlu0 %v1310
        %v1312 = vpop.xlane.xlu0 %1311
        %v1313 = vrcp.pop %v1312
        %v1314 = vmul.f32 %v1309, %v1313
        %v1315 = vpack.c.bf16 %v1314, %v1314
        %v1317 = vsel %vm1303, %v1315, 0
        %vm1319 = vcmask 1043456
        %v1321 = vsel %vm1319, %v1249, 0
        %1323 = vmatprep.subr.bf16.mxu0 0
        %1324 = vmatpush1.bf16.msra.mxu0 0
        %1325 = vmatprep.subr.bf16.mxu0 0
        %1326 = vmatpush1.bf16.msra.mxu0 0
        %1327 = vmatprep.subr.bf16.mxu0 0
        %1328 = vmatpush1.bf16.msra.mxu0 0
        %1329 = vmatprep.subr.bf16.mxu0 0
        %1330 = vmatpush1.bf16.msra.mxu0 0
        %1331 = vmatprep.subr.bf16.mxu0 0
        %1332 = vmatpush1.bf16.msra.mxu0 0
        %1333 = vmatprep.subr.bf16.mxu0 0
        %1334 = vmatpush1.bf16.msra.mxu0 0
        %1335 = vmatprep.subr.bf16.mxu0 0
        %1336 = vmatpush1.bf16.msra.mxu0 0
        %1337 = vmatprep.subr.bf16.mxu0 0
        %1338 = vmatpush1.bf16.msra.mxu0 %v1321
        %1339 = vmatprep.subr.bf16.mxu0 0
        %1340 = vmatpush2.bf16.msra.mxu0 0
        %1341 = vmatprep.subr.bf16.mxu0 0
        %1342 = vmatpush2.bf16.msra.mxu0 0
        %1343 = vmatprep.subr.bf16.mxu0 0
        %1344 = vmatpush2.bf16.msra.mxu0 0
        %1345 = vmatprep.subr.bf16.mxu0 0
        %1346 = vmatpush2.bf16.msra.mxu0 0
        %1347 = vmatprep.subr.bf16.mxu0 0
        %1348 = vmatpush2.bf16.msra.mxu0 0
        %1349 = vmatprep.subr.bf16.mxu0 0
        %1350 = vmatpush2.bf16.msra.mxu0 0
        %1351 = vmatprep.subr.bf16.mxu0 0
        %1352 = vmatpush2.bf16.msra.mxu0 0
        %1353 = vmatprep.subr.bf16.mxu0 0
        %1354 = vmatpush2.bf16.msra.mxu0 0
        %1355 = vmatprep.mubr.bf16.mxu0 0
        %1356 = vmatmul.mubr.bf16.gmra.mxu0 %v1317
        %v1357 = vpop.f32.mrf.mxu0
        %v1358 = vadd.f32 0.0, %v1357
        %v1359 = vpop.f32.mrf.mxu0
        %v1360 = vpop.f32.mrf.mxu0
        %v1361 = vpop.f32.mrf.mxu0
        %1362 = vdwg.mxu0
        %v1363 = vpack.c.bf16 %v1358, %v1358
        %1365 = vrot.lane.b32.xlu0 %v1247, 96
        %v1366 = vpop.permute.xlu0 %1365
        %1368 = vrot.lane.b32.xlu0 %v1248, 96
        %v1369 = vpop.permute.xlu0 %1368
        %v1371 = vsel %vm1256, %v1366, 0
        %v1374 = vsel %vm1256, %v1369, 0
        %1376 = vmatprep.subr.bf16.mxu0 0
        %1377 = vmatpush1.bf16.xpose.msra.mxu0 0
        %1378 = vmatprep.subr.bf16.mxu0 0
        %1379 = vmatpush1.bf16.xpose.msra.mxu0 0
        %1380 = vmatprep.subr.bf16.mxu0 0
        %1381 = vmatpush1.bf16.xpose.msra.mxu0 0
        %1382 = vmatprep.subr.bf16.mxu0 0
        %1383 = vmatpush1.bf16.xpose.msra.mxu0 0
        %1384 = vmatprep.subr.bf16.mxu0 0
        %1385 = vmatpush1.bf16.xpose.msra.mxu0 0
        %1386 = vmatprep.subr.bf16.mxu0 0
        %1387 = vmatpush1.bf16.xpose.msra.mxu0 0
        %1388 = vmatprep.subr.bf16.mxu0 0
        %1389 = vmatpush1.bf16.xpose.msra.mxu0 0
        %1390 = vmatprep.subr.bf16.mxu0 0
        %1391 = vmatpush1.bf16.xpose.msra.mxu0 %v1374
        %1392 = vmatprep.subr.bf16.mxu0 0
        %1393 = vmatpush2.bf16.xpose.msra.mxu0 0
        %1394 = vmatprep.subr.bf16.mxu0 0
        %1395 = vmatpush2.bf16.xpose.msra.mxu0 0
        %1396 = vmatprep.subr.bf16.mxu0 0
        %1397 = vmatpush2.bf16.xpose.msra.mxu0 0
        %1398 = vmatprep.subr.bf16.mxu0 0
        %1399 = vmatpush2.bf16.xpose.msra.mxu0 0
        %1400 = vmatprep.subr.bf16.mxu0 0
        %1401 = vmatpush2.bf16.xpose.msra.mxu0 0
        %1402 = vmatprep.subr.bf16.mxu0 0
        %1403 = vmatpush2.bf16.xpose.msra.mxu0 0
        %1404 = vmatprep.subr.bf16.mxu0 0
        %1405 = vmatpush2.bf16.xpose.msra.mxu0 0
        %1406 = vmatprep.subr.bf16.mxu0 0
        %1407 = vmatpush2.bf16.xpose.msra.mxu0 0
        %1408 = vmatprep.mubr.bf16.mxu0 0
        %1409 = vmatmul.mubr.bf16.gmra.mxu0 %v1371
        %v1410 = vpop.f32.mrf.mxu0
        %v1411 = vadd.f32 %v1254, %v1410
        %v1412 = vpop.f32.mrf.mxu0
        %v1413 = vpop.f32.mrf.mxu0
        %v1414 = vpop.f32.mrf.mxu0
        %1415 = vdwg.mxu0
        %v1416 = vsel %vm1303, %v1411, -inf
        %1417 = vmax.xlane.f32.xlu0 %v1416
        %v1418 = vpop.xlane.xlu0 %1417
        %v1419 = vsub.f32 %v1411, %v1418
        %v1420 = vmul.f32 %v1419, 1.442695
        %v1421 = vpow.pop %v1420
        %v1422 = vsel %vm1303, %v1421, 0.0
        %1423 = vadd.xlane.f32.xlu0 %v1422
        %v1424 = vpop.xlane.xlu0 %1423
        %v1425 = vrcp.pop %v1424
        %v1426 = vmul.f32 %v1421, %v1425
        %v1427 = vpack.c.bf16 %v1426, %v1426
        %1429 = vrot.lane.b32.xlu0 %v1249, 96
        %v1430 = vpop.permute.xlu0 %1429
        %v1432 = vsel %vm1303, %v1427, 0
        %v1435 = vsel %vm1319, %v1430, 0
        %1437 = vmatprep.subr.bf16.mxu0 0
        %1438 = vmatpush1.bf16.msra.mxu0 0
        %1439 = vmatprep.subr.bf16.mxu0 0
        %1440 = vmatpush1.bf16.msra.mxu0 0
        %1441 = vmatprep.subr.bf16.mxu0 0
        %1442 = vmatpush1.bf16.msra.mxu0 0
        %1443 = vmatprep.subr.bf16.mxu0 0
        %1444 = vmatpush1.bf16.msra.mxu0 0
        %1445 = vmatprep.subr.bf16.mxu0 0
        %1446 = vmatpush1.bf16.msra.mxu0 0
        %1447 = vmatprep.subr.bf16.mxu0 0
        %1448 = vmatpush1.bf16.msra.mxu0 0
        %1449 = vmatprep.subr.bf16.mxu0 0
        %1450 = vmatpush1.bf16.msra.mxu0 0
        %1451 = vmatprep.subr.bf16.mxu0 0
        %1452 = vmatpush1.bf16.msra.mxu0 %v1435
        %1453 = vmatprep.subr.bf16.mxu0 0
        %1454 = vmatpush2.bf16.msra.mxu0 0
        %1455 = vmatprep.subr.bf16.mxu0 0
        %1456 = vmatpush2.bf16.msra.mxu0 0
        %1457 = vmatprep.subr.bf16.mxu0 0
        %1458 = vmatpush2.bf16.msra.mxu0 0
        %1459 = vmatprep.subr.bf16.mxu0 0
        %1460 = vmatpush2.bf16.msra.mxu0 0
        %1461 = vmatprep.subr.bf16.mxu0 0
        %1462 = vmatpush2.bf16.msra.mxu0 0
        %1463 = vmatprep.subr.bf16.mxu0 0
        %1464 = vmatpush2.bf16.msra.mxu0 0
        %1465 = vmatprep.subr.bf16.mxu0 0
        %1466 = vmatpush2.bf16.msra.mxu0 0
        %1467 = vmatprep.subr.bf16.mxu0 0
        %1468 = vmatpush2.bf16.msra.mxu0 0
        %1469 = vmatprep.mubr.bf16.mxu0 0
        %1470 = vmatmul.mubr.bf16.gmra.mxu0 %v1432
        %v1471 = vpop.f32.mrf.mxu0
        %v1472 = vadd.f32 0.0, %v1471
        %v1473 = vpop.f32.mrf.mxu0
        %v1474 = vpop.f32.mrf.mxu0
        %v1475 = vpop.f32.mrf.mxu0
        %1476 = vdwg.mxu0
        %v1477 = vpack.c.bf16 %v1472, %v1472
        %v1482 = vunpack.c.l.b16 %v1234
        %v1483 = vunpack.c.l.b16 %v1235
        %v1484 = vunpack.c.l.b16 %v1236
        %v1485 = vunpack.c.l.b16 %v1237
        %v1486 = vpack.c.b16 %v1483, %v1482
        %v1487 = vpack.c.b16 %v1485, %v1484
        %v1491 = vsel %vm1256, %v1477, 0
        %1493 = vmatprep.subr.bf16.mxu0 0
        %1494 = vmatpush1.bf16.msra.mxu0 0
        %1495 = vmatprep.subr.bf16.mxu0 0
        %1496 = vmatpush1.bf16.msra.mxu0 0
        %1497 = vmatprep.subr.bf16.mxu0 0
        %1498 = vmatpush1.bf16.msra.mxu0 0
        %1499 = vmatprep.subr.bf16.mxu0 0
        %1500 = vmatpush1.bf16.msra.mxu0 0
        %1501 = vmatprep.subr.bf16.mxu0 0
        %1502 = vmatpush1.bf16.msra.mxu0 0
        %1503 = vmatprep.subr.bf16.mxu0 0
        %1504 = vmatpush1.bf16.msra.mxu0 0
        %1505 = vmatprep.subr.bf16.mxu0 0
        %1506 = vmatpush1.bf16.msra.mxu0 %v1487
        %1507 = vmatprep.subr.bf16.mxu0 0
        %1508 = vmatpush1.bf16.msra.mxu0 %v1486
        %1509 = vmatprep.subr.bf16.mxu0 0
        %1510 = vmatpush2.bf16.msra.mxu0 0
        %1511 = vmatprep.subr.bf16.mxu0 0
        %1512 = vmatpush2.bf16.msra.mxu0 0
        %1513 = vmatprep.subr.bf16.mxu0 0
        %1514 = vmatpush2.bf16.msra.mxu0 0
        %1515 = vmatprep.subr.bf16.mxu0 0
        %1516 = vmatpush2.bf16.msra.mxu0 0
        %1517 = vmatprep.subr.bf16.mxu0 0
        %1518 = vmatpush2.bf16.msra.mxu0 0
        %1519 = vmatprep.subr.bf16.mxu0 0
        %1520 = vmatpush2.bf16.msra.mxu0 0
        %1521 = vmatprep.subr.bf16.mxu0 0
        %1522 = vmatpush2.bf16.msra.mxu0 0
        %1523 = vmatprep.subr.bf16.mxu0 0
        %1524 = vmatpush2.bf16.msra.mxu0 0
        %1525 = vmatprep.mubr.bf16.mxu0 0
        %1526 = vmatmul.mubr.bf16.gmra.mxu0 %v1491
        %v1527 = vpop.f32.mrf.mxu0
        %v1528 = vadd.f32 0.0, %v1527
        %v1529 = vpop.f32.mrf.mxu0
        %v1530 = vpop.f32.mrf.mxu0
        %v1531 = vpop.f32.mrf.mxu0
        %1532 = vdwg.mxu0
        %v1537 = vunpack.c.l.b16 %v1230
        %v1538 = vunpack.c.l.b16 %v1231
        %v1539 = vunpack.c.l.b16 %v1232
        %v1540 = vunpack.c.l.b16 %v1233
        %v1541 = vpack.c.b16 %v1538, %v1537
        %v1542 = vpack.c.b16 %v1540, %v1539
        %v1546 = vsel %vm1256, %v1363, 0
        %1548 = vmatprep.subr.bf16.mxu0 0
        %1549 = vmatpush1.bf16.msra.mxu0 0
        %1550 = vmatprep.subr.bf16.mxu0 0
        %1551 = vmatpush1.bf16.msra.mxu0 0
        %1552 = vmatprep.subr.bf16.mxu0 0
        %1553 = vmatpush1.bf16.msra.mxu0 0
        %1554 = vmatprep.subr.bf16.mxu0 0
        %1555 = vmatpush1.bf16.msra.mxu0 0
        %1556 = vmatprep.subr.bf16.mxu0 0
        %1557 = vmatpush1.bf16.msra.mxu0 0
        %1558 = vmatprep.subr.bf16.mxu0 0
        %1559 = vmatpush1.bf16.msra.mxu0 0
        %1560 = vmatprep.subr.bf16.mxu0 0
        %1561 = vmatpush1.bf16.msra.mxu0 %v1542
        %1562 = vmatprep.subr.bf16.mxu0 0
        %1563 = vmatpush1.bf16.msra.mxu0 %v1541
        %1564 = vmatprep.subr.bf16.mxu0 0
        %1565 = vmatpush2.bf16.msra.mxu0 0
        %1566 = vmatprep.subr.bf16.mxu0 0
        %1567 = vmatpush2.bf16.msra.mxu0 0
        %1568 = vmatprep.subr.bf16.mxu0 0
        %1569 = vmatpush2.bf16.msra.mxu0 0
        %1570 = vmatprep.subr.bf16.mxu0 0
        %1571 = vmatpush2.bf16.msra.mxu0 0
        %1572 = vmatprep.subr.bf16.mxu0 0
        %1573 = vmatpush2.bf16.msra.mxu0 0
        %1574 = vmatprep.subr.bf16.mxu0 0
        %1575 = vmatpush2.bf16.msra.mxu0 0
        %1576 = vmatprep.subr.bf16.mxu0 0
        %1577 = vmatpush2.bf16.msra.mxu0 0
        %1578 = vmatprep.subr.bf16.mxu0 0
        %1579 = vmatpush2.bf16.msra.mxu0 0
        %1580 = vmatprep.mubr.bf16.mxu0 0
        %1581 = vmatmul.mubr.bf16.gmra.mxu0 %v1546
        %v1582 = vpop.f32.mrf.mxu0
        %v1583 = vadd.f32 %v1528, %v1582
        %v1584 = vpop.f32.mrf.mxu0
        %v1585 = vpop.f32.mrf.mxu0
        %v1586 = vpop.f32.mrf.mxu0
        %1587 = vdwg.mxu0
        %1588 = vrot.lane.b32.xlu0 %v1247, 64
        %v1589 = vpop.permute.xlu0 %1588
        %1590 = vrot.lane.b32.xlu0 %v1248, 64
        %v1591 = vpop.permute.xlu0 %1590
        %v1593 = vsel %vm1256, %v1589, 0
        %v1596 = vsel %vm1256, %v1591, 0
        %1598 = vmatprep.subr.bf16.mxu0 0
        %1599 = vmatpush1.bf16.xpose.msra.mxu0 0
        %1600 = vmatprep.subr.bf16.mxu0 0
        %1601 = vmatpush1.bf16.xpose.msra.mxu0 0
        %1602 = vmatprep.subr.bf16.mxu0 0
        %1603 = vmatpush1.bf16.xpose.msra.mxu0 0
        %1604 = vmatprep.subr.bf16.mxu0 0
        %1605 = vmatpush1.bf16.xpose.msra.mxu0 0
        %1606 = vmatprep.subr.bf16.mxu0 0
        %1607 = vmatpush1.bf16.xpose.msra.mxu0 0
        %1608 = vmatprep.subr.bf16.mxu0 0
        %1609 = vmatpush1.bf16.xpose.msra.mxu0 0
        %1610 = vmatprep.subr.bf16.mxu0 0
        %1611 = vmatpush1.bf16.xpose.msra.mxu0 0
        %1612 = vmatprep.subr.bf16.mxu0 0
        %1613 = vmatpush1.bf16.xpose.msra.mxu0 %v1596
        %1614 = vmatprep.subr.bf16.mxu0 0
        %1615 = vmatpush2.bf16.xpose.msra.mxu0 0
        %1616 = vmatprep.subr.bf16.mxu0 0
        %1617 = vmatpush2.bf16.xpose.msra.mxu0 0
        %1618 = vmatprep.subr.bf16.mxu0 0
        %1619 = vmatpush2.bf16.xpose.msra.mxu0 0
        %1620 = vmatprep.subr.bf16.mxu0 0
        %1621 = vmatpush2.bf16.xpose.msra.mxu0 0
        %1622 = vmatprep.subr.bf16.mxu0 0
        %1623 = vmatpush2.bf16.xpose.msra.mxu0 0
        %1624 = vmatprep.subr.bf16.mxu0 0
        %1625 = vmatpush2.bf16.xpose.msra.mxu0 0
        %1626 = vmatprep.subr.bf16.mxu0 0
        %1627 = vmatpush2.bf16.xpose.msra.mxu0 0
        %1628 = vmatprep.subr.bf16.mxu0 0
        %1629 = vmatpush2.bf16.xpose.msra.mxu0 0
        %1630 = vmatprep.mubr.bf16.mxu0 0
        %1631 = vmatmul.mubr.bf16.gmra.mxu0 %v1593
        %v1632 = vpop.f32.mrf.mxu0
        %v1633 = vadd.f32 %v1254, %v1632
        %v1634 = vpop.f32.mrf.mxu0
        %v1635 = vpop.f32.mrf.mxu0
        %v1636 = vpop.f32.mrf.mxu0
        %1637 = vdwg.mxu0
        %v1638 = vsel %vm1303, %v1633, -inf
        %1639 = vmax.xlane.f32.xlu0 %v1638
        %v1640 = vpop.xlane.xlu0 %1639
        %v1641 = vsub.f32 %v1633, %v1640
        %v1642 = vmul.f32 %v1641, 1.442695
        %v1643 = vpow.pop %v1642
        %v1644 = vsel %vm1303, %v1643, 0.0
        %1645 = vadd.xlane.f32.xlu0 %v1644
        %v1646 = vpop.xlane.xlu0 %1645
        %v1647 = vrcp.pop %v1646
        %v1648 = vmul.f32 %v1643, %v1647
        %v1649 = vpack.c.bf16 %v1648, %v1648
        %1650 = vrot.lane.b32.xlu0 %v1249, 64
        %v1651 = vpop.permute.xlu0 %1650
        %v1653 = vsel %vm1303, %v1649, 0
        %v1656 = vsel %vm1319, %v1651, 0
        %1658 = vmatprep.subr.bf16.mxu0 0
        %1659 = vmatpush1.bf16.msra.mxu0 0
        %1660 = vmatprep.subr.bf16.mxu0 0
        %1661 = vmatpush1.bf16.msra.mxu0 0
        %1662 = vmatprep.subr.bf16.mxu0 0
        %1663 = vmatpush1.bf16.msra.mxu0 0
        %1664 = vmatprep.subr.bf16.mxu0 0
        %1665 = vmatpush1.bf16.msra.mxu0 0
        %1666 = vmatprep.subr.bf16.mxu0 0
        %1667 = vmatpush1.bf16.msra.mxu0 0
        %1668 = vmatprep.subr.bf16.mxu0 0
        %1669 = vmatpush1.bf16.msra.mxu0 0
        %1670 = vmatprep.subr.bf16.mxu0 0
        %1671 = vmatpush1.bf16.msra.mxu0 0
        %1672 = vmatprep.subr.bf16.mxu0 0
        %1673 = vmatpush1.bf16.msra.mxu0 %v1656
        %1674 = vmatprep.subr.bf16.mxu0 0
        %1675 = vmatpush2.bf16.msra.mxu0 0
        %1676 = vmatprep.subr.bf16.mxu0 0
        %1677 = vmatpush2.bf16.msra.mxu0 0
        %1678 = vmatprep.subr.bf16.mxu0 0
        %1679 = vmatpush2.bf16.msra.mxu0 0
        %1680 = vmatprep.subr.bf16.mxu0 0
        %1681 = vmatpush2.bf16.msra.mxu0 0
        %1682 = vmatprep.subr.bf16.mxu0 0
        %1683 = vmatpush2.bf16.msra.mxu0 0
        %1684 = vmatprep.subr.bf16.mxu0 0
        %1685 = vmatpush2.bf16.msra.mxu0 0
        %1686 = vmatprep.subr.bf16.mxu0 0
        %1687 = vmatpush2.bf16.msra.mxu0 0
        %1688 = vmatprep.subr.bf16.mxu0 0
        %1689 = vmatpush2.bf16.msra.mxu0 0
        %1690 = vmatprep.mubr.bf16.mxu0 0
        %1691 = vmatmul.mubr.bf16.gmra.mxu0 %v1653
        %v1692 = vpop.f32.mrf.mxu0
        %v1693 = vadd.f32 0.0, %v1692
        %v1694 = vpop.f32.mrf.mxu0
        %v1695 = vpop.f32.mrf.mxu0
        %v1696 = vpop.f32.mrf.mxu0
        %1697 = vdwg.mxu0
        %v1698 = vpack.c.bf16 %v1693, %v1693
        %v1703 = vunpack.c.l.b16 %v1238
        %v1704 = vunpack.c.l.b16 %v1239
        %v1705 = vunpack.c.l.b16 %v1240
        %v1706 = vunpack.c.l.b16 %v1241
        %v1707 = vpack.c.b16 %v1704, %v1703
        %v1708 = vpack.c.b16 %v1706, %v1705
        %v1712 = vsel %vm1256, %v1698, 0
        %1714 = vmatprep.subr.bf16.mxu0 0
        %1715 = vmatpush1.bf16.msra.mxu0 0
        %1716 = vmatprep.subr.bf16.mxu0 0
        %1717 = vmatpush1.bf16.msra.mxu0 0
        %1718 = vmatprep.subr.bf16.mxu0 0
        %1719 = vmatpush1.bf16.msra.mxu0 0
        %1720 = vmatprep.subr.bf16.mxu0 0
        %1721 = vmatpush1.bf16.msra.mxu0 0
        %1722 = vmatprep.subr.bf16.mxu0 0
        %1723 = vmatpush1.bf16.msra.mxu0 0
        %1724 = vmatprep.subr.bf16.mxu0 0
        %1725 = vmatpush1.bf16.msra.mxu0 0
        %1726 = vmatprep.subr.bf16.mxu0 0
        %1727 = vmatpush1.bf16.msra.mxu0 %v1708
        %1728 = vmatprep.subr.bf16.mxu0 0
        %1729 = vmatpush1.bf16.msra.mxu0 %v1707
        %1730 = vmatprep.subr.bf16.mxu0 0
        %1731 = vmatpush2.bf16.msra.mxu0 0
        %1732 = vmatprep.subr.bf16.mxu0 0
        %1733 = vmatpush2.bf16.msra.mxu0 0
        %1734 = vmatprep.subr.bf16.mxu0 0
        %1735 = vmatpush2.bf16.msra.mxu0 0
        %1736 = vmatprep.subr.bf16.mxu0 0
        %1737 = vmatpush2.bf16.msra.mxu0 0
        %1738 = vmatprep.subr.bf16.mxu0 0
        %1739 = vmatpush2.bf16.msra.mxu0 0
        %1740 = vmatprep.subr.bf16.mxu0 0
        %1741 = vmatpush2.bf16.msra.mxu0 0
        %1742 = vmatprep.subr.bf16.mxu0 0
        %1743 = vmatpush2.bf16.msra.mxu0 0
        %1744 = vmatprep.subr.bf16.mxu0 0
        %1745 = vmatpush2.bf16.msra.mxu0 0
        %1746 = vmatprep.mubr.bf16.mxu0 0
        %1747 = vmatmul.mubr.bf16.gmra.mxu0 %v1712
        %v1748 = vpop.f32.mrf.mxu0
        %v1749 = vadd.f32 0.0, %v1748
        %v1750 = vpop.f32.mrf.mxu0
        %v1751 = vpop.f32.mrf.mxu0
        %v1752 = vpop.f32.mrf.mxu0
        %1753 = vdwg.mxu0
        %v1754 = vadd.f32 %v1583, %v1749
        %1755 = vrot.lane.b32.xlu0 %v1247, 32
        %v1756 = vpop.permute.xlu0 %1755
        %1757 = vrot.lane.b32.xlu0 %v1248, 32
        %v1758 = vpop.permute.xlu0 %1757
        %v1760 = vsel %vm1256, %v1756, 0
        %v1763 = vsel %vm1256, %v1758, 0
        %1765 = vmatprep.subr.bf16.mxu0 0
        %1766 = vmatpush1.bf16.xpose.msra.mxu0 0
        %1767 = vmatprep.subr.bf16.mxu0 0
        %1768 = vmatpush1.bf16.xpose.msra.mxu0 0
        %1769 = vmatprep.subr.bf16.mxu0 0
        %1770 = vmatpush1.bf16.xpose.msra.mxu0 0
        %1771 = vmatprep.subr.bf16.mxu0 0
        %1772 = vmatpush1.bf16.xpose.msra.mxu0 0
        %1773 = vmatprep.subr.bf16.mxu0 0
        %1774 = vmatpush1.bf16.xpose.msra.mxu0 0
        %1775 = vmatprep.subr.bf16.mxu0 0
        %1776 = vmatpush1.bf16.xpose.msra.mxu0 0
        %1777 = vmatprep.subr.bf16.mxu0 0
        %1778 = vmatpush1.bf16.xpose.msra.mxu0 0
        %1779 = vmatprep.subr.bf16.mxu0 0
        %1780 = vmatpush1.bf16.xpose.msra.mxu0 %v1763
        %1781 = vmatprep.subr.bf16.mxu0 0
        %1782 = vmatpush2.bf16.xpose.msra.mxu0 0
        %1783 = vmatprep.subr.bf16.mxu0 0
        %1784 = vmatpush2.bf16.xpose.msra.mxu0 0
        %1785 = vmatprep.subr.bf16.mxu0 0
        %1786 = vmatpush2.bf16.xpose.msra.mxu0 0
        %1787 = vmatprep.subr.bf16.mxu0 0
        %1788 = vmatpush2.bf16.xpose.msra.mxu0 0
        %1789 = vmatprep.subr.bf16.mxu0 0
        %1790 = vmatpush2.bf16.xpose.msra.mxu0 0
        %1791 = vmatprep.subr.bf16.mxu0 0
        %1792 = vmatpush2.bf16.xpose.msra.mxu0 0
        %1793 = vmatprep.subr.bf16.mxu0 0
        %1794 = vmatpush2.bf16.xpose.msra.mxu0 0
        %1795 = vmatprep.subr.bf16.mxu0 0
        %1796 = vmatpush2.bf16.xpose.msra.mxu0 0
        %1797 = vmatprep.mubr.bf16.mxu0 0
        %1798 = vmatmul.mubr.bf16.gmra.mxu0 %v1760
        %v1799 = vpop.f32.mrf.mxu0
        %v1800 = vadd.f32 %v1254, %v1799
        %v1801 = vpop.f32.mrf.mxu0
        %v1802 = vpop.f32.mrf.mxu0
        %v1803 = vpop.f32.mrf.mxu0
        %1804 = vdwg.mxu0
        %v1805 = vsel %vm1303, %v1800, -inf
        %1806 = vmax.xlane.f32.xlu0 %v1805
        %v1807 = vpop.xlane.xlu0 %1806
        %v1808 = vsub.f32 %v1800, %v1807
        %v1809 = vmul.f32 %v1808, 1.442695
        %v1810 = vpow.pop %v1809
        %v1811 = vsel %vm1303, %v1810, 0.0
        %1812 = vadd.xlane.f32.xlu0 %v1811
        %v1813 = vpop.xlane.xlu0 %1812
        %v1814 = vrcp.pop %v1813
        %v1815 = vmul.f32 %v1810, %v1814
        %v1816 = vpack.c.bf16 %v1815, %v1815
        %1817 = vrot.lane.b32.xlu0 %v1249, 32
        %v1818 = vpop.permute.xlu0 %1817
        %v1820 = vsel %vm1303, %v1816, 0
        %v1823 = vsel %vm1319, %v1818, 0
        %1825 = vmatprep.subr.bf16.mxu0 0
        %1826 = vmatpush1.bf16.msra.mxu0 0
        %1827 = vmatprep.subr.bf16.mxu0 0
        %1828 = vmatpush1.bf16.msra.mxu0 0
        %1829 = vmatprep.subr.bf16.mxu0 0
        %1830 = vmatpush1.bf16.msra.mxu0 0
        %1831 = vmatprep.subr.bf16.mxu0 0
        %1832 = vmatpush1.bf16.msra.mxu0 0
        %1833 = vmatprep.subr.bf16.mxu0 0
        %1834 = vmatpush1.bf16.msra.mxu0 0
        %1835 = vmatprep.subr.bf16.mxu0 0
        %1836 = vmatpush1.bf16.msra.mxu0 0
        %1837 = vmatprep.subr.bf16.mxu0 0
        %1838 = vmatpush1.bf16.msra.mxu0 0
        %1839 = vmatprep.subr.bf16.mxu0 0
        %1840 = vmatpush1.bf16.msra.mxu0 %v1823
        %1841 = vmatprep.subr.bf16.mxu0 0
        %1842 = vmatpush2.bf16.msra.mxu0 0
        %1843 = vmatprep.subr.bf16.mxu0 0
        %1844 = vmatpush2.bf16.msra.mxu0 0
        %1845 = vmatprep.subr.bf16.mxu0 0
        %1846 = vmatpush2.bf16.msra.mxu0 0
        %1847 = vmatprep.subr.bf16.mxu0 0
        %1848 = vmatpush2.bf16.msra.mxu0 0
        %1849 = vmatprep.subr.bf16.mxu0 0
        %1850 = vmatpush2.bf16.msra.mxu0 0
        %1851 = vmatprep.subr.bf16.mxu0 0
        %1852 = vmatpush2.bf16.msra.mxu0 0
        %1853 = vmatprep.subr.bf16.mxu0 0
        %1854 = vmatpush2.bf16.msra.mxu0 0
        %1855 = vmatprep.subr.bf16.mxu0 0
        %1856 = vmatpush2.bf16.msra.mxu0 0
        %1857 = vmatprep.mubr.bf16.mxu0 0
        %1858 = vmatmul.mubr.bf16.gmra.mxu0 %v1820
        %v1859 = vpop.f32.mrf.mxu0
        %v1860 = vadd.f32 0.0, %v1859
        %v1861 = vpop.f32.mrf.mxu0
        %v1862 = vpop.f32.mrf.mxu0
        %v1863 = vpop.f32.mrf.mxu0
        %1864 = vdwg.mxu0
        %v1865 = vpack.c.bf16 %v1860, %v1860
        %v1870 = vunpack.c.l.b16 %v1242
        %v1871 = vunpack.c.l.b16 %v1243
        %v1872 = vunpack.c.l.b16 %v1244
        %v1873 = vunpack.c.l.b16 %v1245
        %v1874 = vpack.c.b16 %v1871, %v1870
        %v1875 = vpack.c.b16 %v1873, %v1872
        %v1879 = vsel %vm1256, %v1865, 0
        %1881 = vmatprep.subr.bf16.mxu0 0
        %1882 = vmatpush1.bf16.msra.mxu0 0
        %1883 = vmatprep.subr.bf16.mxu0 0
        %1884 = vmatpush1.bf16.msra.mxu0 0
        %1885 = vmatprep.subr.bf16.mxu0 0
        %1886 = vmatpush1.bf16.msra.mxu0 0
        %1887 = vmatprep.subr.bf16.mxu0 0
        %1888 = vmatpush1.bf16.msra.mxu0 0
        %1889 = vmatprep.subr.bf16.mxu0 0
        %1890 = vmatpush1.bf16.msra.mxu0 0
        %1891 = vmatprep.subr.bf16.mxu0 0
        %1892 = vmatpush1.bf16.msra.mxu0 0
        %1893 = vmatprep.subr.bf16.mxu0 0
        %1894 = vmatpush1.bf16.msra.mxu0 %v1875
        %1895 = vmatprep.subr.bf16.mxu0 0
        %1896 = vmatpush1.bf16.msra.mxu0 %v1874
        %1897 = vmatprep.subr.bf16.mxu0 0
        %1898 = vmatpush2.bf16.msra.mxu0 0
        %1899 = vmatprep.subr.bf16.mxu0 0
        %1900 = vmatpush2.bf16.msra.mxu0 0
        %1901 = vmatprep.subr.bf16.mxu0 0
        %1902 = vmatpush2.bf16.msra.mxu0 0
        %1903 = vmatprep.subr.bf16.mxu0 0
        %1904 = vmatpush2.bf16.msra.mxu0 0
        %1905 = vmatprep.subr.bf16.mxu0 0
        %1906 = vmatpush2.bf16.msra.mxu0 0
        %1907 = vmatprep.subr.bf16.mxu0 0
        %1908 = vmatpush2.bf16.msra.mxu0 0
        %1909 = vmatprep.subr.bf16.mxu0 0
        %1910 = vmatpush2.bf16.msra.mxu0 0
        %1911 = vmatprep.subr.bf16.mxu0 0
        %1912 = vmatpush2.bf16.msra.mxu0 0
        %1913 = vmatprep.mubr.bf16.mxu0 0
        %1914 = vmatmul.mubr.bf16.gmra.mxu0 %v1879
        %v1915 = vpop.f32.mrf.mxu0
        %v1916 = vadd.f32 0.0, %v1915
        %v1917 = vpop.f32.mrf.mxu0
        %v1918 = vpop.f32.mrf.mxu0
        %v1919 = vpop.f32.mrf.mxu0
        %1920 = vdwg.mxu0
        %v1921 = vadd.f32 %v1754, %v1916
        %v1922 = vld [vmem:[%s914] sm:$0x1]
        %v1924 = vlaneseq
        %v1925 = vshrl.u32 %v1924, 7
        %v1926 = vsub.s32 0, %v1925
        %v1927 = vrot.slane %v1922, %v1926
        %v1929 = vadd.f32 %v1921, %v1927
        %v1930 = vadd.f32 %v1929, %v969
        %v1931 = vld [vmem:[%s917] sm:$0x1]
        %v1932 = vld [vmem:[%s920] sm:$0x1]
        %1933 = vadd.xlane.f32.xlu0 %v1930
        %v1934 = vpop.xlane.xlu0 %1933
        %v1935 = vrcp.pop 128.0
        %v1936 = vmul.f32 %v1934, %v1935
        %v1937 = vsub.f32 %v1930, %v1936
        %v1938 = vmul.f32 %v1937, %v1937
        %1939 = vadd.xlane.f32.xlu0 %v1938
        %v1940 = vpop.xlane.xlu0 %1939
        %v1941 = vmul.f32 %v1940, %v1935
        %v1942 = vadd.f32 %v1941, 1e-12
        %v1943 = vrsqrt.pop %v1942
        %v1944 = vmul.f32 %v1937, %v1943
        %v1946 = vlaneseq
        %v1947 = vshrl.u32 %v1946, 7
        %v1948 = vsub.s32 0, %v1947
        %v1949 = vrot.slane %v1931, %v1948
        %v1951 = vmul.f32 %v1944, %v1949
        %v1953 = vlaneseq
        %v1954 = vshrl.u32 %v1953, 7
        %v1955 = vsub.s32 0, %v1954
        %v1956 = vrot.slane %v1932, %v1955
        %v1958 = vadd.f32 %v1951, %v1956
        %v1959 = vpack.c.bf16 %v1958, %v1958
        %v1960 = vld [vmem:[%s775] sm:$0xff]
        %v1961 = vld [vmem:[%s775 + $0x8] sm:$0xff]
        %v1962 = vld [vmem:[%s775 + $0x10] sm:$0xff]
        %v1963 = vld [vmem:[%s775 + $0x18] sm:$0xff]
        %v1964 = vld [vmem:[%s775 + $0x20] sm:$0xff]
        %v1965 = vld [vmem:[%s775 + $0x28] sm:$0xff]
        %v1966 = vld [vmem:[%s775 + $0x30] sm:$0xff]
        %v1967 = vld [vmem:[%s775 + $0x38] sm:$0xff]
        %v1968 = vld [vmem:[%s775 + $0x40] sm:$0xff]
        %v1969 = vld [vmem:[%s775 + $0x48] sm:$0xff]
        %v1970 = vld [vmem:[%s775 + $0x50] sm:$0xff]
        %v1971 = vld [vmem:[%s775 + $0x58] sm:$0xff]
        %v1972 = vld [vmem:[%s775 + $0x60] sm:$0xff]
        %v1973 = vld [vmem:[%s775 + $0x68] sm:$0xff]
        %v1974 = vld [vmem:[%s775 + $0x70] sm:$0xff]
        %v1975 = vld [vmem:[%s775 + $0x78] sm:$0xff]
        %v1976 = vld [vmem:[%s775 + $0x80] sm:$0xff]
        %v1977 = vld [vmem:[%s775 + $0x88] sm:$0xff]
        %v1978 = vld [vmem:[%s775 + $0x90] sm:$0xff]
        %v1979 = vld [vmem:[%s775 + $0x98] sm:$0xff]
        %v1980 = vld [vmem:[%s775 + $0xa0] sm:$0xff]
        %v1981 = vld [vmem:[%s775 + $0xa8] sm:$0xff]
        %v1982 = vld [vmem:[%s775 + $0xb0] sm:$0xff]
        %v1983 = vld [vmem:[%s775 + $0xb8] sm:$0xff]
        %v1984 = vld [vmem:[%s775 + $0xc0] sm:$0xff]
        %v1985 = vld [vmem:[%s775 + $0xc8] sm:$0xff]
        %v1986 = vld [vmem:[%s775 + $0xd0] sm:$0xff]
        %v1987 = vld [vmem:[%s775 + $0xd8] sm:$0xff]
        %v1988 = vld [vmem:[%s775 + $0xe0] sm:$0xff]
        %v1989 = vld [vmem:[%s775 + $0xe8] sm:$0xff]
        %v1990 = vld [vmem:[%s775 + $0xf0] sm:$0xff]
        %v1991 = vld [vmem:[%s775 + $0xf8] sm:$0xff]
        %v1992 = vld [vmem:[%s924] sm:$0xf]
        %v1994 = vlaneseq
        %v1995 = vshrl.u32 %v1994, 7
        %v1996 = vsub.s32 0, %v1995
        %v1997 = vrot.slane %v1992, %v1996
        %v1998 = vlaneseq
        %v1999 = vshrl.u32 %v1998, 7
        %v2000 = vsub.s32 1, %v1999
        %v2001 = vrot.slane %v1992, %v2000
        %v2002 = vlaneseq
        %v2003 = vshrl.u32 %v2002, 7
        %v2004 = vsub.s32 2, %v2003
        %v2005 = vrot.slane %v1992, %v2004
        %v2006 = vlaneseq
        %v2007 = vshrl.u32 %v2006, 7
        %v2008 = vsub.s32 3, %v2007
        %v2009 = vrot.slane %v1992, %v2008
        %v2046 = vunpack.c.l.b16 %v1960
        %v2047 = vunpack.c.h.b16 %v1960
        %v2048 = vunpack.c.l.b16 %v1961
        %v2049 = vunpack.c.h.b16 %v1961
        %v2050 = vunpack.c.l.b16 %v1962
        %v2051 = vunpack.c.h.b16 %v1962
        %v2052 = vunpack.c.l.b16 %v1963
        %v2053 = vunpack.c.h.b16 %v1963
        %v2054 = vunpack.c.l.b16 %v1964
        %v2055 = vunpack.c.h.b16 %v1964
        %v2056 = vunpack.c.l.b16 %v1965
        %v2057 = vunpack.c.h.b16 %v1965
        %v2058 = vunpack.c.l.b16 %v1966
        %v2059 = vunpack.c.h.b16 %v1966
        %v2060 = vunpack.c.l.b16 %v1967
        %v2061 = vunpack.c.h.b16 %v1967
        %v2062 = vunpack.c.l.b16 %v1968
        %v2063 = vunpack.c.h.b16 %v1968
        %v2064 = vunpack.c.l.b16 %v1969
        %v2065 = vunpack.c.h.b16 %v1969
        %v2066 = vunpack.c.l.b16 %v1970
        %v2067 = vunpack.c.h.b16 %v1970
        %v2068 = vunpack.c.l.b16 %v1971
        %v2069 = vunpack.c.h.b16 %v1971
        %v2070 = vunpack.c.l.b16 %v1972
        %v2071 = vunpack.c.h.b16 %v1972
        %v2072 = vunpack.c.l.b16 %v1973
        %v2073 = vunpack.c.h.b16 %v1973
        %v2074 = vunpack.c.l.b16 %v1974
        %v2075 = vunpack.c.h.b16 %v1974
        %v2076 = vunpack.c.l.b16 %v1975
        %v2077 = vunpack.c.h.b16 %v1975
        %v2078 = vunpack.c.l.b16 %v1976
        %v2079 = vunpack.c.h.b16 %v1976
        %v2080 = vunpack.c.l.b16 %v1977
        %v2081 = vunpack.c.h.b16 %v1977
        %v2082 = vunpack.c.l.b16 %v1978
        %v2083 = vunpack.c.h.b16 %v1978
        %v2084 = vunpack.c.l.b16 %v1979
        %v2085 = vunpack.c.h.b16 %v1979
        %v2086 = vunpack.c.l.b16 %v1980
        %v2087 = vunpack.c.h.b16 %v1980
        %v2088 = vunpack.c.l.b16 %v1981
        %v2089 = vunpack.c.h.b16 %v1981
        %v2090 = vunpack.c.l.b16 %v1982
        %v2091 = vunpack.c.h.b16 %v1982
        %v2092 = vunpack.c.l.b16 %v1983
        %v2093 = vunpack.c.h.b16 %v1983
        %v2094 = vunpack.c.l.b16 %v1984
        %v2095 = vunpack.c.h.b16 %v1984
        %v2096 = vunpack.c.l.b16 %v1985
        %v2097 = vunpack.c.h.b16 %v1985
        %v2098 = vunpack.c.l.b16 %v1986
        %v2099 = vunpack.c.h.b16 %v1986
        %v2100 = vunpack.c.l.b16 %v1987
        %v2101 = vunpack.c.h.b16 %v1987
        %v2102 = vunpack.c.l.b16 %v1988
        %v2103 = vunpack.c.h.b16 %v1988
        %v2104 = vunpack.c.l.b16 %v1989
        %v2105 = vunpack.c.h.b16 %v1989
        %v2106 = vunpack.c.l.b16 %v1990
        %v2107 = vunpack.c.h.b16 %v1990
        %v2108 = vunpack.c.l.b16 %v1991
        %v2109 = vunpack.c.h.b16 %v1991
        %v2110 = vpack.c.b16 %v2050, %v2046
        %v2111 = vpack.c.b16 %v2051, %v2047
        %v2112 = vpack.c.b16 %v2052, %v2048
        %v2113 = vpack.c.b16 %v2053, %v2049
        %v2114 = vpack.c.b16 %v2058, %v2054
        %v2115 = vpack.c.b16 %v2059, %v2055
        %v2116 = vpack.c.b16 %v2060, %v2056
        %v2117 = vpack.c.b16 %v2061, %v2057
        %v2118 = vpack.c.b16 %v2066, %v2062
        %v2119 = vpack.c.b16 %v2067, %v2063
        %v2120 = vpack.c.b16 %v2068, %v2064
        %v2121 = vpack.c.b16 %v2069, %v2065
        %v2122 = vpack.c.b16 %v2074, %v2070
        %v2123 = vpack.c.b16 %v2075, %v2071
        %v2124 = vpack.c.b16 %v2076, %v2072
        %v2125 = vpack.c.b16 %v2077, %v2073
        %v2126 = vpack.c.b16 %v2082, %v2078
        %v2127 = vpack.c.b16 %v2083, %v2079
        %v2128 = vpack.c.b16 %v2084, %v2080
        %v2129 = vpack.c.b16 %v2085, %v2081
        %v2130 = vpack.c.b16 %v2090, %v2086
        %v2131 = vpack.c.b16 %v2091, %v2087
        %v2132 = vpack.c.b16 %v2092, %v2088
        %v2133 = vpack.c.b16 %v2093, %v2089
        %v2134 = vpack.c.b16 %v2098, %v2094
        %v2135 = vpack.c.b16 %v2099, %v2095
        %v2136 = vpack.c.b16 %v2100, %v2096
        %v2137 = vpack.c.b16 %v2101, %v2097
        %v2138 = vpack.c.b16 %v2106, %v2102
        %v2139 = vpack.c.b16 %v2107, %v2103
        %v2140 = vpack.c.b16 %v2108, %v2104
        %v2141 = vpack.c.b16 %v2109, %v2105
        %2174 = vmatprep.subr.bf16.mxu0 %v2139
        %2175 = vmatpush1.bf16.msra.mxu0 %v2138
        %2176 = vmatprep.subr.bf16.mxu0 %v2135
        %2177 = vmatpush1.bf16.msra.mxu0 %v2134
        %2178 = vmatprep.subr.bf16.mxu0 %v2131
        %2179 = vmatpush1.bf16.msra.mxu0 %v2130
        %2180 = vmatprep.subr.bf16.mxu0 %v2127
        %2181 = vmatpush1.bf16.msra.mxu0 %v2126
        %2182 = vmatprep.subr.bf16.mxu0 %v2123
        %2183 = vmatpush1.bf16.msra.mxu0 %v2122
        %2184 = vmatprep.subr.bf16.mxu0 %v2119
        %2185 = vmatpush1.bf16.msra.mxu0 %v2118
        %2186 = vmatprep.subr.bf16.mxu0 %v2115
        %2187 = vmatpush1.bf16.msra.mxu0 %v2114
        %2188 = vmatprep.subr.bf16.mxu0 %v2111
        %2189 = vmatpush1.bf16.msra.mxu0 %v2110
        %2190 = vmatprep.subr.bf16.mxu0 0
        %2191 = vmatpush2.bf16.msra.mxu0 0
        %2192 = vmatprep.subr.bf16.mxu0 0
        %2193 = vmatpush2.bf16.msra.mxu0 0
        %2194 = vmatprep.subr.bf16.mxu0 0
        %2195 = vmatpush2.bf16.msra.mxu0 0
        %2196 = vmatprep.subr.bf16.mxu0 0
        %2197 = vmatpush2.bf16.msra.mxu0 0
        %2198 = vmatprep.subr.bf16.mxu0 0
        %2199 = vmatpush2.bf16.msra.mxu0 0
        %2200 = vmatprep.subr.bf16.mxu0 0
        %2201 = vmatpush2.bf16.msra.mxu0 0
        %2202 = vmatprep.subr.bf16.mxu0 0
        %2203 = vmatpush2.bf16.msra.mxu0 0
        %2204 = vmatprep.subr.bf16.mxu0 0
        %2205 = vmatpush2.bf16.msra.mxu0 0
        %2206 = vmatprep.mubr.bf16.mxu0 0
        %2207 = vmatmul.mubr.bf16.gmra.mxu0 %v1959
        %v2208 = vpop.f32.mrf.mxu0
        %v2209 = vadd.f32 %v1997, %v2208
        %v2210 = vpop.f32.mrf.mxu0
        %v2211 = vadd.f32 %v2001, %v2210
        %v2212 = vpop.f32.mrf.mxu0
        %v2213 = vpop.f32.mrf.mxu0
        %2214 = vdwg.mxu0
        %2215 = vmatprep.subr.bf16.mxu0 %v2141
        %2216 = vmatpush1.bf16.msra.mxu0 %v2140
        %2217 = vmatprep.subr.bf16.mxu0 %v2137
        %2218 = vmatpush1.bf16.msra.mxu0 %v2136
        %2219 = vmatprep.subr.bf16.mxu0 %v2133
        %2220 = vmatpush1.bf16.msra.mxu0 %v2132
        %2221 = vmatprep.subr.bf16.mxu0 %v2129
        %2222 = vmatpush1.bf16.msra.mxu0 %v2128
        %2223 = vmatprep.subr.bf16.mxu0 %v2125
        %2224 = vmatpush1.bf16.msra.mxu0 %v2124
        %2225 = vmatprep.subr.bf16.mxu0 %v2121
        %2226 = vmatpush1.bf16.msra.mxu0 %v2120
        %2227 = vmatprep.subr.bf16.mxu0 %v2117
        %2228 = vmatpush1.bf16.msra.mxu0 %v2116
        %2229 = vmatprep.subr.bf16.mxu0 %v2113
        %2230 = vmatpush1.bf16.msra.mxu0 %v2112
        %2231 = vmatprep.subr.bf16.mxu0 0
        %2232 = vmatpush2.bf16.msra.mxu0 0
        %2233 = vmatprep.subr.bf16.mxu0 0
        %2234 = vmatpush2.bf16.msra.mxu0 0
        %2235 = vmatprep.subr.bf16.mxu0 0
        %2236 = vmatpush2.bf16.msra.mxu0 0
        %2237 = vmatprep.subr.bf16.mxu0 0
        %2238 = vmatpush2.bf16.msra.mxu0 0
        %2239 = vmatprep.subr.bf16.mxu0 0
        %2240 = vmatpush2.bf16.msra.mxu0 0
        %2241 = vmatprep.subr.bf16.mxu0 0
        %2242 = vmatpush2.bf16.msra.mxu0 0
        %2243 = vmatprep.subr.bf16.mxu0 0
        %2244 = vmatpush2.bf16.msra.mxu0 0
        %2245 = vmatprep.subr.bf16.mxu0 0
        %2246 = vmatpush2.bf16.msra.mxu0 0
        %2247 = vmatprep.mubr.bf16.mxu0 0
        %2248 = vmatmul.mubr.bf16.gmra.mxu0 %v1959
        %v2249 = vpop.f32.mrf.mxu0
        %v2250 = vadd.f32 %v2005, %v2249
        %v2251 = vpop.f32.mrf.mxu0
        %v2252 = vadd.f32 %v2009, %v2251
        %v2253 = vpop.f32.mrf.mxu0
        %v2254 = vpop.f32.mrf.mxu0
        %2255 = vdwg.mxu0
        %v2256 = vmul.f32 %v2209, 0.5
        %v2257 = vmul.f32 %v2211, 0.5
        %v2258 = vmul.f32 %v2250, 0.5
        %v2259 = vmul.f32 %v2252, 0.5
        %v2260 = vmul.f32 %v2209, 0.044715
        %v2261 = vmul.f32 %v2211, 0.044715
        %v2262 = vmul.f32 %v2250, 0.044715
        %v2263 = vmul.f32 %v2252, 0.044715
        %v2264 = vmul.f32 %v2260, %v2209
        %v2265 = vmul.f32 %v2261, %v2211
        %v2266 = vmul.f32 %v2262, %v2250
        %v2267 = vmul.f32 %v2263, %v2252
        %v2268 = vmul.f32 %v2264, %v2209
        %v2269 = vmul.f32 %v2265, %v2211
        %v2270 = vmul.f32 %v2266, %v2250
        %v2271 = vmul.f32 %v2267, %v2252
        %v2272 = vadd.f32 %v2209, %v2268
        %v2273 = vadd.f32 %v2211, %v2269
        %v2274 = vadd.f32 %v2250, %v2270
        %v2275 = vadd.f32 %v2252, %v2271
        %v2276 = vmul.f32 %v2272, 0.7978846
        %v2277 = vmul.f32 %v2273, 0.7978846
        %v2278 = vmul.f32 %v2274, 0.7978846
        %v2279 = vmul.f32 %v2275, 0.7978846
        %v2280 = vtanh.pop %v2276
        %v2281 = vtanh.pop %v2277
        %v2282 = vtanh.pop %v2278
        %v2283 = vtanh.pop %v2279
        %v2284 = vadd.f32 %v2280, 1.0
        %v2285 = vadd.f32 %v2281, 1.0
        %v2286 = vadd.f32 %v2282, 1.0
        %v2287 = vadd.f32 %v2283, 1.0
        %v2288 = vmul.f32 %v2256, %v2284
        %v2289 = vmul.f32 %v2257, %v2285
        %v2290 = vmul.f32 %v2258, %v2286
        %v2291 = vmul.f32 %v2259, %v2287
        %v2292 = vpack.c.bf16 %v2288, %v2288
        %v2293 = vpack.c.bf16 %v2289, %v2289
        %v2294 = vpack.c.bf16 %v2290, %v2290
        %v2295 = vpack.c.bf16 %v2291, %v2291
        %v2296 = vld [vmem:[%s784] sm:$0xf]
        %v2297 = vld [vmem:[%s784 + $0x4] sm:$0xf]
        %v2298 = vld [vmem:[%s784 + $0x8] sm:$0xf]
        %v2299 = vld [vmem:[%s784 + $0xc] sm:$0xf]
        %v2300 = vld [vmem:[%s784 + $0x10] sm:$0xf]
        %v2301 = vld [vmem:[%s784 + $0x14] sm:$0xf]
        %v2302 = vld [vmem:[%s784 + $0x18] sm:$0xf]
        %v2303 = vld [vmem:[%s784 + $0x1c] sm:$0xf]
        %v2304 = vld [vmem:[%s784 + $0x20] sm:$0xf]
        %v2305 = vld [vmem:[%s784 + $0x24] sm:$0xf]
        %v2306 = vld [vmem:[%s784 + $0x28] sm:$0xf]
        %v2307 = vld [vmem:[%s784 + $0x2c] sm:$0xf]
        %v2308 = vld [vmem:[%s784 + $0x30] sm:$0xf]
        %v2309 = vld [vmem:[%s784 + $0x34] sm:$0xf]
        %v2310 = vld [vmem:[%s784 + $0x38] sm:$0xf]
        %v2311 = vld [vmem:[%s784 + $0x3c] sm:$0xf]
        %v2312 = vld [vmem:[%s784 + $0x40] sm:$0xf]
        %v2313 = vld [vmem:[%s784 + $0x44] sm:$0xf]
        %v2314 = vld [vmem:[%s784 + $0x48] sm:$0xf]
        %v2315 = vld [vmem:[%s784 + $0x4c] sm:$0xf]
        %v2316 = vld [vmem:[%s784 + $0x50] sm:$0xf]
        %v2317 = vld [vmem:[%s784 + $0x54] sm:$0xf]
        %v2318 = vld [vmem:[%s784 + $0x58] sm:$0xf]
        %v2319 = vld [vmem:[%s784 + $0x5c] sm:$0xf]
        %v2320 = vld [vmem:[%s784 + $0x60] sm:$0xf]
        %v2321 = vld [vmem:[%s784 + $0x64] sm:$0xf]
        %v2322 = vld [vmem:[%s784 + $0x68] sm:$0xf]
        %v2323 = vld [vmem:[%s784 + $0x6c] sm:$0xf]
        %v2324 = vld [vmem:[%s784 + $0x70] sm:$0xf]
        %v2325 = vld [vmem:[%s784 + $0x74] sm:$0xf]
        %v2326 = vld [vmem:[%s784 + $0x78] sm:$0xf]
        %v2327 = vld [vmem:[%s784 + $0x7c] sm:$0xf]
        %v2328 = vld [vmem:[%s784 + $0x80] sm:$0xf]
        %v2329 = vld [vmem:[%s784 + $0x84] sm:$0xf]
        %v2330 = vld [vmem:[%s784 + $0x88] sm:$0xf]
        %v2331 = vld [vmem:[%s784 + $0x8c] sm:$0xf]
        %v2332 = vld [vmem:[%s784 + $0x90] sm:$0xf]
        %v2333 = vld [vmem:[%s784 + $0x94] sm:$0xf]
        %v2334 = vld [vmem:[%s784 + $0x98] sm:$0xf]
        %v2335 = vld [vmem:[%s784 + $0x9c] sm:$0xf]
        %v2336 = vld [vmem:[%s784 + $0xa0] sm:$0xf]
        %v2337 = vld [vmem:[%s784 + $0xa4] sm:$0xf]
        %v2338 = vld [vmem:[%s784 + $0xa8] sm:$0xf]
        %v2339 = vld [vmem:[%s784 + $0xac] sm:$0xf]
        %v2340 = vld [vmem:[%s784 + $0xb0] sm:$0xf]
        %v2341 = vld [vmem:[%s784 + $0xb4] sm:$0xf]
        %v2342 = vld [vmem:[%s784 + $0xb8] sm:$0xf]
        %v2343 = vld [vmem:[%s784 + $0xbc] sm:$0xf]
        %v2344 = vld [vmem:[%s784 + $0xc0] sm:$0xf]
        %v2345 = vld [vmem:[%s784 + $0xc4] sm:$0xf]
        %v2346 = vld [vmem:[%s784 + $0xc8] sm:$0xf]
        %v2347 = vld [vmem:[%s784 + $0xcc] sm:$0xf]
        %v2348 = vld [vmem:[%s784 + $0xd0] sm:$0xf]
        %v2349 = vld [vmem:[%s784 + $0xd4] sm:$0xf]
        %v2350 = vld [vmem:[%s784 + $0xd8] sm:$0xf]
        %v2351 = vld [vmem:[%s784 + $0xdc] sm:$0xf]
        %v2352 = vld [vmem:[%s784 + $0xe0] sm:$0xf]
        %v2353 = vld [vmem:[%s784 + $0xe4] sm:$0xf]
        %v2354 = vld [vmem:[%s784 + $0xe8] sm:$0xf]
        %v2355 = vld [vmem:[%s784 + $0xec] sm:$0xf]
        %v2356 = vld [vmem:[%s784 + $0xf0] sm:$0xf]
        %v2357 = vld [vmem:[%s784 + $0xf4] sm:$0xf]
        %v2358 = vld [vmem:[%s784 + $0xf8] sm:$0xf]
        %v2359 = vld [vmem:[%s784 + $0xfc] sm:$0xf]
        %v2360 = vld [vmem:[%s927] sm:$0x1]
        %v2362 = vlaneseq
        %v2363 = vshrl.u32 %v2362, 7
        %v2364 = vsub.s32 0, %v2363
        %v2365 = vrot.slane %v2360, %v2364
        %v2431 = vunpack.c.l.b16 %v2296
        %v2432 = vunpack.c.l.b16 %v2297
        %v2433 = vunpack.c.l.b16 %v2298
        %v2434 = vunpack.c.l.b16 %v2299
        %v2435 = vunpack.c.l.b16 %v2300
        %v2436 = vunpack.c.l.b16 %v2301
        %v2437 = vunpack.c.l.b16 %v2302
        %v2438 = vunpack.c.l.b16 %v2303
        %v2439 = vunpack.c.l.b16 %v2304
        %v2440 = vunpack.c.l.b16 %v2305
        %v2441 = vunpack.c.l.b16 %v2306
        %v2442 = vunpack.c.l.b16 %v2307
        %v2443 = vunpack.c.l.b16 %v2308
        %v2444 = vunpack.c.l.b16 %v2309
        %v2445 = vunpack.c.l.b16 %v2310
        %v2446 = vunpack.c.l.b16 %v2311
        %v2447 = vunpack.c.l.b16 %v2312
        %v2448 = vunpack.c.l.b16 %v2313
        %v2449 = vunpack.c.l.b16 %v2314
        %v2450 = vunpack.c.l.b16 %v2315
        %v2451 = vunpack.c.l.b16 %v2316
        %v2452 = vunpack.c.l.b16 %v2317
        %v2453 = vunpack.c.l.b16 %v2318
        %v2454 = vunpack.c.l.b16 %v2319
        %v2455 = vunpack.c.l.b16 %v2320
        %v2456 = vunpack.c.l.b16 %v2321
        %v2457 = vunpack.c.l.b16 %v2322
        %v2458 = vunpack.c.l.b16 %v2323
        %v2459 = vunpack.c.l.b16 %v2324
        %v2460 = vunpack.c.l.b16 %v2325
        %v2461 = vunpack.c.l.b16 %v2326
        %v2462 = vunpack.c.l.b16 %v2327
        %v2463 = vunpack.c.l.b16 %v2328
        %v2464 = vunpack.c.l.b16 %v2329
        %v2465 = vunpack.c.l.b16 %v2330
        %v2466 = vunpack.c.l.b16 %v2331
        %v2467 = vunpack.c.l.b16 %v2332
        %v2468 = vunpack.c.l.b16 %v2333
        %v2469 = vunpack.c.l.b16 %v2334
        %v2470 = vunpack.c.l.b16 %v2335
        %v2471 = vunpack.c.l.b16 %v2336
        %v2472 = vunpack.c.l.b16 %v2337
        %v2473 = vunpack.c.l.b16 %v2338
        %v2474 = vunpack.c.l.b16 %v2339
        %v2475 = vunpack.c.l.b16 %v2340
        %v2476 = vunpack.c.l.b16 %v2341
        %v2477 = vunpack.c.l.b16 %v2342
        %v2478 = vunpack.c.l.b16 %v2343
        %v2479 = vunpack.c.l.b16 %v2344
        %v2480 = vunpack.c.l.b16 %v2345
        %v2481 = vunpack.c.l.b16 %v2346
        %v2482 = vunpack.c.l.b16 %v2347
        %v2483 = vunpack.c.l.b16 %v2348
        %v2484 = vunpack.c.l.b16 %v2349
        %v2485 = vunpack.c.l.b16 %v2350
        %v2486 = vunpack.c.l.b16 %v2351
        %v2487 = vunpack.c.l.b16 %v2352
        %v2488 = vunpack.c.l.b16 %v2353
        %v2489 = vunpack.c.l.b16 %v2354
        %v2490 = vunpack.c.l.b16 %v2355
        %v2491 = vunpack.c.l.b16 %v2356
        %v2492 = vunpack.c.l.b16 %v2357
        %v2493 = vunpack.c.l.b16 %v2358
        %v2494 = vunpack.c.l.b16 %v2359
        %v2495 = vpack.c.b16 %v2432, %v2431
        %v2496 = vpack.c.b16 %v2434, %v2433
        %v2497 = vpack.c.b16 %v2436, %v2435
        %v2498 = vpack.c.b16 %v2438, %v2437
        %v2499 = vpack.c.b16 %v2440, %v2439
        %v2500 = vpack.c.b16 %v2442, %v2441
        %v2501 = vpack.c.b16 %v2444, %v2443
        %v2502 = vpack.c.b16 %v2446, %v2445
        %v2503 = vpack.c.b16 %v2448, %v2447
        %v2504 = vpack.c.b16 %v2450, %v2449
        %v2505 = vpack.c.b16 %v2452, %v2451
        %v2506 = vpack.c.b16 %v2454, %v2453
        %v2507 = vpack.c.b16 %v2456, %v2455
        %v2508 = vpack.c.b16 %v2458, %v2457
        %v2509 = vpack.c.b16 %v2460, %v2459
        %v2510 = vpack.c.b16 %v2462, %v2461
        %v2511 = vpack.c.b16 %v2464, %v2463
        %v2512 = vpack.c.b16 %v2466, %v2465
        %v2513 = vpack.c.b16 %v2468, %v2467
        %v2514 = vpack.c.b16 %v2470, %v2469
        %v2515 = vpack.c.b16 %v2472, %v2471
        %v2516 = vpack.c.b16 %v2474, %v2473
        %v2517 = vpack.c.b16 %v2476, %v2475
        %v2518 = vpack.c.b16 %v2478, %v2477
        %v2519 = vpack.c.b16 %v2480, %v2479
        %v2520 = vpack.c.b16 %v2482, %v2481
        %v2521 = vpack.c.b16 %v2484, %v2483
        %v2522 = vpack.c.b16 %v2486, %v2485
        %v2523 = vpack.c.b16 %v2488, %v2487
        %v2524 = vpack.c.b16 %v2490, %v2489
        %v2525 = vpack.c.b16 %v2492, %v2491
        %v2526 = vpack.c.b16 %v2494, %v2493
        %2559 = vmatprep.subr.bf16.mxu0 0
        %2560 = vmatpush1.bf16.msra.mxu0 %v2502
        %2561 = vmatprep.subr.bf16.mxu0 0
        %2562 = vmatpush1.bf16.msra.mxu0 %v2501
        %2563 = vmatprep.subr.bf16.mxu0 0
        %2564 = vmatpush1.bf16.msra.mxu0 %v2500
        %2565 = vmatprep.subr.bf16.mxu0 0
        %2566 = vmatpush1.bf16.msra.mxu0 %v2499
        %2567 = vmatprep.subr.bf16.mxu0 0
        %2568 = vmatpush1.bf16.msra.mxu0 %v2498
        %2569 = vmatprep.subr.bf16.mxu0 0
        %2570 = vmatpush1.bf16.msra.mxu0 %v2497
        %2571 = vmatprep.subr.bf16.mxu0 0
        %2572 = vmatpush1.bf16.msra.mxu0 %v2496
        %2573 = vmatprep.subr.bf16.mxu0 0
        %2574 = vmatpush1.bf16.msra.mxu0 %v2495
        %2575 = vmatprep.subr.bf16.mxu0 0
        %2576 = vmatpush2.bf16.msra.mxu0 %v2510
        %2577 = vmatprep.subr.bf16.mxu0 0
        %2578 = vmatpush2.bf16.msra.mxu0 %v2509
        %2579 = vmatprep.subr.bf16.mxu0 0
        %2580 = vmatpush2.bf16.msra.mxu0 %v2508
        %2581 = vmatprep.subr.bf16.mxu0 0
        %2582 = vmatpush2.bf16.msra.mxu0 %v2507
        %2583 = vmatprep.subr.bf16.mxu0 0
        %2584 = vmatpush2.bf16.msra.mxu0 %v2506
        %2585 = vmatprep.subr.bf16.mxu0 0
        %2586 = vmatpush2.bf16.msra.mxu0 %v2505
        %2587 = vmatprep.subr.bf16.mxu0 0
        %2588 = vmatpush2.bf16.msra.mxu0 %v2504
        %2589 = vmatprep.subr.bf16.mxu0 0
        %2590 = vmatpush2.bf16.msra.mxu0 %v2503
        %2591 = vmatprep.mubr.bf16.mxu0 %v2293
        %2592 = vmatmul.mubr.bf16.gmra.mxu0 %v2292
        %v2593 = vpop.f32.mrf.mxu0
        %v2594 = vadd.f32 %v2365, %v2593
        %v2595 = vpop.f32.mrf.mxu0
        %v2596 = vpop.f32.mrf.mxu0
        %v2597 = vpop.f32.mrf.mxu0
        %2598 = vdwg.mxu0
        %2599 = vmatprep.subr.bf16.mxu0 0
        %2600 = vmatpush1.bf16.msra.mxu0 %v2518
        %2601 = vmatprep.subr.bf16.mxu0 0
        %2602 = vmatpush1.bf16.msra.mxu0 %v2517
        %2603 = vmatprep.subr.bf16.mxu0 0
        %2604 = vmatpush1.bf16.msra.mxu0 %v2516
        %2605 = vmatprep.subr.bf16.mxu0 0
        %2606 = vmatpush1.bf16.msra.mxu0 %v2515
        %2607 = vmatprep.subr.bf16.mxu0 0
        %2608 = vmatpush1.bf16.msra.mxu0 %v2514
        %2609 = vmatprep.subr.bf16.mxu0 0
        %2610 = vmatpush1.bf16.msra.mxu0 %v2513
        %2611 = vmatprep.subr.bf16.mxu0 0
        %2612 = vmatpush1.bf16.msra.mxu0 %v2512
        %2613 = vmatprep.subr.bf16.mxu0 0
        %2614 = vmatpush1.bf16.msra.mxu0 %v2511
        %2615 = vmatprep.subr.bf16.mxu0 0
        %2616 = vmatpush2.bf16.msra.mxu0 %v2526
        %2617 = vmatprep.subr.bf16.mxu0 0
        %2618 = vmatpush2.bf16.msra.mxu0 %v2525
        %2619 = vmatprep.subr.bf16.mxu0 0
        %2620 = vmatpush2.bf16.msra.mxu0 %v2524
        %2621 = vmatprep.subr.bf16.mxu0 0
        %2622 = vmatpush2.bf16.msra.mxu0 %v2523
        %2623 = vmatprep.subr.bf16.mxu0 0
        %2624 = vmatpush2.bf16.msra.mxu0 %v2522
        %2625 = vmatprep.subr.bf16.mxu0 0
        %2626 = vmatpush2.bf16.msra.mxu0 %v2521
        %2627 = vmatprep.subr.bf16.mxu0 0
        %2628 = vmatpush2.bf16.msra.mxu0 %v2520
        %2629 = vmatprep.subr.bf16.mxu0 0
        %2630 = vmatpush2.bf16.msra.mxu0 %v2519
        %2631 = vmatprep.mubr.bf16.mxu0 %v2295
        %2632 = vmatmul.mubr.bf16.gmra.mxu0 %v2294
        %v2633 = vpop.f32.mrf.mxu0
        %v2634 = vadd.f32 %v2594, %v2633
        %v2635 = vpop.f32.mrf.mxu0
        %v2636 = vpop.f32.mrf.mxu0
        %v2637 = vpop.f32.mrf.mxu0
        %2638 = vdwg.mxu0
        %v2639 = vadd.f32 %v2634, %v1958
        %v2640 = vld [vmem:[%s930] sm:$0x1]
        %v2641 = vld [vmem:[%s933] sm:$0x1]
        %2642 = vadd.xlane.f32.xlu0 %v2639
        %v2643 = vpop.xlane.xlu0 %2642
        %v2644 = vmul.f32 %v2643, %v1935
        %v2645 = vsub.f32 %v2639, %v2644
        %v2646 = vmul.f32 %v2645, %v2645
        %2647 = vadd.xlane.f32.xlu0 %v2646
        %v2648 = vpop.xlane.xlu0 %2647
        %v2649 = vmul.f32 %v2648, %v1935
        %v2650 = vadd.f32 %v2649, 1e-12
        %v2651 = vrsqrt.pop %v2650
        %v2652 = vmul.f32 %v2645, %v2651
        %v2654 = vlaneseq
        %v2655 = vshrl.u32 %v2654, 7
        %v2656 = vsub.s32 0, %v2655
        %v2657 = vrot.slane %v2640, %v2656
        %v2659 = vmul.f32 %v2652, %v2657
        %v2661 = vlaneseq
        %v2662 = vshrl.u32 %v2661, 7
        %v2663 = vsub.s32 0, %v2662
        %v2664 = vrot.slane %v2641, %v2663
        %v2666 = vadd.f32 %v2659, %v2664
        %2667 = vst [vmem:[#allocation2] sm:$0xff] %v2666
        %p2668 = scmp.eq.s32.totalorder %s46, 1
        // Predicated region
        $region125: #{bert_classifier_forward.1} parent=99 // pred_check
          %p2669 = pneg %p2668
        $region126: #{bert_classifier_forward.1} parent=99 // pred_check_branch
          %2671 = sbr.rel (%p2669) target = $region128
        $region127: #{bert_classifier_forward.1} parent=99 // pred_region
          %v2672 = vld [vmem:[#allocation9] sm:$0xff]
          %v2673 = vld [vmem:[#allocation9 + $0x8] sm:$0xff]
          %v2674 = vld [vmem:[#allocation9 + $0x10] sm:$0xff]
          %v2675 = vld [vmem:[#allocation9 + $0x18] sm:$0xff]
          %v2676 = vld [vmem:[#allocation9 + $0x20] sm:$0xff]
          %v2677 = vld [vmem:[#allocation9 + $0x28] sm:$0xff]
          %v2678 = vld [vmem:[#allocation9 + $0x30] sm:$0xff]
          %v2679 = vld [vmem:[#allocation9 + $0x38] sm:$0xff]
          %v2680 = vld [vmem:[#allocation9 + $0x40] sm:$0xff]
          %v2681 = vld [vmem:[#allocation9 + $0x48] sm:$0xff]
          %v2682 = vld [vmem:[#allocation9 + $0x50] sm:$0xff]
          %v2683 = vld [vmem:[#allocation9 + $0x58] sm:$0xff]
          %v2684 = vld [vmem:[#allocation9 + $0x60] sm:$0xff]
          %v2685 = vld [vmem:[#allocation9 + $0x68] sm:$0xff]
          %v2686 = vld [vmem:[#allocation9 + $0x70] sm:$0xff]
          %v2687 = vld [vmem:[#allocation9 + $0x78] sm:$0xff]
          %v2688 = vld [vmem:[%s17] sm:$0x1]
          %2689 = vmatprep.subr.mxu0 0.0
          %2690 = vmatpush1.msra.mxu0 %v2687
          %2691 = vmatprep.subr.mxu0 0.0
          %2692 = vmatpush1.msra.mxu0 %v2686
          %2693 = vmatprep.subr.mxu0 0.0
          %2694 = vmatpush1.msra.mxu0 %v2685
          %2695 = vmatprep.subr.mxu0 0.0
          %2696 = vmatpush1.msra.mxu0 %v2684
          %2697 = vmatprep.subr.mxu0 0.0
          %2698 = vmatpush1.msra.mxu0 %v2683
          %2699 = vmatprep.subr.mxu0 0.0
          %2700 = vmatpush1.msra.mxu0 %v2682
          %2701 = vmatprep.subr.mxu0 0.0
          %2702 = vmatpush1.msra.mxu0 %v2681
          %2703 = vmatprep.subr.mxu0 0.0
          %2704 = vmatpush1.msra.mxu0 %v2680
          %2705 = vmatprep.subr.mxu0 0.0
          %2706 = vmatpush1.msra.mxu0 %v2679
          %2707 = vmatprep.subr.mxu0 0.0
          %2708 = vmatpush1.msra.mxu0 %v2678
          %2709 = vmatprep.subr.mxu0 0.0
          %2710 = vmatpush1.msra.mxu0 %v2677
          %2711 = vmatprep.subr.mxu0 0.0
          %2712 = vmatpush1.msra.mxu0 %v2676
          %2713 = vmatprep.subr.mxu0 0.0
          %2714 = vmatpush1.msra.mxu0 %v2675
          %2715 = vmatprep.subr.mxu0 0.0
          %2716 = vmatpush1.msra.mxu0 %v2674
          %2717 = vmatprep.subr.mxu0 0.0
          %2718 = vmatpush1.msra.mxu0 %v2673
          %2719 = vmatprep.subr.mxu0 0.0
          %2720 = vmatpush1.msra.mxu0 %v2672
          %2721 = vmatprep.subr.mxu0 0.0
          %2722 = vmatpush2.msra.mxu0 0.0
          %2723 = vmatprep.subr.mxu0 0.0
          %2724 = vmatpush2.msra.mxu0 0.0
          %2725 = vmatprep.subr.mxu0 0.0
          %2726 = vmatpush2.msra.mxu0 0.0
          %2727 = vmatprep.subr.mxu0 0.0
          %2728 = vmatpush2.msra.mxu0 0.0
          %2729 = vmatprep.subr.mxu0 0.0
          %2730 = vmatpush2.msra.mxu0 0.0
          %2731 = vmatprep.subr.mxu0 0.0
          %2732 = vmatpush2.msra.mxu0 0.0
          %2733 = vmatprep.subr.mxu0 0.0
          %2734 = vmatpush2.msra.mxu0 0.0
          %2735 = vmatprep.subr.mxu0 0.0
          %2736 = vmatpush2.msra.mxu0 0.0
          %2737 = vmatprep.subr.mxu0 0.0
          %2738 = vmatpush2.msra.mxu0 0.0
          %2739 = vmatprep.subr.mxu0 0.0
          %2740 = vmatpush2.msra.mxu0 0.0
          %2741 = vmatprep.subr.mxu0 0.0
          %2742 = vmatpush2.msra.mxu0 0.0
          %2743 = vmatprep.subr.mxu0 0.0
          %2744 = vmatpush2.msra.mxu0 0.0
          %2745 = vmatprep.subr.mxu0 0.0
          %2746 = vmatpush2.msra.mxu0 0.0
          %2747 = vmatprep.subr.mxu0 0.0
          %2748 = vmatpush2.msra.mxu0 0.0
          %2749 = vmatprep.subr.mxu0 0.0
          %2750 = vmatpush2.msra.mxu0 0.0
          %2751 = vmatprep.subr.mxu0 0.0
          %2752 = vmatpush2.msra.mxu0 0.0
          %2753 = vmatprep.mubr.f32.mxu0 0.0
          %2754 = vmatmul.mubr.f32.gmra.mxu0 %v2666
          %v2755 = vpop.f32.mrf.mxu0
          %v2756 = vadd.f32 %v2688, %v2755
          %v2757 = vpop.f32.mrf.mxu0
          %2758 = vdwg.mxu0
          %v2759 = vtanh.pop %v2756
          %v2760 = vld [vmem:[#allocation11] sm:$0xff]
          %v2761 = vld [vmem:[#allocation11 + $0x8] sm:$0xff]
          %v2762 = vld [vmem:[#allocation11 + $0x10] sm:$0xff]
          %v2763 = vld [vmem:[#allocation11 + $0x18] sm:$0xff]
          %v2764 = vld [vmem:[#allocation11 + $0x20] sm:$0xff]
          %v2765 = vld [vmem:[#allocation11 + $0x28] sm:$0xff]
          %v2766 = vld [vmem:[#allocation11 + $0x30] sm:$0xff]
          %v2767 = vld [vmem:[#allocation11 + $0x38] sm:$0xff]
          %v2768 = vld [vmem:[#allocation11 + $0x40] sm:$0xff]
          %v2769 = vld [vmem:[#allocation11 + $0x48] sm:$0xff]
          %v2770 = vld [vmem:[#allocation11 + $0x50] sm:$0xff]
          %v2771 = vld [vmem:[#allocation11 + $0x58] sm:$0xff]
          %v2772 = vld [vmem:[#allocation11 + $0x60] sm:$0xff]
          %v2773 = vld [vmem:[#allocation11 + $0x68] sm:$0xff]
          %v2774 = vld [vmem:[#allocation11 + $0x70] sm:$0xff]
          %v2775 = vld [vmem:[#allocation11 + $0x78] sm:$0xff]
          %v2776 = vld [vmem:[%s19] sm:$0x1]
          %2777 = vmatprep.subr.mxu0 0.0
          %2778 = vmatpush1.msra.mxu0 %v2775
          %2779 = vmatprep.subr.mxu0 0.0
          %2780 = vmatpush1.msra.mxu0 %v2774
          %2781 = vmatprep.subr.mxu0 0.0
          %2782 = vmatpush1.msra.mxu0 %v2773
          %2783 = vmatprep.subr.mxu0 0.0
          %2784 = vmatpush1.msra.mxu0 %v2772
          %2785 = vmatprep.subr.mxu0 0.0
          %2786 = vmatpush1.msra.mxu0 %v2771
          %2787 = vmatprep.subr.mxu0 0.0
          %2788 = vmatpush1.msra.mxu0 %v2770
          %2789 = vmatprep.subr.mxu0 0.0
          %2790 = vmatpush1.msra.mxu0 %v2769
          %2791 = vmatprep.subr.mxu0 0.0
          %2792 = vmatpush1.msra.mxu0 %v2768
          %2793 = vmatprep.subr.mxu0 0.0
          %2794 = vmatpush1.msra.mxu0 %v2767
          %2795 = vmatprep.subr.mxu0 0.0
          %2796 = vmatpush1.msra.mxu0 %v2766
          %2797 = vmatprep.subr.mxu0 0.0
          %2798 = vmatpush1.msra.mxu0 %v2765
          %2799 = vmatprep.subr.mxu0 0.0
          %2800 = vmatpush1.msra.mxu0 %v2764
          %2801 = vmatprep.subr.mxu0 0.0
          %2802 = vmatpush1.msra.mxu0 %v2763
          %2803 = vmatprep.subr.mxu0 0.0
          %2804 = vmatpush1.msra.mxu0 %v2762
          %2805 = vmatprep.subr.mxu0 0.0
          %2806 = vmatpush1.msra.mxu0 %v2761
          %2807 = vmatprep.subr.mxu0 0.0
          %2808 = vmatpush1.msra.mxu0 %v2760
          %2809 = vmatprep.subr.mxu0 0.0
          %2810 = vmatpush2.msra.mxu0 0.0
          %2811 = vmatprep.subr.mxu0 0.0
          %2812 = vmatpush2.msra.mxu0 0.0
          %2813 = vmatprep.subr.mxu0 0.0
          %2814 = vmatpush2.msra.mxu0 0.0
          %2815 = vmatprep.subr.mxu0 0.0
          %2816 = vmatpush2.msra.mxu0 0.0
          %2817 = vmatprep.subr.mxu0 0.0
          %2818 = vmatpush2.msra.mxu0 0.0
          %2819 = vmatprep.subr.mxu0 0.0
          %2820 = vmatpush2.msra.mxu0 0.0
          %2821 = vmatprep.subr.mxu0 0.0
          %2822 = vmatpush2.msra.mxu0 0.0
          %2823 = vmatprep.subr.mxu0 0.0
          %2824 = vmatpush2.msra.mxu0 0.0
          %2825 = vmatprep.subr.mxu0 0.0
          %2826 = vmatpush2.msra.mxu0 0.0
          %2827 = vmatprep.subr.mxu0 0.0
          %2828 = vmatpush2.msra.mxu0 0.0
          %2829 = vmatprep.subr.mxu0 0.0
          %2830 = vmatpush2.msra.mxu0 0.0
          %2831 = vmatprep.subr.mxu0 0.0
          %2832 = vmatpush2.msra.mxu0 0.0
          %2833 = vmatprep.subr.mxu0 0.0
          %2834 = vmatpush2.msra.mxu0 0.0
          %2835 = vmatprep.subr.mxu0 0.0
          %2836 = vmatpush2.msra.mxu0 0.0
          %2837 = vmatprep.subr.mxu0 0.0
          %2838 = vmatpush2.msra.mxu0 0.0
          %2839 = vmatprep.subr.mxu0 0.0
          %2840 = vmatpush2.msra.mxu0 0.0
          %2841 = vmatprep.mubr.f32.mxu0 0.0
          %2842 = vmatmul.mubr.f32.gmra.mxu0 %v2759
          %v2843 = vpop.f32.mrf.mxu0
          %v2844 = vadd.f32 %v2776, %v2843
          %v2845 = vpop.f32.mrf.mxu0
          %2846 = vdwg.mxu0
          %v2847 = vmax.f32 %v2844, 0.0
          %2848 = vst [vmem:[%s895] sm:$0x1] %v2847
        $region128: #{bert_classifier_forward.1} parent=99 // pred_fallthru
          _
        %s2849 = sand.u32 %s551, 1
        %s2850 = scalar_lea.sflag [#allocation5], %s2849
        %s2851 = sand.u32 %s551, 1
        %s2852 = scalar_lea.vmem [#allocation12], %s2851
        // Predicated region
        $region129: #{bert_classifier_forward.1} parent=99 // pred_check
          %p2853 = pneg %p561
        $region130: #{bert_classifier_forward.1} parent=99 // pred_check_branch
          %2855 = sbr.rel (%p2853) target = $region132
        $region131: #{bert_classifier_forward.1} parent=99 // pred_region
          %s2857 = ssub.s32 16, 16
          %2858 = vsyncadd %s2850, %s2857
          %s2859 = smul.addr %s45, 16
          %s2860 = scalar_lea.hbm %s20, %s2859
          %s2862 = sshll.u32 %s2852, 4
          %s2863 = int_to_ptr.vmem [resolvable:$true] %s2862
          %2865 = dma.vmem_to_hbm [thread:$0]  %s2863, 16, %s2860, %s2850
        $region132: #{bert_classifier_forward.1} parent=99 // pred_fallthru
          _
      $region100: #{bert_classifier_forward.1} parent=5 // pred_fallthru
        _
      %p2866 = scmp.le.s32.totalorder 2, %s36
      // Predicated region
      $region133: #{bert_classifier_forward.1} parent=5 // pred_check
        %p2867 = pneg %p2866
      $region134: #{bert_classifier_forward.1} parent=5 // pred_check_branch
        %2869 = sbr.rel (%p2867) target = $region136
      $region135: #{bert_classifier_forward.1} parent=5 // pred_region
        %s2870 = ssub.s32 %s36, 2
        // Predicated region
        $region137: #{bert_classifier_forward.1} parent=135 // pred_check
          %p2871 = pneg %p567
        $region138: #{bert_classifier_forward.1} parent=135 // pred_check_branch
          %2873 = sbr.rel (%p2871) target = $region140
        $region139: #{bert_classifier_forward.1} parent=135 // pred_region
          %s2874 = sand.u32 %s552, 1
          %s2875 = scalar_lea.sflag [#allocation5], %s2874
          %s2876 = sand.u32 %s552, 1
          %s2877 = scalar_lea.vmem [#allocation12], %s2876
          %2878 = dma.done %s2875, 16
        $region140: #{bert_classifier_forward.1} parent=135 // pred_fallthru
          _
      $region136: #{bert_classifier_forward.1} parent=5 // pred_fallthru
        _
    $region6: #{bert_classifier_forward.1} parent=1 // loop_footer
      %s40 = sadd.s32 1, %s36
    $region7: #{bert_classifier_forward.1} parent=1 // loop_footer_branch
      %35 = sbr.rel target = $region3
    $region8: #{bert_classifier_forward.1} parent=1 // loop_exit
      _
    %2879 = vsyncpa [#allocation4], 1
    %s2880 = scalar_lea.sflag [#allocation4], 1
    %2881 = vsyncpa %s2880, 1
    %2882 = vsyncpa [#allocation7], 1
    %s2883 = scalar_lea.sflag [#allocation7], 1
    %2884 = vsyncpa %s2883, 1
    %2885 = vsyncpa [#allocation10], 1
    %2886 = vsyncpa [#allocation5], 1
    %s2887 = scalar_lea.sflag [#allocation5], 1
    %2888 = vsyncpa %s2887, 1

</llo_original>
